<compile_context>
chip_gen: v7x
topology: tpu7x:2x2x1
jax: 0.10.0
libtpu: 0.0.40
codegen_flags: <defaults>
</compile_context>

<pallas_src>
import functools

import numpy as np

import jax
import jax.numpy as jnp
from jax import lax
from jax.experimental import pallas as pl
from jax.experimental.pallas import tpu as pltpu


CPAD = 128                 # pad every conv/linear out-channel dim to 128 lanes
K1, S1 = 8, 4              # conv1 kernel / stride
K2, S2 = 4, 2              # conv2 kernel / stride
K3 = 3                     # conv3 kernel (stride 1)


# ----------------------------------------------------------------------------
# The single fused kernel
# ----------------------------------------------------------------------------
def _rainbow_kernel(p1_ref, c1w_ref, c1b_ref, c2w_ref, c2b_ref,
                    c3w_ref, c3b_ref, w1_ref, b1_ref, w2_ref, b2_ref,
                    o_ref, *, batch, n_off, n_pos, az):
    """Whole forward pass: conv1 GEMM -> conv2 shifted dots -> conv3 taps -> heads."""
    f32, bf16 = jnp.float32, jnp.bfloat16
    rows2 = n_pos * batch                                   # conv2 output rows (s, b)

    # conv1 over the replicated conv2-window rows: one lane-dense GEMM + bias + ReLU.
    y1 = jnp.dot(p1_ref[...], c1w_ref[...], preferred_element_type=f32)
    y1 = jnp.maximum(y1 + c1b_ref[...], 0.0).astype(bf16)   # (n_off*rows2, 128)

    # conv2 as shifted-window accumulation: one (rows2,128)x(128,128) dot per (ki,kj),
    # each weight slab pushed to the MXU exactly once.
    acc2 = jnp.zeros((rows2, CPAD), f32)
    for k in range(n_off):
        acc2 = acc2 + jnp.dot(y1[k * rows2:(k + 1) * rows2, :], c2w_ref[k],
                              preferred_element_type=f32)
    y2 = jnp.maximum(acc2 + c2b_ref[...], 0.0).astype(bf16)  # (rows2, 128), rows (s, b)

    # conv3 (1x1 output map): accumulate one (batch,128)x(128,128) dot per spatial tap.
    accf = jnp.zeros((batch, CPAD), f32)
    for s in range(n_pos):
        accf = accf + jnp.dot(y2[s * batch:(s + 1) * batch, :], c3w_ref[s],
                              preferred_element_type=f32)
    feat = jnp.maximum(accf + c3b_ref[...], 0.0).astype(bf16)  # (batch, 128)

    # value|advantage layer-1 (concatenated) + folded layer-2/dueling combine.
    h = jnp.dot(feat, w1_ref[...], preferred_element_type=f32)
    h = jnp.maximum(h + b1_ref[...], 0.0).astype(bf16)         # (batch, 1024)
    q = jnp.dot(h, w2_ref[...], preferred_element_type=f32) + b2_ref[...]
    o_ref[...] = q[:, :az]                                      # (batch, A*Z)


def pallas_rainbow(p1_rep, kp, *, batch, n_off, n_pos, az):
    vmem = pl.BlockSpec(memory_space=pltpu.MemorySpace.VMEM)
    kernel = functools.partial(_rainbow_kernel, batch=batch, n_off=n_off,
                               n_pos=n_pos, az=az)
    return pl.pallas_call(
        kernel,
        out_shape=jax.ShapeDtypeStruct((batch, az), jnp.float32),
        in_specs=[vmem] * 11,
        out_specs=vmem,
    )(p1_rep, kp["c1_w"], kp["c1_b"], kp["c2_w"], kp["c2_b"],
      kp["c3_w"], kp["c3_b"], kp["W1"], kp["b1"], kp["W2"], kp["b2"])


# ----------------------------------------------------------------------------
# XLA-side glue: conv1 im2col with rows replicated per conv2 window
# (converts the lane-sparse C=4 input into a lane-dense 256-wide operand)
# ----------------------------------------------------------------------------
def conv_patches_nhwc(x, K, S):
    """x: (B, H, W, C) -> (B, Ho, Wo, K*K*C), patch column order (ki, kj, c)."""
    B, H, W, C = x.shape
    Ho = (H - K) // S + 1
    Wo = (W - K) // S + 1
    hs = jnp.stack([x[:, ki:ki + S * (Ho - 1) + 1:S, :, :] for ki in range(K)],
                   axis=2)                                     # (B, Ho, K, W, C)
    ps = jnp.stack([hs[:, :, :, kj:kj + S * (Wo - 1) + 1:S, :] for kj in range(K)],
                   axis=4)                                     # (B, Ho, K, Wo, K, C)
    ps = ps.transpose(0, 1, 3, 2, 4, 5)                        # (B, Ho, Wo, K, K, C)
    return ps.reshape(B, Ho, Wo, K * K * C), Ho, Wo


def build_p1_rep(x_nchw):
    """(B, C, H, W) -> (16*9*B, 8*8*C) bf16 conv1 patches, rows ordered (k2, s2, b)."""
    B = x_nchw.shape[0]
    # TODO(synk): if the caller can supply NHWC directly, drop this transpose.
    x = jnp.transpose(x_nchw, (0, 2, 3, 1)).astype(jnp.bfloat16)
    ps, Ho1, Wo1 = conv_patches_nhwc(x, K1, S1)                # (B, 8, 8, 256)
    Ho2 = (Ho1 - K2) // S2 + 1
    Wo2 = (Wo1 - K2) // S2 + 1
    assert Ho2 == K3 and Wo2 == K3, (Ho2, Wo2)   # conv3 fold needs a 1x1 final map

    # conv1 output position needed by (conv2 offset k=(ki2,kj2), conv2 output s=(oi,oj))
    k_i = np.repeat(np.arange(K2), K2)
    k_j = np.tile(np.arange(K2), K2)
    s_i = np.repeat(np.arange(Ho2), Wo2)
    s_j = np.tile(np.arange(Wo2), Ho2)
    i_idx = S2 * s_i[None, :] + k_i[:, None]                   # (16, 9)
    j_idx = S2 * s_j[None, :] + k_j[:, None]                   # (16, 9)

    rep = ps[:, i_idx, j_idx, :]                               # (B, 16, 9, 256) row gather
    P = ps.shape[-1]
    p1_rep = jnp.transpose(rep, (1, 2, 0, 3)).reshape(K2 * K2 * Ho2 * Wo2 * B, P)
    return p1_rep, Ho2, Wo2


# ----------------------------------------------------------------------------
# Forward pass
# ----------------------------------------------------------------------------
def rainbow_forward(x_nchw, kp, *, num_actions, num_atoms):
    """x: (B, C, H, W) f32 NCHW -> q: (B, num_actions, num_atoms) f32."""
    B = x_nchw.shape[0]
    p1_rep, Ho2, Wo2 = build_p1_rep(x_nchw)
    n_off = kp["c2_w"].shape[0]
    n_pos = kp["c3_w"].shape[0]
    assert n_off == K2 * K2 and n_pos == Ho2 * Wo2
    assert p1_rep.shape[0] == n_off * n_pos * B
    az = num_actions * num_atoms
    q_flat = pallas_rainbow(p1_rep, kp, batch=B, n_off=n_off, n_pos=n_pos, az=az)
    return q_flat.reshape(B, num_actions, num_atoms)           # free metadata reshape


# ----------------------------------------------------------------------------
# Parameters: PyTorch-layout "true" params + one-time permute/pad/fuse for the kernel
# ----------------------------------------------------------------------------
def init_true_params(key, in_channels, num_actions, num_atoms, flattened_size):
    """Parameters in PyTorch layout (conv OIHW, linears as (in, out) matrices)."""
    ks = jax.random.split(key, 14)
    s = 0.05

    def w(k, shape):
        return s * jax.random.normal(k, shape, jnp.float32)

    A, Z = num_actions, num_atoms
    return {
        "c1_w": w(ks[0], (32, in_channels, K1, K1)), "c1_b": w(ks[1], (32,)),
        "c2_w": w(ks[2], (64, 32, K2, K2)),          "c2_b": w(ks[3], (64,)),
        "c3_w": w(ks[4], (64, 64, K3, K3)),          "c3_b": w(ks[5], (64,)),
        "v1_w": w(ks[6], (flattened_size, 512)),     "v1_b": w(ks[7], (512,)),
        "v2_w": w(ks[8], (512, Z)),                  "v2_b": w(ks[9], (Z,)),
        "a1_w": w(ks[10], (flattened_size, 512)),    "a1_b": w(ks[11], (512,)),
        "a2_w": w(ks[12], (512, A * Z)),             "a2_b": w(ks[13], (A * Z,)),
    }


def prepare_kernel_params(tp, in_channels, num_actions, num_atoms, flattened_size):
    """Permute / zero-pad / fuse parameters once for the fused Pallas kernel."""
    A, Z = num_actions, num_atoms
    f32, bf16 = jnp.float32, jnp.bfloat16

    def pad_bias(b):
        return jnp.pad(b, (0, CPAD - b.shape[0])).reshape(1, CPAD).astype(f32)

    def conv1_gemm_weight(w_oihw):
        w = jnp.transpose(w_oihw, (2, 3, 1, 0))                # (kh, kw, cin, cout)
        kh, kw, cin, cout = w.shape
        w = w.reshape(kh * kw * cin, cout)                     # patch order (ki, kj, c)
        return jnp.pad(w, ((0, 0), (0, CPAD - cout))).astype(bf16)

    def conv_slabs(w_oihw):
        # per-(ki,kj) weight slabs: (kh*kw, 128_in, 128_out), zero-padded channels
        w = jnp.transpose(w_oihw, (2, 3, 1, 0))                # (kh, kw, cin, cout)
        kh, kw, cin, cout = w.shape
        w = jnp.pad(w, ((0, 0), (0, 0), (0, CPAD - cin), (0, CPAD - cout)))
        return w.reshape(kh * kw, CPAD, CPAD).astype(bf16)

    c1_w = conv1_gemm_weight(tp["c1_w"])                       # (8*8*Cin, 128)
    c2_w = conv_slabs(tp["c2_w"])                              # (16, 128, 128)
    c3_w = conv_slabs(tp["c3_w"])                              # (9, 128, 128)

    # layer-1 of both heads: rows = padded feature channels, cols = [value | advantage]
    v1 = jnp.pad(tp["v1_w"], ((0, CPAD - flattened_size), (0, 0)))
    a1 = jnp.pad(tp["a1_w"], ((0, CPAD - flattened_size), (0, 0)))
    W1 = jnp.concatenate([v1, a1], axis=1).astype(bf16)        # (128, 1024)
    b1 = jnp.concatenate([tp["v1_b"], tp["a1_b"]]).reshape(1, -1).astype(f32)

    # layer-2 + dueling combine, folded exactly:
    #   q_flat = v @ T + a @ (I - M), with T[z, i*Z+z] = 1 and M[j*Z+z, i*Z+z] = 1/A
    T = jnp.tile(jnp.eye(Z, dtype=f32), (1, A))                # (Z, A*Z)
    Mm = jnp.tile(jnp.eye(Z, dtype=f32), (A, A)) / A           # (A*Z, A*Z)
    IM = jnp.eye(A * Z, dtype=f32) - Mm
    W2 = jnp.concatenate([tp["v2_w"] @ T, tp["a2_w"] @ IM], axis=0)   # (1024, A*Z)
    b2 = (tp["v2_b"] @ T + tp["a2_b"] @ IM).reshape(1, -1)
    W2 = jnp.pad(W2, ((0, 0), (0, CPAD - A * Z))).astype(bf16)        # lane-dense MXU N
    b2 = jnp.pad(b2, ((0, 0), (0, CPAD - A * Z))).astype(f32)

    return {
        "c1_w": c1_w, "c1_b": pad_bias(tp["c1_b"]),
        "c2_w": c2_w, "c2_b": pad_bias(tp["c2_b"]),
        "c3_w": c3_w, "c3_b": pad_bias(tp["c3_b"]),
        "W1": W1, "b1": b1, "W2": W2, "b2": b2,
    }


# ----------------------------------------------------------------------------
# Pure-JAX f32 reference of the original PyTorch module (for a numerics check)
# ----------------------------------------------------------------------------
def reference_forward(x, tp, *, num_actions, num_atoms):
    B = x.shape[0]
    dn = ("NCHW", "OIHW", "NCHW")
    y = x
    for name, stride in (("c1", S1), ("c2", S2), ("c3", 1)):
        y = lax.conv_general_dilated(y, tp[name + "_w"], (stride, stride),
                                     "VALID", dimension_numbers=dn)
        y = jnp.maximum(y + tp[name + "_b"][None, :, None, None], 0.0)
    feat = y.reshape(B, -1)
    vh = jnp.maximum(feat @ tp["v1_w"] + tp["v1_b"], 0.0)
    v = (vh @ tp["v2_w"] + tp["v2_b"]).reshape(B, 1, num_atoms)
    ah = jnp.maximum(feat @ tp["a1_w"] + tp["a1_b"], 0.0)
    a = (ah @ tp["a2_w"] + tp["a2_b"]).reshape(B, num_actions, num_atoms)
    return v + a - a.mean(axis=1, keepdims=True)


# ----------------------------------------------------------------------------
# Main
# ----------------------------------------------------------------------------
if __name__ == "__main__":
    B, C, H, W = 2, 4, 36, 36          # smallest H/W giving a valid (1x1) final feature map
    num_actions, num_atoms = 4, 8

    h3 = ((H - 8) // 4 + 1 - 4) // 2 + 1 - 3 + 1
    w3 = ((W - 8) // 4 + 1 - 4) // 2 + 1 - 3 + 1
    # conv3 + heads are folded into the single kernel; that requires a 1x1 final map
    assert h3 == 1 and w3 == 1, (h3, w3)
    flattened_size = 64 * h3 * w3

    key = jax.random.PRNGKey(0)
    kx, kparam = jax.random.split(key)
    x = jax.random.normal(kx, (B, C, H, W), jnp.float32)

    true_params = init_true_params(kparam, C, num_actions, num_atoms, flattened_size)
    kparams = prepare_kernel_params(true_params, C, num_actions, num_atoms,
                                    flattened_size)

    fwd = jax.jit(functools.partial(rainbow_forward,
                                    num_actions=num_actions, num_atoms=num_atoms))
    q = jax.block_until_ready(fwd(x, kparams))

    assert q.shape == (B, num_actions, num_atoms), q.shape
    assert q.dtype == jnp.float32

    # numerics check against the pure-JAX f32 reference (bf16 operands => loose tol)
    q_ref = reference_forward(x, true_params,
                              num_actions=num_actions, num_atoms=num_atoms)
    err = float(jnp.max(jnp.abs(q - q_ref)))
    assert err < 5e-2, f"mismatch vs reference: max abs err = {err}"
    print("KERNEL_OK")
</pallas_src>

<mosaic_0001>
module attributes {stable_mosaic.version = 11 : i64} {
  func.func @_rainbow_kernel(%arg0: memref<288x256xbf16, #tpu.memory_space<vmem>>, %arg1: memref<256x128xbf16, #tpu.memory_space<vmem>>, %arg2: memref<1x128xf32, #tpu.memory_space<vmem>>, %arg3: memref<16x128x128xbf16, #tpu.memory_space<vmem>>, %arg4: memref<1x128xf32, #tpu.memory_space<vmem>>, %arg5: memref<9x128x128xbf16, #tpu.memory_space<vmem>>, %arg6: memref<1x128xf32, #tpu.memory_space<vmem>>, %arg7: memref<128x1024xbf16, #tpu.memory_space<vmem>>, %arg8: memref<1x1024xf32, #tpu.memory_space<vmem>>, %arg9: memref<1024x128xbf16, #tpu.memory_space<vmem>>, %arg10: memref<1x128xf32, #tpu.memory_space<vmem>>, %arg11: memref<2x32xf32, #tpu.memory_space<vmem>>) attributes {dimension_semantics = [], scalar_prefetch = 0 : i64, scratch_operands = 0 : i64, tpu.core_type = #tpu.core_type<tc>} {
    %c0 = arith.constant 0 : index
    %c0_0 = arith.constant 0 : index
    %0 = vector.load %arg0[%c0, %c0_0] : memref<288x256xbf16, #tpu.memory_space<vmem>>, vector<288x256xbf16>
    %c0_1 = arith.constant 0 : index
    %c0_2 = arith.constant 0 : index
    %1 = vector.load %arg1[%c0_1, %c0_2] : memref<256x128xbf16, #tpu.memory_space<vmem>>, vector<256x128xbf16>
    %cst = arith.constant dense<0.000000e+00> : vector<288x128xf32>
    %2 = tpu.matmul %0, %1, %cst {dimension_numbers = #tpu.dot_dimension_numbers<[1], [0], [0], [1], [0, 0, 1, 1], [], []>} : vector<288x256xbf16>, vector<256x128xbf16>, vector<288x128xf32> -> vector<288x128xf32>
    %c0_3 = arith.constant 0 : index
    %c0_4 = arith.constant 0 : index
    %3 = vector.load %arg2[%c0_3, %c0_4] : memref<1x128xf32, #tpu.memory_space<vmem>>, vector<1x128xf32>
    %4 = vector.broadcast %3 : vector<1x128xf32> to vector<288x128xf32>
    %5 = arith.addf %2, %4 : vector<288x128xf32>
    %cst_5 = arith.constant 0.000000e+00 : f32
    %6 = vector.broadcast %cst_5 : f32 to vector<288x128xf32>
    %7 = arith.maximumf %5, %6 : vector<288x128xf32>
    %8 = arith.truncf %7 : vector<288x128xf32> to vector<288x128xbf16>
    %cst_6 = arith.constant 0.000000e+00 : f32
    %9 = vector.broadcast %cst_6 : f32 to vector<18x128xf32>
    %10 = vector.extract_strided_slice %8 {offsets = [0, 0], sizes = [18, 128], strides = [1, 1]} : vector<288x128xbf16> to vector<18x128xbf16>
    %c0_7 = arith.constant 0 : index
    %c0_8 = arith.constant 0 : index
    %c0_9 = arith.constant 0 : index
    %11 = vector.load %arg3[%c0_7, %c0_8, %c0_9] : memref<16x128x128xbf16, #tpu.memory_space<vmem>>, vector<1x128x128xbf16>
    %12 = vector.shape_cast %11 : vector<1x128x128xbf16> to vector<128x128xbf16>
    %cst_10 = arith.constant dense<0.000000e+00> : vector<18x128xf32>
    %13 = tpu.matmul %10, %12, %cst_10 {dimension_numbers = #tpu.dot_dimension_numbers<[1], [0], [0], [1], [0, 0, 1, 1], [], []>} : vector<18x128xbf16>, vector<128x128xbf16>, vector<18x128xf32> -> vector<18x128xf32>
    %14 = arith.addf %9, %13 : vector<18x128xf32>
    %15 = vector.extract_strided_slice %8 {offsets = [18, 0], sizes = [18, 128], strides = [1, 1]} : vector<288x128xbf16> to vector<18x128xbf16>
    %c1 = arith.constant 1 : index
    %c0_11 = arith.constant 0 : index
    %c0_12 = arith.constant 0 : index
    %16 = vector.load %arg3[%c1, %c0_11, %c0_12] : memref<16x128x128xbf16, #tpu.memory_space<vmem>>, vector<1x128x128xbf16>
    %17 = vector.shape_cast %16 : vector<1x128x128xbf16> to vector<128x128xbf16>
    %cst_13 = arith.constant dense<0.000000e+00> : vector<18x128xf32>
    %18 = tpu.matmul %15, %17, %cst_13 {dimension_numbers = #tpu.dot_dimension_numbers<[1], [0], [0], [1], [0, 0, 1, 1], [], []>} : vector<18x128xbf16>, vector<128x128xbf16>, vector<18x128xf32> -> vector<18x128xf32>
    %19 = arith.addf %14, %18 : vector<18x128xf32>
    %20 = vector.extract_strided_slice %8 {offsets = [36, 0], sizes = [18, 128], strides = [1, 1]} : vector<288x128xbf16> to vector<18x128xbf16>
    %c2 = arith.constant 2 : index
    %c0_14 = arith.constant 0 : index
    %c0_15 = arith.constant 0 : index
    %21 = vector.load %arg3[%c2, %c0_14, %c0_15] : memref<16x128x128xbf16, #tpu.memory_space<vmem>>, vector<1x128x128xbf16>
    %22 = vector.shape_cast %21 : vector<1x128x128xbf16> to vector<128x128xbf16>
    %cst_16 = arith.constant dense<0.000000e+00> : vector<18x128xf32>
    %23 = tpu.matmul %20, %22, %cst_16 {dimension_numbers = #tpu.dot_dimension_numbers<[1], [0], [0], [1], [0, 0, 1, 1], [], []>} : vector<18x128xbf16>, vector<128x128xbf16>, vector<18x128xf32> -> vector<18x128xf32>
    %24 = arith.addf %19, %23 : vector<18x128xf32>
    %25 = vector.extract_strided_slice %8 {offsets = [54, 0], sizes = [18, 128], strides = [1, 1]} : vector<288x128xbf16> to vector<18x128xbf16>
    %c3 = arith.constant 3 : index
    %c0_17 = arith.constant 0 : index
    %c0_18 = arith.constant 0 : index
    %26 = vector.load %arg3[%c3, %c0_17, %c0_18] : memref<16x128x128xbf16, #tpu.memory_space<vmem>>, vector<1x128x128xbf16>
    %27 = vector.shape_cast %26 : vector<1x128x128xbf16> to vector<128x128xbf16>
    %cst_19 = arith.constant dense<0.000000e+00> : vector<18x128xf32>
    %28 = tpu.matmul %25, %27, %cst_19 {dimension_numbers = #tpu.dot_dimension_numbers<[1], [0], [0], [1], [0, 0, 1, 1], [], []>} : vector<18x128xbf16>, vector<128x128xbf16>, vector<18x128xf32> -> vector<18x128xf32>
    %29 = arith.addf %24, %28 : vector<18x128xf32>
    %30 = vector.extract_strided_slice %8 {offsets = [72, 0], sizes = [18, 128], strides = [1, 1]} : vector<288x128xbf16> to vector<18x128xbf16>
    %c4 = arith.constant 4 : index
    %c0_20 = arith.constant 0 : index
    %c0_21 = arith.constant 0 : index
    %31 = vector.load %arg3[%c4, %c0_20, %c0_21] : memref<16x128x128xbf16, #tpu.memory_space<vmem>>, vector<1x128x128xbf16>
    %32 = vector.shape_cast %31 : vector<1x128x128xbf16> to vector<128x128xbf16>
    %cst_22 = arith.constant dense<0.000000e+00> : vector<18x128xf32>
    %33 = tpu.matmul %30, %32, %cst_22 {dimension_numbers = #tpu.dot_dimension_numbers<[1], [0], [0], [1], [0, 0, 1, 1], [], []>} : vector<18x128xbf16>, vector<128x128xbf16>, vector<18x128xf32> -> vector<18x128xf32>
    %34 = arith.addf %29, %33 : vector<18x128xf32>
    %35 = vector.extract_strided_slice %8 {offsets = [90, 0], sizes = [18, 128], strides = [1, 1]} : vector<288x128xbf16> to vector<18x128xbf16>
    %c5 = arith.constant 5 : index
    %c0_23 = arith.constant 0 : index
    %c0_24 = arith.constant 0 : index
    %36 = vector.load %arg3[%c5, %c0_23, %c0_24] : memref<16x128x128xbf16, #tpu.memory_space<vmem>>, vector<1x128x128xbf16>
    %37 = vector.shape_cast %36 : vector<1x128x128xbf16> to vector<128x128xbf16>
    %cst_25 = arith.constant dense<0.000000e+00> : vector<18x128xf32>
    %38 = tpu.matmul %35, %37, %cst_25 {dimension_numbers = #tpu.dot_dimension_numbers<[1], [0], [0], [1], [0, 0, 1, 1], [], []>} : vector<18x128xbf16>, vector<128x128xbf16>, vector<18x128xf32> -> vector<18x128xf32>
    %39 = arith.addf %34, %38 : vector<18x128xf32>
    %40 = vector.extract_strided_slice %8 {offsets = [108, 0], sizes = [18, 128], strides = [1, 1]} : vector<288x128xbf16> to vector<18x128xbf16>
    %c6 = arith.constant 6 : index
    %c0_26 = arith.constant 0 : index
    %c0_27 = arith.constant 0 : index
    %41 = vector.load %arg3[%c6, %c0_26, %c0_27] : memref<16x128x128xbf16, #tpu.memory_space<vmem>>, vector<1x128x128xbf16>
    %42 = vector.shape_cast %41 : vector<1x128x128xbf16> to vector<128x128xbf16>
    %cst_28 = arith.constant dense<0.000000e+00> : vector<18x128xf32>
    %43 = tpu.matmul %40, %42, %cst_28 {dimension_numbers = #tpu.dot_dimension_numbers<[1], [0], [0], [1], [0, 0, 1, 1], [], []>} : vector<18x128xbf16>, vector<128x128xbf16>, vector<18x128xf32> -> vector<18x128xf32>
    %44 = arith.addf %39, %43 : vector<18x128xf32>
    %45 = vector.extract_strided_slice %8 {offsets = [126, 0], sizes = [18, 128], strides = [1, 1]} : vector<288x128xbf16> to vector<18x128xbf16>
    %c7 = arith.constant 7 : index
    %c0_29 = arith.constant 0 : index
    %c0_30 = arith.constant 0 : index
    %46 = vector.load %arg3[%c7, %c0_29, %c0_30] : memref<16x128x128xbf16, #tpu.memory_space<vmem>>, vector<1x128x128xbf16>
    %47 = vector.shape_cast %46 : vector<1x128x128xbf16> to vector<128x128xbf16>
    %cst_31 = arith.constant dense<0.000000e+00> : vector<18x128xf32>
    %48 = tpu.matmul %45, %47, %cst_31 {dimension_numbers = #tpu.dot_dimension_numbers<[1], [0], [0], [1], [0, 0, 1, 1], [], []>} : vector<18x128xbf16>, vector<128x128xbf16>, vector<18x128xf32> -> vector<18x128xf32>
    %49 = arith.addf %44, %48 : vector<18x128xf32>
    %50 = vector.extract_strided_slice %8 {offsets = [144, 0], sizes = [18, 128], strides = [1, 1]} : vector<288x128xbf16> to vector<18x128xbf16>
    %c8 = arith.constant 8 : index
    %c0_32 = arith.constant 0 : index
    %c0_33 = arith.constant 0 : index
    %51 = vector.load %arg3[%c8, %c0_32, %c0_33] : memref<16x128x128xbf16, #tpu.memory_space<vmem>>, vector<1x128x128xbf16>
    %52 = vector.shape_cast %51 : vector<1x128x128xbf16> to vector<128x128xbf16>
    %cst_34 = arith.constant dense<0.000000e+00> : vector<18x128xf32>
    %53 = tpu.matmul %50, %52, %cst_34 {dimension_numbers = #tpu.dot_dimension_numbers<[1], [0], [0], [1], [0, 0, 1, 1], [], []>} : vector<18x128xbf16>, vector<128x128xbf16>, vector<18x128xf32> -> vector<18x128xf32>
    %54 = arith.addf %49, %53 : vector<18x128xf32>
    %55 = vector.extract_strided_slice %8 {offsets = [162, 0], sizes = [18, 128], strides = [1, 1]} : vector<288x128xbf16> to vector<18x128xbf16>
    %c9 = arith.constant 9 : index
    %c0_35 = arith.constant 0 : index
    %c0_36 = arith.constant 0 : index
    %56 = vector.load %arg3[%c9, %c0_35, %c0_36] : memref<16x128x128xbf16, #tpu.memory_space<vmem>>, vector<1x128x128xbf16>
    %57 = vector.shape_cast %56 : vector<1x128x128xbf16> to vector<128x128xbf16>
    %cst_37 = arith.constant dense<0.000000e+00> : vector<18x128xf32>
    %58 = tpu.matmul %55, %57, %cst_37 {dimension_numbers = #tpu.dot_dimension_numbers<[1], [0], [0], [1], [0, 0, 1, 1], [], []>} : vector<18x128xbf16>, vector<128x128xbf16>, vector<18x128xf32> -> vector<18x128xf32>
    %59 = arith.addf %54, %58 : vector<18x128xf32>
    %60 = vector.extract_strided_slice %8 {offsets = [180, 0], sizes = [18, 128], strides = [1, 1]} : vector<288x128xbf16> to vector<18x128xbf16>
    %c10 = arith.constant 10 : index
    %c0_38 = arith.constant 0 : index
    %c0_39 = arith.constant 0 : index
    %61 = vector.load %arg3[%c10, %c0_38, %c0_39] : memref<16x128x128xbf16, #tpu.memory_space<vmem>>, vector<1x128x128xbf16>
    %62 = vector.shape_cast %61 : vector<1x128x128xbf16> to vector<128x128xbf16>
    %cst_40 = arith.constant dense<0.000000e+00> : vector<18x128xf32>
    %63 = tpu.matmul %60, %62, %cst_40 {dimension_numbers = #tpu.dot_dimension_numbers<[1], [0], [0], [1], [0, 0, 1, 1], [], []>} : vector<18x128xbf16>, vector<128x128xbf16>, vector<18x128xf32> -> vector<18x128xf32>
    %64 = arith.addf %59, %63 : vector<18x128xf32>
    %65 = vector.extract_strided_slice %8 {offsets = [198, 0], sizes = [18, 128], strides = [1, 1]} : vector<288x128xbf16> to vector<18x128xbf16>
    %c11 = arith.constant 11 : index
    %c0_41 = arith.constant 0 : index
    %c0_42 = arith.constant 0 : index
    %66 = vector.load %arg3[%c11, %c0_41, %c0_42] : memref<16x128x128xbf16, #tpu.memory_space<vmem>>, vector<1x128x128xbf16>
    %67 = vector.shape_cast %66 : vector<1x128x128xbf16> to vector<128x128xbf16>
    %cst_43 = arith.constant dense<0.000000e+00> : vector<18x128xf32>
    %68 = tpu.matmul %65, %67, %cst_43 {dimension_numbers = #tpu.dot_dimension_numbers<[1], [0], [0], [1], [0, 0, 1, 1], [], []>} : vector<18x128xbf16>, vector<128x128xbf16>, vector<18x128xf32> -> vector<18x128xf32>
    %69 = arith.addf %64, %68 : vector<18x128xf32>
    %70 = vector.extract_strided_slice %8 {offsets = [216, 0], sizes = [18, 128], strides = [1, 1]} : vector<288x128xbf16> to vector<18x128xbf16>
    %c12 = arith.constant 12 : index
    %c0_44 = arith.constant 0 : index
    %c0_45 = arith.constant 0 : index
    %71 = vector.load %arg3[%c12, %c0_44, %c0_45] : memref<16x128x128xbf16, #tpu.memory_space<vmem>>, vector<1x128x128xbf16>
    %72 = vector.shape_cast %71 : vector<1x128x128xbf16> to vector<128x128xbf16>
    %cst_46 = arith.constant dense<0.000000e+00> : vector<18x128xf32>
    %73 = tpu.matmul %70, %72, %cst_46 {dimension_numbers = #tpu.dot_dimension_numbers<[1], [0], [0], [1], [0, 0, 1, 1], [], []>} : vector<18x128xbf16>, vector<128x128xbf16>, vector<18x128xf32> -> vector<18x128xf32>
    %74 = arith.addf %69, %73 : vector<18x128xf32>
    %75 = vector.extract_strided_slice %8 {offsets = [234, 0], sizes = [18, 128], strides = [1, 1]} : vector<288x128xbf16> to vector<18x128xbf16>
    %c13 = arith.constant 13 : index
    %c0_47 = arith.constant 0 : index
    %c0_48 = arith.constant 0 : index
    %76 = vector.load %arg3[%c13, %c0_47, %c0_48] : memref<16x128x128xbf16, #tpu.memory_space<vmem>>, vector<1x128x128xbf16>
    %77 = vector.shape_cast %76 : vector<1x128x128xbf16> to vector<128x128xbf16>
    %cst_49 = arith.constant dense<0.000000e+00> : vector<18x128xf32>
    %78 = tpu.matmul %75, %77, %cst_49 {dimension_numbers = #tpu.dot_dimension_numbers<[1], [0], [0], [1], [0, 0, 1, 1], [], []>} : vector<18x128xbf16>, vector<128x128xbf16>, vector<18x128xf32> -> vector<18x128xf32>
    %79 = arith.addf %74, %78 : vector<18x128xf32>
    %80 = vector.extract_strided_slice %8 {offsets = [252, 0], sizes = [18, 128], strides = [1, 1]} : vector<288x128xbf16> to vector<18x128xbf16>
    %c14 = arith.constant 14 : index
    %c0_50 = arith.constant 0 : index
    %c0_51 = arith.constant 0 : index
    %81 = vector.load %arg3[%c14, %c0_50, %c0_51] : memref<16x128x128xbf16, #tpu.memory_space<vmem>>, vector<1x128x128xbf16>
    %82 = vector.shape_cast %81 : vector<1x128x128xbf16> to vector<128x128xbf16>
    %cst_52 = arith.constant dense<0.000000e+00> : vector<18x128xf32>
    %83 = tpu.matmul %80, %82, %cst_52 {dimension_numbers = #tpu.dot_dimension_numbers<[1], [0], [0], [1], [0, 0, 1, 1], [], []>} : vector<18x128xbf16>, vector<128x128xbf16>, vector<18x128xf32> -> vector<18x128xf32>
    %84 = arith.addf %79, %83 : vector<18x128xf32>
    %85 = vector.extract_strided_slice %8 {offsets = [270, 0], sizes = [18, 128], strides = [1, 1]} : vector<288x128xbf16> to vector<18x128xbf16>
    %c15 = arith.constant 15 : index
    %c0_53 = arith.constant 0 : index
    %c0_54 = arith.constant 0 : index
    %86 = vector.load %arg3[%c15, %c0_53, %c0_54] : memref<16x128x128xbf16, #tpu.memory_space<vmem>>, vector<1x128x128xbf16>
    %87 = vector.shape_cast %86 : vector<1x128x128xbf16> to vector<128x128xbf16>
    %cst_55 = arith.constant dense<0.000000e+00> : vector<18x128xf32>
    %88 = tpu.matmul %85, %87, %cst_55 {dimension_numbers = #tpu.dot_dimension_numbers<[1], [0], [0], [1], [0, 0, 1, 1], [], []>} : vector<18x128xbf16>, vector<128x128xbf16>, vector<18x128xf32> -> vector<18x128xf32>
    %89 = arith.addf %84, %88 : vector<18x128xf32>
    %c0_56 = arith.constant 0 : index
    %c0_57 = arith.constant 0 : index
    %90 = vector.load %arg4[%c0_56, %c0_57] : memref<1x128xf32, #tpu.memory_space<vmem>>, vector<1x128xf32>
    %91 = vector.broadcast %90 : vector<1x128xf32> to vector<18x128xf32>
    %92 = arith.addf %89, %91 : vector<18x128xf32>
    %cst_58 = arith.constant 0.000000e+00 : f32
    %93 = vector.broadcast %cst_58 : f32 to vector<18x128xf32>
    %94 = arith.maximumf %92, %93 : vector<18x128xf32>
    %95 = arith.truncf %94 : vector<18x128xf32> to vector<18x128xbf16>
    %cst_59 = arith.constant 0.000000e+00 : f32
    %96 = vector.broadcast %cst_59 : f32 to vector<2x128xf32>
    %97 = vector.extract_strided_slice %95 {offsets = [0, 0], sizes = [2, 128], strides = [1, 1]} : vector<18x128xbf16> to vector<2x128xbf16>
    %c0_60 = arith.constant 0 : index
    %c0_61 = arith.constant 0 : index
    %c0_62 = arith.constant 0 : index
    %98 = vector.load %arg5[%c0_60, %c0_61, %c0_62] : memref<9x128x128xbf16, #tpu.memory_space<vmem>>, vector<1x128x128xbf16>
    %99 = vector.shape_cast %98 : vector<1x128x128xbf16> to vector<128x128xbf16>
    %cst_63 = arith.constant dense<0.000000e+00> : vector<2x128xf32>
    %100 = tpu.matmul %97, %99, %cst_63 {dimension_numbers = #tpu.dot_dimension_numbers<[1], [0], [0], [1], [0, 0, 1, 1], [], []>} : vector<2x128xbf16>, vector<128x128xbf16>, vector<2x128xf32> -> vector<2x128xf32>
    %101 = arith.addf %96, %100 : vector<2x128xf32>
    %102 = vector.extract_strided_slice %95 {offsets = [2, 0], sizes = [2, 128], strides = [1, 1]} : vector<18x128xbf16> to vector<2x128xbf16>
    %c1_64 = arith.constant 1 : index
    %c0_65 = arith.constant 0 : index
    %c0_66 = arith.constant 0 : index
    %103 = vector.load %arg5[%c1_64, %c0_65, %c0_66] : memref<9x128x128xbf16, #tpu.memory_space<vmem>>, vector<1x128x128xbf16>
    %104 = vector.shape_cast %103 : vector<1x128x128xbf16> to vector<128x128xbf16>
    %cst_67 = arith.constant dense<0.000000e+00> : vector<2x128xf32>
    %105 = tpu.matmul %102, %104, %cst_67 {dimension_numbers = #tpu.dot_dimension_numbers<[1], [0], [0], [1], [0, 0, 1, 1], [], []>} : vector<2x128xbf16>, vector<128x128xbf16>, vector<2x128xf32> -> vector<2x128xf32>
    %106 = arith.addf %101, %105 : vector<2x128xf32>
    %107 = vector.extract_strided_slice %95 {offsets = [4, 0], sizes = [2, 128], strides = [1, 1]} : vector<18x128xbf16> to vector<2x128xbf16>
    %c2_68 = arith.constant 2 : index
    %c0_69 = arith.constant 0 : index
    %c0_70 = arith.constant 0 : index
    %108 = vector.load %arg5[%c2_68, %c0_69, %c0_70] : memref<9x128x128xbf16, #tpu.memory_space<vmem>>, vector<1x128x128xbf16>
    %109 = vector.shape_cast %108 : vector<1x128x128xbf16> to vector<128x128xbf16>
    %cst_71 = arith.constant dense<0.000000e+00> : vector<2x128xf32>
    %110 = tpu.matmul %107, %109, %cst_71 {dimension_numbers = #tpu.dot_dimension_numbers<[1], [0], [0], [1], [0, 0, 1, 1], [], []>} : vector<2x128xbf16>, vector<128x128xbf16>, vector<2x128xf32> -> vector<2x128xf32>
    %111 = arith.addf %106, %110 : vector<2x128xf32>
    %112 = vector.extract_strided_slice %95 {offsets = [6, 0], sizes = [2, 128], strides = [1, 1]} : vector<18x128xbf16> to vector<2x128xbf16>
    %c3_72 = arith.constant 3 : index
    %c0_73 = arith.constant 0 : index
    %c0_74 = arith.constant 0 : index
    %113 = vector.load %arg5[%c3_72, %c0_73, %c0_74] : memref<9x128x128xbf16, #tpu.memory_space<vmem>>, vector<1x128x128xbf16>
    %114 = vector.shape_cast %113 : vector<1x128x128xbf16> to vector<128x128xbf16>
    %cst_75 = arith.constant dense<0.000000e+00> : vector<2x128xf32>
    %115 = tpu.matmul %112, %114, %cst_75 {dimension_numbers = #tpu.dot_dimension_numbers<[1], [0], [0], [1], [0, 0, 1, 1], [], []>} : vector<2x128xbf16>, vector<128x128xbf16>, vector<2x128xf32> -> vector<2x128xf32>
    %116 = arith.addf %111, %115 : vector<2x128xf32>
    %117 = vector.extract_strided_slice %95 {offsets = [8, 0], sizes = [2, 128], strides = [1, 1]} : vector<18x128xbf16> to vector<2x128xbf16>
    %c4_76 = arith.constant 4 : index
    %c0_77 = arith.constant 0 : index
    %c0_78 = arith.constant 0 : index
    %118 = vector.load %arg5[%c4_76, %c0_77, %c0_78] : memref<9x128x128xbf16, #tpu.memory_space<vmem>>, vector<1x128x128xbf16>
    %119 = vector.shape_cast %118 : vector<1x128x128xbf16> to vector<128x128xbf16>
    %cst_79 = arith.constant dense<0.000000e+00> : vector<2x128xf32>
    %120 = tpu.matmul %117, %119, %cst_79 {dimension_numbers = #tpu.dot_dimension_numbers<[1], [0], [0], [1], [0, 0, 1, 1], [], []>} : vector<2x128xbf16>, vector<128x128xbf16>, vector<2x128xf32> -> vector<2x128xf32>
    %121 = arith.addf %116, %120 : vector<2x128xf32>
    %122 = vector.extract_strided_slice %95 {offsets = [10, 0], sizes = [2, 128], strides = [1, 1]} : vector<18x128xbf16> to vector<2x128xbf16>
    %c5_80 = arith.constant 5 : index
    %c0_81 = arith.constant 0 : index
    %c0_82 = arith.constant 0 : index
    %123 = vector.load %arg5[%c5_80, %c0_81, %c0_82] : memref<9x128x128xbf16, #tpu.memory_space<vmem>>, vector<1x128x128xbf16>
    %124 = vector.shape_cast %123 : vector<1x128x128xbf16> to vector<128x128xbf16>
    %cst_83 = arith.constant dense<0.000000e+00> : vector<2x128xf32>
    %125 = tpu.matmul %122, %124, %cst_83 {dimension_numbers = #tpu.dot_dimension_numbers<[1], [0], [0], [1], [0, 0, 1, 1], [], []>} : vector<2x128xbf16>, vector<128x128xbf16>, vector<2x128xf32> -> vector<2x128xf32>
    %126 = arith.addf %121, %125 : vector<2x128xf32>
    %127 = vector.extract_strided_slice %95 {offsets = [12, 0], sizes = [2, 128], strides = [1, 1]} : vector<18x128xbf16> to vector<2x128xbf16>
    %c6_84 = arith.constant 6 : index
    %c0_85 = arith.constant 0 : index
    %c0_86 = arith.constant 0 : index
    %128 = vector.load %arg5[%c6_84, %c0_85, %c0_86] : memref<9x128x128xbf16, #tpu.memory_space<vmem>>, vector<1x128x128xbf16>
    %129 = vector.shape_cast %128 : vector<1x128x128xbf16> to vector<128x128xbf16>
    %cst_87 = arith.constant dense<0.000000e+00> : vector<2x128xf32>
    %130 = tpu.matmul %127, %129, %cst_87 {dimension_numbers = #tpu.dot_dimension_numbers<[1], [0], [0], [1], [0, 0, 1, 1], [], []>} : vector<2x128xbf16>, vector<128x128xbf16>, vector<2x128xf32> -> vector<2x128xf32>
    %131 = arith.addf %126, %130 : vector<2x128xf32>
    %132 = vector.extract_strided_slice %95 {offsets = [14, 0], sizes = [2, 128], strides = [1, 1]} : vector<18x128xbf16> to vector<2x128xbf16>
    %c7_88 = arith.constant 7 : index
    %c0_89 = arith.constant 0 : index
    %c0_90 = arith.constant 0 : index
    %133 = vector.load %arg5[%c7_88, %c0_89, %c0_90] : memref<9x128x128xbf16, #tpu.memory_space<vmem>>, vector<1x128x128xbf16>
    %134 = vector.shape_cast %133 : vector<1x128x128xbf16> to vector<128x128xbf16>
    %cst_91 = arith.constant dense<0.000000e+00> : vector<2x128xf32>
    %135 = tpu.matmul %132, %134, %cst_91 {dimension_numbers = #tpu.dot_dimension_numbers<[1], [0], [0], [1], [0, 0, 1, 1], [], []>} : vector<2x128xbf16>, vector<128x128xbf16>, vector<2x128xf32> -> vector<2x128xf32>
    %136 = arith.addf %131, %135 : vector<2x128xf32>
    %137 = vector.extract_strided_slice %95 {offsets = [16, 0], sizes = [2, 128], strides = [1, 1]} : vector<18x128xbf16> to vector<2x128xbf16>
    %c8_92 = arith.constant 8 : index
    %c0_93 = arith.constant 0 : index
    %c0_94 = arith.constant 0 : index
    %138 = vector.load %arg5[%c8_92, %c0_93, %c0_94] : memref<9x128x128xbf16, #tpu.memory_space<vmem>>, vector<1x128x128xbf16>
    %139 = vector.shape_cast %138 : vector<1x128x128xbf16> to vector<128x128xbf16>
    %cst_95 = arith.constant dense<0.000000e+00> : vector<2x128xf32>
    %140 = tpu.matmul %137, %139, %cst_95 {dimension_numbers = #tpu.dot_dimension_numbers<[1], [0], [0], [1], [0, 0, 1, 1], [], []>} : vector<2x128xbf16>, vector<128x128xbf16>, vector<2x128xf32> -> vector<2x128xf32>
    %141 = arith.addf %136, %140 : vector<2x128xf32>
    %c0_96 = arith.constant 0 : index
    %c0_97 = arith.constant 0 : index
    %142 = vector.load %arg6[%c0_96, %c0_97] : memref<1x128xf32, #tpu.memory_space<vmem>>, vector<1x128xf32>
    %143 = vector.broadcast %142 : vector<1x128xf32> to vector<2x128xf32>
    %144 = arith.addf %141, %143 : vector<2x128xf32>
    %cst_98 = arith.constant 0.000000e+00 : f32
    %145 = vector.broadcast %cst_98 : f32 to vector<2x128xf32>
    %146 = arith.maximumf %144, %145 : vector<2x128xf32>
    %147 = arith.truncf %146 : vector<2x128xf32> to vector<2x128xbf16>
    %c0_99 = arith.constant 0 : index
    %c0_100 = arith.constant 0 : index
    %148 = vector.load %arg7[%c0_99, %c0_100] : memref<128x1024xbf16, #tpu.memory_space<vmem>>, vector<128x1024xbf16>
    %cst_101 = arith.constant dense<0.000000e+00> : vector<2x1024xf32>
    %149 = tpu.matmul %147, %148, %cst_101 {dimension_numbers = #tpu.dot_dimension_numbers<[1], [0], [0], [1], [0, 0, 1, 1], [], []>} : vector<2x128xbf16>, vector<128x1024xbf16>, vector<2x1024xf32> -> vector<2x1024xf32>
    %c0_102 = arith.constant 0 : index
    %c0_103 = arith.constant 0 : index
    %150 = vector.load %arg8[%c0_102, %c0_103] : memref<1x1024xf32, #tpu.memory_space<vmem>>, vector<1x1024xf32>
    %151 = vector.broadcast %150 : vector<1x1024xf32> to vector<2x1024xf32>
    %152 = arith.addf %149, %151 : vector<2x1024xf32>
    %cst_104 = arith.constant 0.000000e+00 : f32
    %153 = vector.broadcast %cst_104 : f32 to vector<2x1024xf32>
    %154 = arith.maximumf %152, %153 : vector<2x1024xf32>
    %155 = arith.truncf %154 : vector<2x1024xf32> to vector<2x1024xbf16>
    %c0_105 = arith.constant 0 : index
    %c0_106 = arith.constant 0 : index
    %156 = vector.load %arg9[%c0_105, %c0_106] : memref<1024x128xbf16, #tpu.memory_space<vmem>>, vector<1024x128xbf16>
    %cst_107 = arith.constant dense<0.000000e+00> : vector<2x128xf32>
    %157 = tpu.matmul %155, %156, %cst_107 {dimension_numbers = #tpu.dot_dimension_numbers<[1], [0], [0], [1], [0, 0, 1, 1], [], []>} : vector<2x1024xbf16>, vector<1024x128xbf16>, vector<2x128xf32> -> vector<2x128xf32>
    %c0_108 = arith.constant 0 : index
    %c0_109 = arith.constant 0 : index
    %158 = vector.load %arg10[%c0_108, %c0_109] : memref<1x128xf32, #tpu.memory_space<vmem>>, vector<1x128xf32>
    %159 = vector.broadcast %158 : vector<1x128xf32> to vector<2x128xf32>
    %160 = arith.addf %157, %159 : vector<2x128xf32>
    %161 = vector.extract_strided_slice %160 {offsets = [0, 0], sizes = [2, 32], strides = [1, 1]} : vector<2x128xf32> to vector<2x32xf32>
    %c0_110 = arith.constant 0 : index
    %c0_111 = arith.constant 0 : index
    %162 = vector.load %arg11[%c0_110, %c0_111] : memref<2x32xf32, #tpu.memory_space<vmem>>, vector<2x32xf32>
    tpu.vector_store %arg11[%c0_110, %c0_111], %161 {strides = array<i32>} : memref<2x32xf32, #tpu.memory_space<vmem>>, vector<2x32xf32>,
    return
  }
}

</mosaic_0001>

<llo_original>
// kernel: rainbow_forward.1
$region0: #{rainbow_forward.1}
  #allocation0 [shape = 'u32[]', space=smem, size = 0x4, offset = 0x4, fixed_abs, tag = 'smem constant byte address 0x4 - core index']
  #allocation1 [shape = 'u32[144,128]{1,0:T(1,128)}', space=vmem, size = 0x12000, scoped, tag = 'internal scratch']
  %s0 = inlined_call_operand.vmem [shape: bf16[288,256], index: 0, kind: input, shape index: {}]
  %s1 = inlined_call_operand.vmem [shape: bf16[256,128], index: 1, kind: input, shape index: {}]
  %s2 = inlined_call_operand.vmem [shape: f32[1,128], index: 2, kind: input, shape index: {}]
  %s3 = inlined_call_operand.vmem [shape: bf16[16,128,128], index: 3, kind: input, shape index: {}]
  %s4 = inlined_call_operand.vmem [shape: f32[1,128], index: 4, kind: input, shape index: {}]
  %s5 = inlined_call_operand.vmem [shape: bf16[9,128,128], index: 5, kind: input, shape index: {}]
  %s6 = inlined_call_operand.vmem [shape: f32[1,128], index: 6, kind: input, shape index: {}]
  %s7 = inlined_call_operand.vmem [shape: bf16[128,1024], index: 7, kind: input, shape index: {}]
  %s8 = inlined_call_operand.vmem [shape: f32[1,1024], index: 8, kind: input, shape index: {}]
  %s9 = inlined_call_operand.vmem [shape: bf16[1024,128], index: 9, kind: input, shape index: {}]
  %s10 = inlined_call_operand.vmem [shape: f32[1,128], index: 10, kind: input, shape index: {}]
  %s11 = inlined_call_operand.vmem [shape: f32[2,32], index: 11, kind: output, shape index: {}]
  %s12 = sld [smem:[#allocation0]]
  $region54: #{rainbow_forward.1} parent=0
    _
  %s14 = ssub.s32 1, %s12
  %s15 = scalar_select 0, %s14, %s12
  // Predicated region
  $region2: #{rainbow_forward.1} parent=0 // pred_check
    _
  $region3: #{rainbow_forward.1} parent=0 // pred_check_branch
    %17 = sbr.rel (0) target = $region5
  $region4: #{rainbow_forward.1} parent=0 // pred_region
    _
  $region5: #{rainbow_forward.1} parent=0 // pred_fallthru
    _
  // Predicated region
  $region6: #{rainbow_forward.1} parent=0 // pred_check
    _
  $region7: #{rainbow_forward.1} parent=0 // pred_check_branch
    %19 = sbr.rel (0) target = $region9
  $region8: #{rainbow_forward.1} parent=0 // pred_region
    _
  $region9: #{rainbow_forward.1} parent=0 // pred_fallthru
    _
  // Predicated region
  $region10: #{rainbow_forward.1} parent=0 // pred_check
    _
  $region11: #{rainbow_forward.1} parent=0 // pred_check_branch
    %21 = sbr.rel (0) target = $region13
  $region12: #{rainbow_forward.1} parent=0 // pred_region
    _
  $region13: #{rainbow_forward.1} parent=0 // pred_fallthru
    _
  // Predicated region
  $region14: #{rainbow_forward.1} parent=0 // pred_check
    _
  $region15: #{rainbow_forward.1} parent=0 // pred_check_branch
    %23 = sbr.rel (0) target = $region17
  $region16: #{rainbow_forward.1} parent=0 // pred_region
    _
  $region17: #{rainbow_forward.1} parent=0 // pred_fallthru
    _
  // Predicated region
  $region18: #{rainbow_forward.1} parent=0 // pred_check
    _
  $region19: #{rainbow_forward.1} parent=0 // pred_check_branch
    %25 = sbr.rel (0) target = $region21
  $region20: #{rainbow_forward.1} parent=0 // pred_region
    _
  $region21: #{rainbow_forward.1} parent=0 // pred_fallthru
    _
  // Predicated region
  $region22: #{rainbow_forward.1} parent=0 // pred_check
    _
  $region23: #{rainbow_forward.1} parent=0 // pred_check_branch
    %27 = sbr.rel (0) target = $region25
  $region24: #{rainbow_forward.1} parent=0 // pred_region
    _
  $region25: #{rainbow_forward.1} parent=0 // pred_fallthru
    _
  // Predicated region
  $region26: #{rainbow_forward.1} parent=0 // pred_check
    _
  $region27: #{rainbow_forward.1} parent=0 // pred_check_branch
    %29 = sbr.rel (0) target = $region29
  $region28: #{rainbow_forward.1} parent=0 // pred_region
    _
  $region29: #{rainbow_forward.1} parent=0 // pred_fallthru
    _
  // Predicated region
  $region30: #{rainbow_forward.1} parent=0 // pred_check
    _
  $region31: #{rainbow_forward.1} parent=0 // pred_check_branch
    %31 = sbr.rel (0) target = $region33
  $region32: #{rainbow_forward.1} parent=0 // pred_region
    _
  $region33: #{rainbow_forward.1} parent=0 // pred_fallthru
    _
  // Predicated region
  $region34: #{rainbow_forward.1} parent=0 // pred_check
    _
  $region35: #{rainbow_forward.1} parent=0 // pred_check_branch
    %33 = sbr.rel (0) target = $region37
  $region36: #{rainbow_forward.1} parent=0 // pred_region
    _
  $region37: #{rainbow_forward.1} parent=0 // pred_fallthru
    _
  // Predicated region
  $region38: #{rainbow_forward.1} parent=0 // pred_check
    _
  $region39: #{rainbow_forward.1} parent=0 // pred_check_branch
    %35 = sbr.rel (0) target = $region41
  $region40: #{rainbow_forward.1} parent=0 // pred_region
    _
  $region41: #{rainbow_forward.1} parent=0 // pred_fallthru
    _
  // Predicated region
  $region42: #{rainbow_forward.1} parent=0 // pred_check
    _
  $region43: #{rainbow_forward.1} parent=0 // pred_check_branch
    %37 = sbr.rel (0) target = $region45
  $region44: #{rainbow_forward.1} parent=0 // pred_region
    _
  $region45: #{rainbow_forward.1} parent=0 // pred_fallthru
    _
  %v39 = vld [vmem:[%s0] sm:$0xff]
  %v40 = vld [vmem:[%s0 + $0x8] sm:$0xff]
  %v41 = vld [vmem:[%s0 + $0x10] sm:$0xff]
  %v42 = vld [vmem:[%s0 + $0x18] sm:$0xff]
  %v43 = vld [vmem:[%s0 + $0x20] sm:$0xff]
  %v44 = vld [vmem:[%s0 + $0x28] sm:$0xff]
  %v45 = vld [vmem:[%s0 + $0x30] sm:$0xff]
  %v46 = vld [vmem:[%s0 + $0x38] sm:$0xff]
  %v47 = vld [vmem:[%s0 + $0x40] sm:$0xff]
  %v48 = vld [vmem:[%s0 + $0x48] sm:$0xff]
  %v49 = vld [vmem:[%s0 + $0x50] sm:$0xff]
  %v50 = vld [vmem:[%s0 + $0x58] sm:$0xff]
  %v51 = vld [vmem:[%s0 + $0x60] sm:$0xff]
  %v52 = vld [vmem:[%s0 + $0x68] sm:$0xff]
  %v53 = vld [vmem:[%s0 + $0x70] sm:$0xff]
  %v54 = vld [vmem:[%s0 + $0x78] sm:$0xff]
  %v55 = vld [vmem:[%s0 + $0x80] sm:$0xff]
  %v56 = vld [vmem:[%s0 + $0x88] sm:$0xff]
  %v57 = vld [vmem:[%s0 + $0x90] sm:$0xff]
  %v58 = vld [vmem:[%s0 + $0x98] sm:$0xff]
  %v59 = vld [vmem:[%s0 + $0xa0] sm:$0xff]
  %v60 = vld [vmem:[%s0 + $0xa8] sm:$0xff]
  %v61 = vld [vmem:[%s0 + $0xb0] sm:$0xff]
  %v62 = vld [vmem:[%s0 + $0xb8] sm:$0xff]
  %v63 = vld [vmem:[%s0 + $0xc0] sm:$0xff]
  %v64 = vld [vmem:[%s0 + $0xc8] sm:$0xff]
  %v65 = vld [vmem:[%s0 + $0xd0] sm:$0xff]
  %v66 = vld [vmem:[%s0 + $0xd8] sm:$0xff]
  %v67 = vld [vmem:[%s0 + $0xe0] sm:$0xff]
  %v68 = vld [vmem:[%s0 + $0xe8] sm:$0xff]
  %v69 = vld [vmem:[%s0 + $0xf0] sm:$0xff]
  %v70 = vld [vmem:[%s0 + $0xf8] sm:$0xff]
  %v71 = vld [vmem:[%s0 + $0x100] sm:$0xff]
  %v72 = vld [vmem:[%s0 + $0x108] sm:$0xff]
  %v73 = vld [vmem:[%s0 + $0x110] sm:$0xff]
  %v74 = vld [vmem:[%s0 + $0x118] sm:$0xff]
  %v75 = vld [vmem:[%s1] sm:$0xf]
  %v76 = vld [vmem:[%s1 + $0x4] sm:$0xf]
  %v77 = vld [vmem:[%s1 + $0x8] sm:$0xf]
  %v78 = vld [vmem:[%s1 + $0xc] sm:$0xf]
  %v79 = vld [vmem:[%s1 + $0x10] sm:$0xf]
  %v80 = vld [vmem:[%s1 + $0x14] sm:$0xf]
  %v81 = vld [vmem:[%s1 + $0x18] sm:$0xf]
  %v82 = vld [vmem:[%s1 + $0x1c] sm:$0xf]
  %v83 = vld [vmem:[%s1 + $0x20] sm:$0xf]
  %v84 = vld [vmem:[%s1 + $0x24] sm:$0xf]
  %v85 = vld [vmem:[%s1 + $0x28] sm:$0xf]
  %v86 = vld [vmem:[%s1 + $0x2c] sm:$0xf]
  %v87 = vld [vmem:[%s1 + $0x30] sm:$0xf]
  %v88 = vld [vmem:[%s1 + $0x34] sm:$0xf]
  %v89 = vld [vmem:[%s1 + $0x38] sm:$0xf]
  %v90 = vld [vmem:[%s1 + $0x3c] sm:$0xf]
  %v91 = vld [vmem:[%s1 + $0x40] sm:$0xf]
  %v92 = vld [vmem:[%s1 + $0x44] sm:$0xf]
  %v93 = vld [vmem:[%s1 + $0x48] sm:$0xf]
  %v94 = vld [vmem:[%s1 + $0x4c] sm:$0xf]
  %v95 = vld [vmem:[%s1 + $0x50] sm:$0xf]
  %v96 = vld [vmem:[%s1 + $0x54] sm:$0xf]
  %v97 = vld [vmem:[%s1 + $0x58] sm:$0xf]
  %v98 = vld [vmem:[%s1 + $0x5c] sm:$0xf]
  %v99 = vld [vmem:[%s1 + $0x60] sm:$0xf]
  %v100 = vld [vmem:[%s1 + $0x64] sm:$0xf]
  %v101 = vld [vmem:[%s1 + $0x68] sm:$0xf]
  %v102 = vld [vmem:[%s1 + $0x6c] sm:$0xf]
  %v103 = vld [vmem:[%s1 + $0x70] sm:$0xf]
  %v104 = vld [vmem:[%s1 + $0x74] sm:$0xf]
  %v105 = vld [vmem:[%s1 + $0x78] sm:$0xf]
  %v106 = vld [vmem:[%s1 + $0x7c] sm:$0xf]
  %v107 = vld [vmem:[%s2] sm:$0x1]
  %v109 = vlaneseq
  %v110 = vshrl.u32 %v109, 7
  %v111 = vsub.s32 0, %v110
  %v112 = vrot.slane %v107, %v111
  %v150 = vunpack.c.l.b16 %v39
  %v151 = vunpack.c.h.b16 %v39
  %v152 = vunpack.c.l.b16 %v40
  %v153 = vunpack.c.h.b16 %v40
  %v154 = vunpack.c.l.b16 %v41
  %v155 = vunpack.c.h.b16 %v41
  %v156 = vunpack.c.l.b16 %v42
  %v157 = vunpack.c.h.b16 %v42
  %v158 = vunpack.c.l.b16 %v43
  %v159 = vunpack.c.h.b16 %v43
  %v160 = vunpack.c.l.b16 %v44
  %v161 = vunpack.c.h.b16 %v44
  %v162 = vunpack.c.l.b16 %v45
  %v163 = vunpack.c.h.b16 %v45
  %v164 = vunpack.c.l.b16 %v46
  %v165 = vunpack.c.h.b16 %v46
  %v166 = vunpack.c.l.b16 %v47
  %v167 = vunpack.c.h.b16 %v47
  %v168 = vunpack.c.l.b16 %v48
  %v169 = vunpack.c.h.b16 %v48
  %v170 = vunpack.c.l.b16 %v49
  %v171 = vunpack.c.h.b16 %v49
  %v172 = vunpack.c.l.b16 %v50
  %v173 = vunpack.c.h.b16 %v50
  %v174 = vunpack.c.l.b16 %v51
  %v175 = vunpack.c.h.b16 %v51
  %v176 = vunpack.c.l.b16 %v52
  %v177 = vunpack.c.h.b16 %v52
  %v178 = vunpack.c.l.b16 %v53
  %v179 = vunpack.c.h.b16 %v53
  %v180 = vunpack.c.l.b16 %v54
  %v181 = vunpack.c.h.b16 %v54
  %v182 = vunpack.c.l.b16 %v55
  %v183 = vunpack.c.h.b16 %v55
  %v184 = vunpack.c.l.b16 %v56
  %v185 = vunpack.c.h.b16 %v56
  %v186 = vunpack.c.l.b16 %v57
  %v187 = vunpack.c.h.b16 %v57
  %v188 = vunpack.c.l.b16 %v58
  %v189 = vunpack.c.h.b16 %v58
  %v190 = vunpack.c.l.b16 %v59
  %v191 = vunpack.c.h.b16 %v59
  %v192 = vunpack.c.l.b16 %v60
  %v193 = vunpack.c.h.b16 %v60
  %v194 = vunpack.c.l.b16 %v61
  %v195 = vunpack.c.h.b16 %v61
  %v196 = vunpack.c.l.b16 %v62
  %v197 = vunpack.c.h.b16 %v62
  %v198 = vunpack.c.l.b16 %v63
  %v199 = vunpack.c.h.b16 %v63
  %v200 = vunpack.c.l.b16 %v64
  %v201 = vunpack.c.h.b16 %v64
  %v202 = vunpack.c.l.b16 %v65
  %v203 = vunpack.c.h.b16 %v65
  %v204 = vunpack.c.l.b16 %v66
  %v205 = vunpack.c.h.b16 %v66
  %v206 = vunpack.c.l.b16 %v67
  %v207 = vunpack.c.h.b16 %v67
  %v208 = vunpack.c.l.b16 %v68
  %v209 = vunpack.c.h.b16 %v68
  %v210 = vunpack.c.l.b16 %v69
  %v211 = vunpack.c.h.b16 %v69
  %v212 = vunpack.c.l.b16 %v70
  %v213 = vunpack.c.h.b16 %v70
  %v214 = vunpack.c.l.b16 %v71
  %v215 = vunpack.c.h.b16 %v71
  %v216 = vunpack.c.l.b16 %v72
  %v217 = vunpack.c.h.b16 %v72
  %v218 = vunpack.c.l.b16 %v73
  %v219 = vunpack.c.h.b16 %v73
  %v220 = vunpack.c.l.b16 %v74
  %v221 = vunpack.c.h.b16 %v74
  %v222 = vpack.c.b16 %v152, %v150
  %v223 = vpack.c.b16 %v153, %v151
  %v224 = vpack.c.b16 %v156, %v154
  %v225 = vpack.c.b16 %v157, %v155
  %v226 = vpack.c.b16 %v160, %v158
  %v227 = vpack.c.b16 %v161, %v159
  %v228 = vpack.c.b16 %v164, %v162
  %v229 = vpack.c.b16 %v165, %v163
  %v230 = vpack.c.b16 %v168, %v166
  %v231 = vpack.c.b16 %v169, %v167
  %v232 = vpack.c.b16 %v172, %v170
  %v233 = vpack.c.b16 %v173, %v171
  %v234 = vpack.c.b16 %v176, %v174
  %v235 = vpack.c.b16 %v177, %v175
  %v236 = vpack.c.b16 %v180, %v178
  %v237 = vpack.c.b16 %v181, %v179
  %v238 = vpack.c.b16 %v184, %v182
  %v239 = vpack.c.b16 %v185, %v183
  %v240 = vpack.c.b16 %v188, %v186
  %v241 = vpack.c.b16 %v189, %v187
  %v242 = vpack.c.b16 %v192, %v190
  %v243 = vpack.c.b16 %v193, %v191
  %v244 = vpack.c.b16 %v196, %v194
  %v245 = vpack.c.b16 %v197, %v195
  %v246 = vpack.c.b16 %v200, %v198
  %v247 = vpack.c.b16 %v201, %v199
  %v248 = vpack.c.b16 %v204, %v202
  %v249 = vpack.c.b16 %v205, %v203
  %v250 = vpack.c.b16 %v208, %v206
  %v251 = vpack.c.b16 %v209, %v207
  %v252 = vpack.c.b16 %v212, %v210
  %v253 = vpack.c.b16 %v213, %v211
  %v254 = vpack.c.b16 %v216, %v214
  %v255 = vpack.c.b16 %v217, %v215
  %v256 = vpack.c.b16 %v220, %v218
  %v257 = vpack.c.b16 %v221, %v219
  %v326 = vunpack.c.l.b16 %v75
  %v327 = vunpack.c.l.b16 %v76
  %v328 = vunpack.c.l.b16 %v77
  %v329 = vunpack.c.l.b16 %v78
  %v330 = vunpack.c.l.b16 %v79
  %v331 = vunpack.c.l.b16 %v80
  %v332 = vunpack.c.l.b16 %v81
  %v333 = vunpack.c.l.b16 %v82
  %v334 = vunpack.c.l.b16 %v83
  %v335 = vunpack.c.l.b16 %v84
  %v336 = vunpack.c.l.b16 %v85
  %v337 = vunpack.c.l.b16 %v86
  %v338 = vunpack.c.l.b16 %v87
  %v339 = vunpack.c.l.b16 %v88
  %v340 = vunpack.c.l.b16 %v89
  %v341 = vunpack.c.l.b16 %v90
  %v342 = vunpack.c.l.b16 %v91
  %v343 = vunpack.c.l.b16 %v92
  %v344 = vunpack.c.l.b16 %v93
  %v345 = vunpack.c.l.b16 %v94
  %v346 = vunpack.c.l.b16 %v95
  %v347 = vunpack.c.l.b16 %v96
  %v348 = vunpack.c.l.b16 %v97
  %v349 = vunpack.c.l.b16 %v98
  %v350 = vunpack.c.l.b16 %v99
  %v351 = vunpack.c.l.b16 %v100
  %v352 = vunpack.c.l.b16 %v101
  %v353 = vunpack.c.l.b16 %v102
  %v354 = vunpack.c.l.b16 %v103
  %v355 = vunpack.c.l.b16 %v104
  %v356 = vunpack.c.l.b16 %v105
  %v357 = vunpack.c.l.b16 %v106
  %v358 = vpack.c.b16 %v327, %v326
  %v359 = vpack.c.b16 %v329, %v328
  %v360 = vpack.c.b16 %v331, %v330
  %v361 = vpack.c.b16 %v333, %v332
  %v362 = vpack.c.b16 %v335, %v334
  %v363 = vpack.c.b16 %v337, %v336
  %v364 = vpack.c.b16 %v339, %v338
  %v365 = vpack.c.b16 %v341, %v340
  %v366 = vpack.c.b16 %v343, %v342
  %v367 = vpack.c.b16 %v345, %v344
  %v368 = vpack.c.b16 %v347, %v346
  %v369 = vpack.c.b16 %v349, %v348
  %v370 = vpack.c.b16 %v351, %v350
  %v371 = vpack.c.b16 %v353, %v352
  %v372 = vpack.c.b16 %v355, %v354
  %v373 = vpack.c.b16 %v357, %v356
  %390 = vmatprep.subr.bf16.mxu0 0
  %391 = vmatpush1.bf16.msra.mxu0 %v358
  %392 = vmatprep.subr.bf16.mxu0 0
  %393 = vmatpush1.bf16.msra.mxu0 %v359
  %394 = vmatprep.subr.bf16.mxu0 0
  %395 = vmatpush1.bf16.msra.mxu0 %v360
  %396 = vmatprep.subr.bf16.mxu0 0
  %397 = vmatpush1.bf16.msra.mxu0 %v361
  %398 = vmatprep.subr.bf16.mxu0 0
  %399 = vmatpush1.bf16.msra.mxu0 %v362
  %400 = vmatprep.subr.bf16.mxu0 0
  %401 = vmatpush1.bf16.msra.mxu0 %v363
  %402 = vmatprep.subr.bf16.mxu0 0
  %403 = vmatpush1.bf16.msra.mxu0 %v364
  %404 = vmatprep.subr.bf16.mxu0 0
  %405 = vmatpush1.bf16.msra.mxu0 %v365
  %406 = vmatprep.subr.bf16.mxu0 0
  %407 = vmatpush1.bf16.msra.mxu0 %v366
  %408 = vmatprep.subr.bf16.mxu0 0
  %409 = vmatpush1.bf16.msra.mxu0 %v367
  %410 = vmatprep.subr.bf16.mxu0 0
  %411 = vmatpush1.bf16.msra.mxu0 %v368
  %412 = vmatprep.subr.bf16.mxu0 0
  %413 = vmatpush1.bf16.msra.mxu0 %v369
  %414 = vmatprep.subr.bf16.mxu0 0
  %415 = vmatpush1.bf16.msra.mxu0 %v370
  %416 = vmatprep.subr.bf16.mxu0 0
  %417 = vmatpush1.bf16.msra.mxu0 %v371
  %418 = vmatprep.subr.bf16.mxu0 0
  %419 = vmatpush1.bf16.msra.mxu0 %v372
  %420 = vmatprep.subr.bf16.mxu0 0
  %421 = vmatpush1.bf16.msra.mxu0 %v373
  %422 = vmatprep.mubr.bf16.mxu0 %v223
  %423 = vmatmul.mubr.bf16.gmra.mrb[0].mxu0 %v222
  %v424 = vpop.f32.mrb[0].mxu0
  %v425 = vadd.f32 %v112, %v424
  %v426 = vpop.f32.mrb[0].mxu0
  %v427 = vpop.f32.mrb[0].mxu0
  %v428 = vadd.f32 %v112, %v427
  %v429 = vpop.f32.mrb[0].mxu0
  %430 = vmatprep.mubr.bf16.mxu0 %v225
  %431 = vmatmul.mubr.bf16.gmra.mrb[0].mxu0 %v224
  %v432 = vpop.f32.mrb[0].mxu0
  %v433 = vadd.f32 %v112, %v432
  %v434 = vpop.f32.mrb[0].mxu0
  %v435 = vpop.f32.mrb[0].mxu0
  %v436 = vadd.f32 %v112, %v435
  %v437 = vpop.f32.mrb[0].mxu0
  %438 = vmatprep.mubr.bf16.mxu0 %v227
  %439 = vmatmul.mubr.bf16.gmra.mrb[0].mxu0 %v226
  %v440 = vpop.f32.mrb[0].mxu0
  %v441 = vadd.f32 %v112, %v440
  %v442 = vpop.f32.mrb[0].mxu0
  %v443 = vpop.f32.mrb[0].mxu0
  %v444 = vadd.f32 %v112, %v443
  %v445 = vpop.f32.mrb[0].mxu0
  %446 = vmatprep.mubr.bf16.mxu0 %v229
  %447 = vmatmul.mubr.bf16.gmra.mrb[0].mxu0 %v228
  %v448 = vpop.f32.mrb[0].mxu0
  %v449 = vadd.f32 %v112, %v448
  %v450 = vpop.f32.mrb[0].mxu0
  %v451 = vpop.f32.mrb[0].mxu0
  %v452 = vadd.f32 %v112, %v451
  %v453 = vpop.f32.mrb[0].mxu0
  %454 = vmatprep.mubr.bf16.mxu0 %v231
  %455 = vmatmul.mubr.bf16.gmra.mrb[0].mxu0 %v230
  %v456 = vpop.f32.mrb[0].mxu0
  %v457 = vadd.f32 %v112, %v456
  %v458 = vpop.f32.mrb[0].mxu0
  %v459 = vpop.f32.mrb[0].mxu0
  %v460 = vadd.f32 %v112, %v459
  %v461 = vpop.f32.mrb[0].mxu0
  %462 = vmatprep.mubr.bf16.mxu0 %v233
  %463 = vmatmul.mubr.bf16.gmra.mrb[0].mxu0 %v232
  %v464 = vpop.f32.mrb[0].mxu0
  %v465 = vadd.f32 %v112, %v464
  %v466 = vpop.f32.mrb[0].mxu0
  %v467 = vpop.f32.mrb[0].mxu0
  %v468 = vadd.f32 %v112, %v467
  %v469 = vpop.f32.mrb[0].mxu0
  %470 = vmatprep.mubr.bf16.mxu0 %v235
  %471 = vmatmul.mubr.bf16.gmra.mrb[0].mxu0 %v234
  %v472 = vpop.f32.mrb[0].mxu0
  %v473 = vadd.f32 %v112, %v472
  %v474 = vpop.f32.mrb[0].mxu0
  %v475 = vpop.f32.mrb[0].mxu0
  %v476 = vadd.f32 %v112, %v475
  %v477 = vpop.f32.mrb[0].mxu0
  %478 = vmatprep.mubr.bf16.mxu0 %v237
  %479 = vmatmul.mubr.bf16.gmra.mrb[0].mxu0 %v236
  %v480 = vpop.f32.mrb[0].mxu0
  %v481 = vadd.f32 %v112, %v480
  %v482 = vpop.f32.mrb[0].mxu0
  %v483 = vpop.f32.mrb[0].mxu0
  %v484 = vadd.f32 %v112, %v483
  %v485 = vpop.f32.mrb[0].mxu0
  %486 = vmatprep.mubr.bf16.mxu0 %v239
  %487 = vmatmul.mubr.bf16.gmra.mrb[0].mxu0 %v238
  %v488 = vpop.f32.mrb[0].mxu0
  %v489 = vadd.f32 %v112, %v488
  %v490 = vpop.f32.mrb[0].mxu0
  %v491 = vpop.f32.mrb[0].mxu0
  %v492 = vadd.f32 %v112, %v491
  %v493 = vpop.f32.mrb[0].mxu0
  %494 = vmatprep.mubr.bf16.mxu0 %v241
  %495 = vmatmul.mubr.bf16.gmra.mrb[0].mxu0 %v240
  %v496 = vpop.f32.mrb[0].mxu0
  %v497 = vadd.f32 %v112, %v496
  %v498 = vpop.f32.mrb[0].mxu0
  %v499 = vpop.f32.mrb[0].mxu0
  %v500 = vadd.f32 %v112, %v499
  %v501 = vpop.f32.mrb[0].mxu0
  %502 = vmatprep.mubr.bf16.mxu0 %v243
  %503 = vmatmul.mubr.bf16.gmra.mrb[0].mxu0 %v242
  %v504 = vpop.f32.mrb[0].mxu0
  %v505 = vadd.f32 %v112, %v504
  %v506 = vpop.f32.mrb[0].mxu0
  %v507 = vpop.f32.mrb[0].mxu0
  %v508 = vadd.f32 %v112, %v507
  %v509 = vpop.f32.mrb[0].mxu0
  %510 = vmatprep.mubr.bf16.mxu0 %v245
  %511 = vmatmul.mubr.bf16.gmra.mrb[0].mxu0 %v244
  %v512 = vpop.f32.mrb[0].mxu0
  %v513 = vadd.f32 %v112, %v512
  %v514 = vpop.f32.mrb[0].mxu0
  %v515 = vpop.f32.mrb[0].mxu0
  %v516 = vadd.f32 %v112, %v515
  %v517 = vpop.f32.mrb[0].mxu0
  %518 = vmatprep.mubr.bf16.mxu0 %v247
  %519 = vmatmul.mubr.bf16.gmra.mrb[0].mxu0 %v246
  %v520 = vpop.f32.mrb[0].mxu0
  %v521 = vadd.f32 %v112, %v520
  %v522 = vpop.f32.mrb[0].mxu0
  %v523 = vpop.f32.mrb[0].mxu0
  %v524 = vadd.f32 %v112, %v523
  %v525 = vpop.f32.mrb[0].mxu0
  %526 = vmatprep.mubr.bf16.mxu0 %v249
  %527 = vmatmul.mubr.bf16.gmra.mrb[0].mxu0 %v248
  %v528 = vpop.f32.mrb[0].mxu0
  %v529 = vadd.f32 %v112, %v528
  %v530 = vpop.f32.mrb[0].mxu0
  %v531 = vpop.f32.mrb[0].mxu0
  %v532 = vadd.f32 %v112, %v531
  %v533 = vpop.f32.mrb[0].mxu0
  %534 = vmatprep.mubr.bf16.mxu0 %v251
  %535 = vmatmul.mubr.bf16.gmra.mrb[0].mxu0 %v250
  %v536 = vpop.f32.mrb[0].mxu0
  %v537 = vadd.f32 %v112, %v536
  %v538 = vpop.f32.mrb[0].mxu0
  %v539 = vpop.f32.mrb[0].mxu0
  %v540 = vadd.f32 %v112, %v539
  %v541 = vpop.f32.mrb[0].mxu0
  %542 = vmatprep.mubr.bf16.mxu0 %v253
  %543 = vmatmul.mubr.bf16.gmra.mrb[0].mxu0 %v252
  %v544 = vpop.f32.mrb[0].mxu0
  %v545 = vadd.f32 %v112, %v544
  %v546 = vpop.f32.mrb[0].mxu0
  %v547 = vpop.f32.mrb[0].mxu0
  %v548 = vadd.f32 %v112, %v547
  %v549 = vpop.f32.mrb[0].mxu0
  %550 = vmatprep.mubr.bf16.mxu0 %v255
  %551 = vmatmul.mubr.bf16.gmra.mrb[0].mxu0 %v254
  %v552 = vpop.f32.mrb[0].mxu0
  %v553 = vadd.f32 %v112, %v552
  %v554 = vpop.f32.mrb[0].mxu0
  %v555 = vpop.f32.mrb[0].mxu0
  %v556 = vadd.f32 %v112, %v555
  %v557 = vpop.f32.mrb[0].mxu0
  %558 = vmatprep.mubr.bf16.mxu0 %v257
  %559 = vmatmul.mubr.bf16.gmra.mrb[0].mxu0 %v256
  %v560 = vpop.f32.mrb[0].mxu0
  %v561 = vadd.f32 %v112, %v560
  %v562 = vpop.f32.mrb[0].mxu0
  %v563 = vpop.f32.mrb[0].mxu0
  %v564 = vadd.f32 %v112, %v563
  %v565 = vpop.f32.mrb[0].mxu0
  %566 = vdwg.mxu0
  %v567 = vmax.f32 %v425, 0.0
  %v568 = vmax.f32 %v428, 0.0
  %v569 = vmax.f32 %v433, 0.0
  %v570 = vmax.f32 %v436, 0.0
  %v571 = vmax.f32 %v441, 0.0
  %v572 = vmax.f32 %v444, 0.0
  %v573 = vmax.f32 %v449, 0.0
  %v574 = vmax.f32 %v452, 0.0
  %v575 = vmax.f32 %v457, 0.0
  %v576 = vmax.f32 %v460, 0.0
  %v577 = vmax.f32 %v465, 0.0
  %v578 = vmax.f32 %v468, 0.0
  %v579 = vmax.f32 %v473, 0.0
  %v580 = vmax.f32 %v476, 0.0
  %v581 = vmax.f32 %v481, 0.0
  %v582 = vmax.f32 %v484, 0.0
  %v583 = vmax.f32 %v489, 0.0
  %v584 = vmax.f32 %v492, 0.0
  %v585 = vmax.f32 %v497, 0.0
  %v586 = vmax.f32 %v500, 0.0
  %v587 = vmax.f32 %v505, 0.0
  %v588 = vmax.f32 %v508, 0.0
  %v589 = vmax.f32 %v513, 0.0
  %v590 = vmax.f32 %v516, 0.0
  %v591 = vmax.f32 %v521, 0.0
  %v592 = vmax.f32 %v524, 0.0
  %v593 = vmax.f32 %v529, 0.0
  %v594 = vmax.f32 %v532, 0.0
  %v595 = vmax.f32 %v537, 0.0
  %v596 = vmax.f32 %v540, 0.0
  %v597 = vmax.f32 %v545, 0.0
  %v598 = vmax.f32 %v548, 0.0
  %v599 = vmax.f32 %v553, 0.0
  %v600 = vmax.f32 %v556, 0.0
  %v601 = vmax.f32 %v561, 0.0
  %v602 = vmax.f32 %v564, 0.0
  %v603 = vpack.c.bf16 %v568, %v567
  %v604 = vpack.c.bf16 %v570, %v569
  %v605 = vpack.c.bf16 %v572, %v571
  %v606 = vpack.c.bf16 %v574, %v573
  %v607 = vpack.c.bf16 %v576, %v575
  %v608 = vpack.c.bf16 %v578, %v577
  %v609 = vpack.c.bf16 %v580, %v579
  %v610 = vpack.c.bf16 %v582, %v581
  %v611 = vpack.c.bf16 %v584, %v583
  %v612 = vpack.c.bf16 %v586, %v585
  %v613 = vpack.c.bf16 %v588, %v587
  %v614 = vpack.c.bf16 %v590, %v589
  %v615 = vpack.c.bf16 %v592, %v591
  %v616 = vpack.c.bf16 %v594, %v593
  %v617 = vpack.c.bf16 %v596, %v595
  %v618 = vpack.c.bf16 %v598, %v597
  %v619 = vpack.c.bf16 %v600, %v599
  %v620 = vpack.c.bf16 %v602, %v601
  %v621 = vld [vmem:[%s3] sm:$0xf]
  %v622 = vld [vmem:[%s3 + $0x4] sm:$0xf]
  %v623 = vld [vmem:[%s3 + $0x8] sm:$0xf]
  %v624 = vld [vmem:[%s3 + $0xc] sm:$0xf]
  %v625 = vld [vmem:[%s3 + $0x10] sm:$0xf]
  %v626 = vld [vmem:[%s3 + $0x14] sm:$0xf]
  %v627 = vld [vmem:[%s3 + $0x18] sm:$0xf]
  %v628 = vld [vmem:[%s3 + $0x1c] sm:$0xf]
  %v629 = vld [vmem:[%s3 + $0x20] sm:$0xf]
  %v630 = vld [vmem:[%s3 + $0x24] sm:$0xf]
  %v631 = vld [vmem:[%s3 + $0x28] sm:$0xf]
  %v632 = vld [vmem:[%s3 + $0x2c] sm:$0xf]
  %v633 = vld [vmem:[%s3 + $0x30] sm:$0xf]
  %v634 = vld [vmem:[%s3 + $0x34] sm:$0xf]
  %v635 = vld [vmem:[%s3 + $0x38] sm:$0xf]
  %v636 = vld [vmem:[%s3 + $0x3c] sm:$0xf]
  %s637 = scalar_lea.vmem %s3, 64
  %v638 = vld [vmem:[%s637] sm:$0xf]
  %v639 = vld [vmem:[%s637 + $0x4] sm:$0xf]
  %v640 = vld [vmem:[%s637 + $0x8] sm:$0xf]
  %v641 = vld [vmem:[%s637 + $0xc] sm:$0xf]
  %v642 = vld [vmem:[%s637 + $0x10] sm:$0xf]
  %v643 = vld [vmem:[%s637 + $0x14] sm:$0xf]
  %v644 = vld [vmem:[%s637 + $0x18] sm:$0xf]
  %v645 = vld [vmem:[%s637 + $0x1c] sm:$0xf]
  %v646 = vld [vmem:[%s637 + $0x20] sm:$0xf]
  %v647 = vld [vmem:[%s637 + $0x24] sm:$0xf]
  %v648 = vld [vmem:[%s637 + $0x28] sm:$0xf]
  %v649 = vld [vmem:[%s637 + $0x2c] sm:$0xf]
  %v650 = vld [vmem:[%s637 + $0x30] sm:$0xf]
  %v651 = vld [vmem:[%s637 + $0x34] sm:$0xf]
  %v652 = vld [vmem:[%s637 + $0x38] sm:$0xf]
  %v653 = vld [vmem:[%s637 + $0x3c] sm:$0xf]
  %vm656 = vcmask 1046528
  %v657 = vrot.slane %v604, 1
  %v658 = vrot.slane %v605, 1
  %v659 = vsel %vm656, %v657, %v658
  %v678 = vunpack.c.l.b16 %v638
  %v679 = vunpack.c.l.b16 %v639
  %v680 = vunpack.c.l.b16 %v640
  %v681 = vunpack.c.l.b16 %v641
  %v682 = vunpack.c.l.b16 %v642
  %v683 = vunpack.c.l.b16 %v643
  %v684 = vunpack.c.l.b16 %v644
  %v685 = vunpack.c.l.b16 %v645
  %v686 = vunpack.c.l.b16 %v646
  %v687 = vunpack.c.l.b16 %v647
  %v688 = vunpack.c.l.b16 %v648
  %v689 = vunpack.c.l.b16 %v649
  %v690 = vunpack.c.l.b16 %v650
  %v691 = vunpack.c.l.b16 %v651
  %v692 = vunpack.c.l.b16 %v652
  %v693 = vunpack.c.l.b16 %v653
  %v694 = vpack.c.b16 %v679, %v678
  %v695 = vpack.c.b16 %v681, %v680
  %v696 = vpack.c.b16 %v683, %v682
  %v697 = vpack.c.b16 %v685, %v684
  %v698 = vpack.c.b16 %v687, %v686
  %v699 = vpack.c.b16 %v689, %v688
  %v700 = vpack.c.b16 %v691, %v690
  %v701 = vpack.c.b16 %v693, %v692
  %710 = vmatprep.subr.bf16.mxu0 0
  %711 = vmatpush1.bf16.msra.mxu0 %v694
  %712 = vmatprep.subr.bf16.mxu0 0
  %713 = vmatpush1.bf16.msra.mxu0 %v695
  %714 = vmatprep.subr.bf16.mxu0 0
  %715 = vmatpush1.bf16.msra.mxu0 %v696
  %716 = vmatprep.subr.bf16.mxu0 0
  %717 = vmatpush1.bf16.msra.mxu0 %v697
  %718 = vmatprep.subr.bf16.mxu0 0
  %719 = vmatpush1.bf16.msra.mxu0 %v698
  %720 = vmatprep.subr.bf16.mxu0 0
  %721 = vmatpush1.bf16.msra.mxu0 %v699
  %722 = vmatprep.subr.bf16.mxu0 0
  %723 = vmatpush1.bf16.msra.mxu0 %v700
  %724 = vmatprep.subr.bf16.mxu0 0
  %725 = vmatpush1.bf16.msra.mxu0 %v701
  %726 = vmatprep.subr.bf16.mxu0 0
  %727 = vmatpush1.bf16.msra.mxu0 0
  %728 = vmatprep.subr.bf16.mxu0 0
  %729 = vmatpush1.bf16.msra.mxu0 0
  %730 = vmatprep.subr.bf16.mxu0 0
  %731 = vmatpush1.bf16.msra.mxu0 0
  %732 = vmatprep.subr.bf16.mxu0 0
  %733 = vmatpush1.bf16.msra.mxu0 0
  %734 = vmatprep.subr.bf16.mxu0 0
  %735 = vmatpush1.bf16.msra.mxu0 0
  %736 = vmatprep.subr.bf16.mxu0 0
  %737 = vmatpush1.bf16.msra.mxu0 0
  %738 = vmatprep.subr.bf16.mxu0 0
  %739 = vmatpush1.bf16.msra.mxu0 0
  %740 = vmatprep.subr.bf16.mxu0 0
  %741 = vmatpush1.bf16.msra.mxu0 0
  %742 = vmatprep.mubr.bf16.mxu0 0
  %743 = vmatmul.mubr.bf16.gmra.mrb[0].mxu0 %v659
  %v744 = vpop.f32.mrb[0].mxu0
  %v745 = vadd.f32 0.0, %v744
  %v746 = vpop.f32.mrb[0].mxu0
  %v747 = vpop.f32.mrb[0].mxu0
  %v748 = vadd.f32 0.0, %v747
  %v749 = vpop.f32.mrb[0].mxu0
  %750 = vmatprep.mubr.bf16.mxu0 0
  %751 = vmatmul.mubr.bf16.gmra.mrb[0].mxu0 %v658
  %v752 = vpop.f32.mrb[0].mxu0
  %v753 = vadd.f32 0.0, %v752
  %v754 = vpop.f32.mrb[0].mxu0
  %v755 = vpop.f32.mrb[0].mxu0
  %v756 = vpop.f32.mrb[0].mxu0
  %757 = vdwg.mxu0
  %v774 = vunpack.c.l.b16 %v621
  %v775 = vunpack.c.l.b16 %v622
  %v776 = vunpack.c.l.b16 %v623
  %v777 = vunpack.c.l.b16 %v624
  %v778 = vunpack.c.l.b16 %v625
  %v779 = vunpack.c.l.b16 %v626
  %v780 = vunpack.c.l.b16 %v627
  %v781 = vunpack.c.l.b16 %v628
  %v782 = vunpack.c.l.b16 %v629
  %v783 = vunpack.c.l.b16 %v630
  %v784 = vunpack.c.l.b16 %v631
  %v785 = vunpack.c.l.b16 %v632
  %v786 = vunpack.c.l.b16 %v633
  %v787 = vunpack.c.l.b16 %v634
  %v788 = vunpack.c.l.b16 %v635
  %v789 = vunpack.c.l.b16 %v636
  %v790 = vpack.c.b16 %v775, %v774
  %v791 = vpack.c.b16 %v777, %v776
  %v792 = vpack.c.b16 %v779, %v778
  %v793 = vpack.c.b16 %v781, %v780
  %v794 = vpack.c.b16 %v783, %v782
  %v795 = vpack.c.b16 %v785, %v784
  %v796 = vpack.c.b16 %v787, %v786
  %v797 = vpack.c.b16 %v789, %v788
  %806 = vmatprep.subr.bf16.mxu0 0
  %807 = vmatpush1.bf16.msra.mxu0 %v790
  %808 = vmatprep.subr.bf16.mxu0 0
  %809 = vmatpush1.bf16.msra.mxu0 %v791
  %810 = vmatprep.subr.bf16.mxu0 0
  %811 = vmatpush1.bf16.msra.mxu0 %v792
  %812 = vmatprep.subr.bf16.mxu0 0
  %813 = vmatpush1.bf16.msra.mxu0 %v793
  %814 = vmatprep.subr.bf16.mxu0 0
  %815 = vmatpush1.bf16.msra.mxu0 %v794
  %816 = vmatprep.subr.bf16.mxu0 0
  %817 = vmatpush1.bf16.msra.mxu0 %v795
  %818 = vmatprep.subr.bf16.mxu0 0
  %819 = vmatpush1.bf16.msra.mxu0 %v796
  %820 = vmatprep.subr.bf16.mxu0 0
  %821 = vmatpush1.bf16.msra.mxu0 %v797
  %822 = vmatprep.subr.bf16.mxu0 0
  %823 = vmatpush1.bf16.msra.mxu0 0
  %824 = vmatprep.subr.bf16.mxu0 0
  %825 = vmatpush1.bf16.msra.mxu0 0
  %826 = vmatprep.subr.bf16.mxu0 0
  %827 = vmatpush1.bf16.msra.mxu0 0
  %828 = vmatprep.subr.bf16.mxu0 0
  %829 = vmatpush1.bf16.msra.mxu0 0
  %830 = vmatprep.subr.bf16.mxu0 0
  %831 = vmatpush1.bf16.msra.mxu0 0
  %832 = vmatprep.subr.bf16.mxu0 0
  %833 = vmatpush1.bf16.msra.mxu0 0
  %834 = vmatprep.subr.bf16.mxu0 0
  %835 = vmatpush1.bf16.msra.mxu0 0
  %836 = vmatprep.subr.bf16.mxu0 0
  %837 = vmatpush1.bf16.msra.mxu0 0
  %838 = vmatprep.mubr.bf16.mxu0 0
  %839 = vmatmul.mubr.bf16.gmra.mrb[0].mxu0 %v603
  %v840 = vpop.f32.mrb[0].mxu0
  %v841 = vadd.f32 %v745, %v840
  %v842 = vpop.f32.mrb[0].mxu0
  %v843 = vpop.f32.mrb[0].mxu0
  %v844 = vadd.f32 %v748, %v843
  %v845 = vpop.f32.mrb[0].mxu0
  %846 = vmatprep.mubr.bf16.mxu0 0
  %847 = vmatmul.mubr.bf16.gmra.mrb[0].mxu0 %v604
  %v848 = vpop.f32.mrb[0].mxu0
  %v849 = vadd.f32 %v753, %v848
  %v850 = vpop.f32.mrb[0].mxu0
  %v851 = vpop.f32.mrb[0].mxu0
  %v852 = vpop.f32.mrb[0].mxu0
  %853 = vdwg.mxu0
  %s854 = scalar_lea.vmem %s3, 128
  %v855 = vld [vmem:[%s854] sm:$0xf]
  %v856 = vld [vmem:[%s854 + $0x4] sm:$0xf]
  %v857 = vld [vmem:[%s854 + $0x8] sm:$0xf]
  %v858 = vld [vmem:[%s854 + $0xc] sm:$0xf]
  %v859 = vld [vmem:[%s854 + $0x10] sm:$0xf]
  %v860 = vld [vmem:[%s854 + $0x14] sm:$0xf]
  %v861 = vld [vmem:[%s854 + $0x18] sm:$0xf]
  %v862 = vld [vmem:[%s854 + $0x1c] sm:$0xf]
  %v863 = vld [vmem:[%s854 + $0x20] sm:$0xf]
  %v864 = vld [vmem:[%s854 + $0x24] sm:$0xf]
  %v865 = vld [vmem:[%s854 + $0x28] sm:$0xf]
  %v866 = vld [vmem:[%s854 + $0x2c] sm:$0xf]
  %v867 = vld [vmem:[%s854 + $0x30] sm:$0xf]
  %v868 = vld [vmem:[%s854 + $0x34] sm:$0xf]
  %v869 = vld [vmem:[%s854 + $0x38] sm:$0xf]
  %v870 = vld [vmem:[%s854 + $0x3c] sm:$0xf]
  %vm872 = vcmask 1045504
  %v873 = vrot.slane %v605, 2
  %v874 = vrot.slane %v606, 2
  %v875 = vsel %vm872, %v873, %v874
  %v894 = vunpack.c.l.b16 %v855
  %v895 = vunpack.c.l.b16 %v856
  %v896 = vunpack.c.l.b16 %v857
  %v897 = vunpack.c.l.b16 %v858
  %v898 = vunpack.c.l.b16 %v859
  %v899 = vunpack.c.l.b16 %v860
  %v900 = vunpack.c.l.b16 %v861
  %v901 = vunpack.c.l.b16 %v862
  %v902 = vunpack.c.l.b16 %v863
  %v903 = vunpack.c.l.b16 %v864
  %v904 = vunpack.c.l.b16 %v865
  %v905 = vunpack.c.l.b16 %v866
  %v906 = vunpack.c.l.b16 %v867
  %v907 = vunpack.c.l.b16 %v868
  %v908 = vunpack.c.l.b16 %v869
  %v909 = vunpack.c.l.b16 %v870
  %v910 = vpack.c.b16 %v895, %v894
  %v911 = vpack.c.b16 %v897, %v896
  %v912 = vpack.c.b16 %v899, %v898
  %v913 = vpack.c.b16 %v901, %v900
  %v914 = vpack.c.b16 %v903, %v902
  %v915 = vpack.c.b16 %v905, %v904
  %v916 = vpack.c.b16 %v907, %v906
  %v917 = vpack.c.b16 %v909, %v908
  %926 = vmatprep.subr.bf16.mxu0 0
  %927 = vmatpush1.bf16.msra.mxu0 %v910
  %928 = vmatprep.subr.bf16.mxu0 0
  %929 = vmatpush1.bf16.msra.mxu0 %v911
  %930 = vmatprep.subr.bf16.mxu0 0
  %931 = vmatpush1.bf16.msra.mxu0 %v912
  %932 = vmatprep.subr.bf16.mxu0 0
  %933 = vmatpush1.bf16.msra.mxu0 %v913
  %934 = vmatprep.subr.bf16.mxu0 0
  %935 = vmatpush1.bf16.msra.mxu0 %v914
  %936 = vmatprep.subr.bf16.mxu0 0
  %937 = vmatpush1.bf16.msra.mxu0 %v915
  %938 = vmatprep.subr.bf16.mxu0 0
  %939 = vmatpush1.bf16.msra.mxu0 %v916
  %940 = vmatprep.subr.bf16.mxu0 0
  %941 = vmatpush1.bf16.msra.mxu0 %v917
  %942 = vmatprep.subr.bf16.mxu0 0
  %943 = vmatpush1.bf16.msra.mxu0 0
  %944 = vmatprep.subr.bf16.mxu0 0
  %945 = vmatpush1.bf16.msra.mxu0 0
  %946 = vmatprep.subr.bf16.mxu0 0
  %947 = vmatpush1.bf16.msra.mxu0 0
  %948 = vmatprep.subr.bf16.mxu0 0
  %949 = vmatpush1.bf16.msra.mxu0 0
  %950 = vmatprep.subr.bf16.mxu0 0
  %951 = vmatpush1.bf16.msra.mxu0 0
  %952 = vmatprep.subr.bf16.mxu0 0
  %953 = vmatpush1.bf16.msra.mxu0 0
  %954 = vmatprep.subr.bf16.mxu0 0
  %955 = vmatpush1.bf16.msra.mxu0 0
  %956 = vmatprep.subr.bf16.mxu0 0
  %957 = vmatpush1.bf16.msra.mxu0 0
  %958 = vmatprep.mubr.bf16.mxu0 0
  %959 = vmatmul.mubr.bf16.gmra.mrb[0].mxu0 %v875
  %v960 = vpop.f32.mrb[0].mxu0
  %v961 = vadd.f32 0.0, %v960
  %v962 = vpop.f32.mrb[0].mxu0
  %v963 = vpop.f32.mrb[0].mxu0
  %v964 = vadd.f32 0.0, %v963
  %v965 = vpop.f32.mrb[0].mxu0
  %966 = vmatprep.mubr.bf16.mxu0 0
  %967 = vmatmul.mubr.bf16.gmra.mrb[0].mxu0 %v874
  %v968 = vpop.f32.mrb[0].mxu0
  %v969 = vadd.f32 0.0, %v968
  %v970 = vpop.f32.mrb[0].mxu0
  %v971 = vpop.f32.mrb[0].mxu0
  %v972 = vpop.f32.mrb[0].mxu0
  %973 = vdwg.mxu0
  %v974 = vadd.f32 %v841, %v961
  %v975 = vadd.f32 %v844, %v964
  %v976 = vadd.f32 %v849, %v969
  %s977 = scalar_lea.vmem %s3, 192
  %v978 = vld [vmem:[%s977] sm:$0xf]
  %v979 = vld [vmem:[%s977 + $0x4] sm:$0xf]
  %v980 = vld [vmem:[%s977 + $0x8] sm:$0xf]
  %v981 = vld [vmem:[%s977 + $0xc] sm:$0xf]
  %v982 = vld [vmem:[%s977 + $0x10] sm:$0xf]
  %v983 = vld [vmem:[%s977 + $0x14] sm:$0xf]
  %v984 = vld [vmem:[%s977 + $0x18] sm:$0xf]
  %v985 = vld [vmem:[%s977 + $0x1c] sm:$0xf]
  %v986 = vld [vmem:[%s977 + $0x20] sm:$0xf]
  %v987 = vld [vmem:[%s977 + $0x24] sm:$0xf]
  %v988 = vld [vmem:[%s977 + $0x28] sm:$0xf]
  %v989 = vld [vmem:[%s977 + $0x2c] sm:$0xf]
  %v990 = vld [vmem:[%s977 + $0x30] sm:$0xf]
  %v991 = vld [vmem:[%s977 + $0x34] sm:$0xf]
  %v992 = vld [vmem:[%s977 + $0x38] sm:$0xf]
  %v993 = vld [vmem:[%s977 + $0x3c] sm:$0xf]
  %vm995 = vcmask 1044480
  %v996 = vrot.slane %v606, 3
  %v997 = vrot.slane %v607, 3
  %v998 = vsel %vm995, %v996, %v997
  %v1017 = vunpack.c.l.b16 %v978
  %v1018 = vunpack.c.l.b16 %v979
  %v1019 = vunpack.c.l.b16 %v980
  %v1020 = vunpack.c.l.b16 %v981
  %v1021 = vunpack.c.l.b16 %v982
  %v1022 = vunpack.c.l.b16 %v983
  %v1023 = vunpack.c.l.b16 %v984
  %v1024 = vunpack.c.l.b16 %v985
  %v1025 = vunpack.c.l.b16 %v986
  %v1026 = vunpack.c.l.b16 %v987
  %v1027 = vunpack.c.l.b16 %v988
  %v1028 = vunpack.c.l.b16 %v989
  %v1029 = vunpack.c.l.b16 %v990
  %v1030 = vunpack.c.l.b16 %v991
  %v1031 = vunpack.c.l.b16 %v992
  %v1032 = vunpack.c.l.b16 %v993
  %v1033 = vpack.c.b16 %v1018, %v1017
  %v1034 = vpack.c.b16 %v1020, %v1019
  %v1035 = vpack.c.b16 %v1022, %v1021
  %v1036 = vpack.c.b16 %v1024, %v1023
  %v1037 = vpack.c.b16 %v1026, %v1025
  %v1038 = vpack.c.b16 %v1028, %v1027
  %v1039 = vpack.c.b16 %v1030, %v1029
  %v1040 = vpack.c.b16 %v1032, %v1031
  %1049 = vmatprep.subr.bf16.mxu0 0
  %1050 = vmatpush1.bf16.msra.mxu0 %v1033
  %1051 = vmatprep.subr.bf16.mxu0 0
  %1052 = vmatpush1.bf16.msra.mxu0 %v1034
  %1053 = vmatprep.subr.bf16.mxu0 0
  %1054 = vmatpush1.bf16.msra.mxu0 %v1035
  %1055 = vmatprep.subr.bf16.mxu0 0
  %1056 = vmatpush1.bf16.msra.mxu0 %v1036
  %1057 = vmatprep.subr.bf16.mxu0 0
  %1058 = vmatpush1.bf16.msra.mxu0 %v1037
  %1059 = vmatprep.subr.bf16.mxu0 0
  %1060 = vmatpush1.bf16.msra.mxu0 %v1038
  %1061 = vmatprep.subr.bf16.mxu0 0
  %1062 = vmatpush1.bf16.msra.mxu0 %v1039
  %1063 = vmatprep.subr.bf16.mxu0 0
  %1064 = vmatpush1.bf16.msra.mxu0 %v1040
  %1065 = vmatprep.subr.bf16.mxu0 0
  %1066 = vmatpush1.bf16.msra.mxu0 0
  %1067 = vmatprep.subr.bf16.mxu0 0
  %1068 = vmatpush1.bf16.msra.mxu0 0
  %1069 = vmatprep.subr.bf16.mxu0 0
  %1070 = vmatpush1.bf16.msra.mxu0 0
  %1071 = vmatprep.subr.bf16.mxu0 0
  %1072 = vmatpush1.bf16.msra.mxu0 0
  %1073 = vmatprep.subr.bf16.mxu0 0
  %1074 = vmatpush1.bf16.msra.mxu0 0
  %1075 = vmatprep.subr.bf16.mxu0 0
  %1076 = vmatpush1.bf16.msra.mxu0 0
  %1077 = vmatprep.subr.bf16.mxu0 0
  %1078 = vmatpush1.bf16.msra.mxu0 0
  %1079 = vmatprep.subr.bf16.mxu0 0
  %1080 = vmatpush1.bf16.msra.mxu0 0
  %1081 = vmatprep.mubr.bf16.mxu0 0
  %1082 = vmatmul.mubr.bf16.gmra.mrb[0].mxu0 %v998
  %v1083 = vpop.f32.mrb[0].mxu0
  %v1084 = vadd.f32 0.0, %v1083
  %v1085 = vpop.f32.mrb[0].mxu0
  %v1086 = vpop.f32.mrb[0].mxu0
  %v1087 = vadd.f32 0.0, %v1086
  %v1088 = vpop.f32.mrb[0].mxu0
  %1089 = vmatprep.mubr.bf16.mxu0 0
  %1090 = vmatmul.mubr.bf16.gmra.mrb[0].mxu0 %v997
  %v1091 = vpop.f32.mrb[0].mxu0
  %v1092 = vadd.f32 0.0, %v1091
  %v1093 = vpop.f32.mrb[0].mxu0
  %v1094 = vpop.f32.mrb[0].mxu0
  %v1095 = vpop.f32.mrb[0].mxu0
  %1096 = vdwg.mxu0
  %v1097 = vadd.f32 %v974, %v1084
  %v1098 = vadd.f32 %v975, %v1087
  %v1099 = vadd.f32 %v976, %v1092
  %s1100 = scalar_lea.vmem %s3, 256
  %v1101 = vld [vmem:[%s1100] sm:$0xf]
  %v1102 = vld [vmem:[%s1100 + $0x4] sm:$0xf]
  %v1103 = vld [vmem:[%s1100 + $0x8] sm:$0xf]
  %v1104 = vld [vmem:[%s1100 + $0xc] sm:$0xf]
  %v1105 = vld [vmem:[%s1100 + $0x10] sm:$0xf]
  %v1106 = vld [vmem:[%s1100 + $0x14] sm:$0xf]
  %v1107 = vld [vmem:[%s1100 + $0x18] sm:$0xf]
  %v1108 = vld [vmem:[%s1100 + $0x1c] sm:$0xf]
  %v1109 = vld [vmem:[%s1100 + $0x20] sm:$0xf]
  %v1110 = vld [vmem:[%s1100 + $0x24] sm:$0xf]
  %v1111 = vld [vmem:[%s1100 + $0x28] sm:$0xf]
  %v1112 = vld [vmem:[%s1100 + $0x2c] sm:$0xf]
  %v1113 = vld [vmem:[%s1100 + $0x30] sm:$0xf]
  %v1114 = vld [vmem:[%s1100 + $0x34] sm:$0xf]
  %v1115 = vld [vmem:[%s1100 + $0x38] sm:$0xf]
  %v1116 = vld [vmem:[%s1100 + $0x3c] sm:$0xf]
  %vm1118 = vcmask 1043456
  %v1119 = vrot.slane %v607, 4
  %v1120 = vrot.slane %v608, 4
  %v1121 = vsel %vm1118, %v1119, %v1120
  %v1140 = vunpack.c.l.b16 %v1101
  %v1141 = vunpack.c.l.b16 %v1102
  %v1142 = vunpack.c.l.b16 %v1103
  %v1143 = vunpack.c.l.b16 %v1104
  %v1144 = vunpack.c.l.b16 %v1105
  %v1145 = vunpack.c.l.b16 %v1106
  %v1146 = vunpack.c.l.b16 %v1107
  %v1147 = vunpack.c.l.b16 %v1108
  %v1148 = vunpack.c.l.b16 %v1109
  %v1149 = vunpack.c.l.b16 %v1110
  %v1150 = vunpack.c.l.b16 %v1111
  %v1151 = vunpack.c.l.b16 %v1112
  %v1152 = vunpack.c.l.b16 %v1113
  %v1153 = vunpack.c.l.b16 %v1114
  %v1154 = vunpack.c.l.b16 %v1115
  %v1155 = vunpack.c.l.b16 %v1116
  %v1156 = vpack.c.b16 %v1141, %v1140
  %v1157 = vpack.c.b16 %v1143, %v1142
  %v1158 = vpack.c.b16 %v1145, %v1144
  %v1159 = vpack.c.b16 %v1147, %v1146
  %v1160 = vpack.c.b16 %v1149, %v1148
  %v1161 = vpack.c.b16 %v1151, %v1150
  %v1162 = vpack.c.b16 %v1153, %v1152
  %v1163 = vpack.c.b16 %v1155, %v1154
  %1172 = vmatprep.subr.bf16.mxu0 0
  %1173 = vmatpush1.bf16.msra.mxu0 %v1156
  %1174 = vmatprep.subr.bf16.mxu0 0
  %1175 = vmatpush1.bf16.msra.mxu0 %v1157
  %1176 = vmatprep.subr.bf16.mxu0 0
  %1177 = vmatpush1.bf16.msra.mxu0 %v1158
  %1178 = vmatprep.subr.bf16.mxu0 0
  %1179 = vmatpush1.bf16.msra.mxu0 %v1159
  %1180 = vmatprep.subr.bf16.mxu0 0
  %1181 = vmatpush1.bf16.msra.mxu0 %v1160
  %1182 = vmatprep.subr.bf16.mxu0 0
  %1183 = vmatpush1.bf16.msra.mxu0 %v1161
  %1184 = vmatprep.subr.bf16.mxu0 0
  %1185 = vmatpush1.bf16.msra.mxu0 %v1162
  %1186 = vmatprep.subr.bf16.mxu0 0
  %1187 = vmatpush1.bf16.msra.mxu0 %v1163
  %1188 = vmatprep.subr.bf16.mxu0 0
  %1189 = vmatpush1.bf16.msra.mxu0 0
  %1190 = vmatprep.subr.bf16.mxu0 0
  %1191 = vmatpush1.bf16.msra.mxu0 0
  %1192 = vmatprep.subr.bf16.mxu0 0
  %1193 = vmatpush1.bf16.msra.mxu0 0
  %1194 = vmatprep.subr.bf16.mxu0 0
  %1195 = vmatpush1.bf16.msra.mxu0 0
  %1196 = vmatprep.subr.bf16.mxu0 0
  %1197 = vmatpush1.bf16.msra.mxu0 0
  %1198 = vmatprep.subr.bf16.mxu0 0
  %1199 = vmatpush1.bf16.msra.mxu0 0
  %1200 = vmatprep.subr.bf16.mxu0 0
  %1201 = vmatpush1.bf16.msra.mxu0 0
  %1202 = vmatprep.subr.bf16.mxu0 0
  %1203 = vmatpush1.bf16.msra.mxu0 0
  %1204 = vmatprep.mubr.bf16.mxu0 0
  %1205 = vmatmul.mubr.bf16.gmra.mrb[0].mxu0 %v1121
  %v1206 = vpop.f32.mrb[0].mxu0
  %v1207 = vadd.f32 0.0, %v1206
  %v1208 = vpop.f32.mrb[0].mxu0
  %v1209 = vpop.f32.mrb[0].mxu0
  %v1210 = vadd.f32 0.0, %v1209
  %v1211 = vpop.f32.mrb[0].mxu0
  %1212 = vmatprep.mubr.bf16.mxu0 0
  %1213 = vmatmul.mubr.bf16.gmra.mrb[0].mxu0 %v1120
  %v1214 = vpop.f32.mrb[0].mxu0
  %v1215 = vadd.f32 0.0, %v1214
  %v1216 = vpop.f32.mrb[0].mxu0
  %v1217 = vpop.f32.mrb[0].mxu0
  %v1218 = vpop.f32.mrb[0].mxu0
  %1219 = vdwg.mxu0
  %v1220 = vadd.f32 %v1097, %v1207
  %v1221 = vadd.f32 %v1098, %v1210
  %v1222 = vadd.f32 %v1099, %v1215
  %s1223 = scalar_lea.vmem %s3, 320
  %v1224 = vld [vmem:[%s1223] sm:$0xf]
  %v1225 = vld [vmem:[%s1223 + $0x4] sm:$0xf]
  %v1226 = vld [vmem:[%s1223 + $0x8] sm:$0xf]
  %v1227 = vld [vmem:[%s1223 + $0xc] sm:$0xf]
  %v1228 = vld [vmem:[%s1223 + $0x10] sm:$0xf]
  %v1229 = vld [vmem:[%s1223 + $0x14] sm:$0xf]
  %v1230 = vld [vmem:[%s1223 + $0x18] sm:$0xf]
  %v1231 = vld [vmem:[%s1223 + $0x1c] sm:$0xf]
  %v1232 = vld [vmem:[%s1223 + $0x20] sm:$0xf]
  %v1233 = vld [vmem:[%s1223 + $0x24] sm:$0xf]
  %v1234 = vld [vmem:[%s1223 + $0x28] sm:$0xf]
  %v1235 = vld [vmem:[%s1223 + $0x2c] sm:$0xf]
  %v1236 = vld [vmem:[%s1223 + $0x30] sm:$0xf]
  %v1237 = vld [vmem:[%s1223 + $0x34] sm:$0xf]
  %v1238 = vld [vmem:[%s1223 + $0x38] sm:$0xf]
  %v1239 = vld [vmem:[%s1223 + $0x3c] sm:$0xf]
  %vm1241 = vcmask 1042432
  %v1242 = vrot.slane %v608, 5
  %v1243 = vrot.slane %v609, 5
  %v1244 = vsel %vm1241, %v1242, %v1243
  %v1263 = vunpack.c.l.b16 %v1224
  %v1264 = vunpack.c.l.b16 %v1225
  %v1265 = vunpack.c.l.b16 %v1226
  %v1266 = vunpack.c.l.b16 %v1227
  %v1267 = vunpack.c.l.b16 %v1228
  %v1268 = vunpack.c.l.b16 %v1229
  %v1269 = vunpack.c.l.b16 %v1230
  %v1270 = vunpack.c.l.b16 %v1231
  %v1271 = vunpack.c.l.b16 %v1232
  %v1272 = vunpack.c.l.b16 %v1233
  %v1273 = vunpack.c.l.b16 %v1234
  %v1274 = vunpack.c.l.b16 %v1235
  %v1275 = vunpack.c.l.b16 %v1236
  %v1276 = vunpack.c.l.b16 %v1237
  %v1277 = vunpack.c.l.b16 %v1238
  %v1278 = vunpack.c.l.b16 %v1239
  %v1279 = vpack.c.b16 %v1264, %v1263
  %v1280 = vpack.c.b16 %v1266, %v1265
  %v1281 = vpack.c.b16 %v1268, %v1267
  %v1282 = vpack.c.b16 %v1270, %v1269
  %v1283 = vpack.c.b16 %v1272, %v1271
  %v1284 = vpack.c.b16 %v1274, %v1273
  %v1285 = vpack.c.b16 %v1276, %v1275
  %v1286 = vpack.c.b16 %v1278, %v1277
  %1295 = vmatprep.subr.bf16.mxu0 0
  %1296 = vmatpush1.bf16.msra.mxu0 %v1279
  %1297 = vmatprep.subr.bf16.mxu0 0
  %1298 = vmatpush1.bf16.msra.mxu0 %v1280
  %1299 = vmatprep.subr.bf16.mxu0 0
  %1300 = vmatpush1.bf16.msra.mxu0 %v1281
  %1301 = vmatprep.subr.bf16.mxu0 0
  %1302 = vmatpush1.bf16.msra.mxu0 %v1282
  %1303 = vmatprep.subr.bf16.mxu0 0
  %1304 = vmatpush1.bf16.msra.mxu0 %v1283
  %1305 = vmatprep.subr.bf16.mxu0 0
  %1306 = vmatpush1.bf16.msra.mxu0 %v1284
  %1307 = vmatprep.subr.bf16.mxu0 0
  %1308 = vmatpush1.bf16.msra.mxu0 %v1285
  %1309 = vmatprep.subr.bf16.mxu0 0
  %1310 = vmatpush1.bf16.msra.mxu0 %v1286
  %1311 = vmatprep.subr.bf16.mxu0 0
  %1312 = vmatpush1.bf16.msra.mxu0 0
  %1313 = vmatprep.subr.bf16.mxu0 0
  %1314 = vmatpush1.bf16.msra.mxu0 0
  %1315 = vmatprep.subr.bf16.mxu0 0
  %1316 = vmatpush1.bf16.msra.mxu0 0
  %1317 = vmatprep.subr.bf16.mxu0 0
  %1318 = vmatpush1.bf16.msra.mxu0 0
  %1319 = vmatprep.subr.bf16.mxu0 0
  %1320 = vmatpush1.bf16.msra.mxu0 0
  %1321 = vmatprep.subr.bf16.mxu0 0
  %1322 = vmatpush1.bf16.msra.mxu0 0
  %1323 = vmatprep.subr.bf16.mxu0 0
  %1324 = vmatpush1.bf16.msra.mxu0 0
  %1325 = vmatprep.subr.bf16.mxu0 0
  %1326 = vmatpush1.bf16.msra.mxu0 0
  %1327 = vmatprep.mubr.bf16.mxu0 0
  %1328 = vmatmul.mubr.bf16.gmra.mrb[0].mxu0 %v1244
  %v1329 = vpop.f32.mrb[0].mxu0
  %v1330 = vadd.f32 0.0, %v1329
  %v1331 = vpop.f32.mrb[0].mxu0
  %v1332 = vpop.f32.mrb[0].mxu0
  %v1333 = vadd.f32 0.0, %v1332
  %v1334 = vpop.f32.mrb[0].mxu0
  %1335 = vmatprep.mubr.bf16.mxu0 0
  %1336 = vmatmul.mubr.bf16.gmra.mrb[0].mxu0 %v1243
  %v1337 = vpop.f32.mrb[0].mxu0
  %v1338 = vadd.f32 0.0, %v1337
  %v1339 = vpop.f32.mrb[0].mxu0
  %v1340 = vpop.f32.mrb[0].mxu0
  %v1341 = vpop.f32.mrb[0].mxu0
  %1342 = vdwg.mxu0
  %v1343 = vadd.f32 %v1220, %v1330
  %v1344 = vadd.f32 %v1221, %v1333
  %v1345 = vadd.f32 %v1222, %v1338
  %s1346 = scalar_lea.vmem %s3, 384
  %v1347 = vld [vmem:[%s1346] sm:$0xf]
  %v1348 = vld [vmem:[%s1346 + $0x4] sm:$0xf]
  %v1349 = vld [vmem:[%s1346 + $0x8] sm:$0xf]
  %v1350 = vld [vmem:[%s1346 + $0xc] sm:$0xf]
  %v1351 = vld [vmem:[%s1346 + $0x10] sm:$0xf]
  %v1352 = vld [vmem:[%s1346 + $0x14] sm:$0xf]
  %v1353 = vld [vmem:[%s1346 + $0x18] sm:$0xf]
  %v1354 = vld [vmem:[%s1346 + $0x1c] sm:$0xf]
  %v1355 = vld [vmem:[%s1346 + $0x20] sm:$0xf]
  %v1356 = vld [vmem:[%s1346 + $0x24] sm:$0xf]
  %v1357 = vld [vmem:[%s1346 + $0x28] sm:$0xf]
  %v1358 = vld [vmem:[%s1346 + $0x2c] sm:$0xf]
  %v1359 = vld [vmem:[%s1346 + $0x30] sm:$0xf]
  %v1360 = vld [vmem:[%s1346 + $0x34] sm:$0xf]
  %v1361 = vld [vmem:[%s1346 + $0x38] sm:$0xf]
  %v1362 = vld [vmem:[%s1346 + $0x3c] sm:$0xf]
  %vm1364 = vcmask 1041408
  %v1365 = vrot.slane %v609, 6
  %v1366 = vrot.slane %v610, 6
  %v1367 = vsel %vm1364, %v1365, %v1366
  %v1386 = vunpack.c.l.b16 %v1347
  %v1387 = vunpack.c.l.b16 %v1348
  %v1388 = vunpack.c.l.b16 %v1349
  %v1389 = vunpack.c.l.b16 %v1350
  %v1390 = vunpack.c.l.b16 %v1351
  %v1391 = vunpack.c.l.b16 %v1352
  %v1392 = vunpack.c.l.b16 %v1353
  %v1393 = vunpack.c.l.b16 %v1354
  %v1394 = vunpack.c.l.b16 %v1355
  %v1395 = vunpack.c.l.b16 %v1356
  %v1396 = vunpack.c.l.b16 %v1357
  %v1397 = vunpack.c.l.b16 %v1358
  %v1398 = vunpack.c.l.b16 %v1359
  %v1399 = vunpack.c.l.b16 %v1360
  %v1400 = vunpack.c.l.b16 %v1361
  %v1401 = vunpack.c.l.b16 %v1362
  %v1402 = vpack.c.b16 %v1387, %v1386
  %v1403 = vpack.c.b16 %v1389, %v1388
  %v1404 = vpack.c.b16 %v1391, %v1390
  %v1405 = vpack.c.b16 %v1393, %v1392
  %v1406 = vpack.c.b16 %v1395, %v1394
  %v1407 = vpack.c.b16 %v1397, %v1396
  %v1408 = vpack.c.b16 %v1399, %v1398
  %v1409 = vpack.c.b16 %v1401, %v1400
  %1418 = vmatprep.subr.bf16.mxu0 0
  %1419 = vmatpush1.bf16.msra.mxu0 %v1402
  %1420 = vmatprep.subr.bf16.mxu0 0
  %1421 = vmatpush1.bf16.msra.mxu0 %v1403
  %1422 = vmatprep.subr.bf16.mxu0 0
  %1423 = vmatpush1.bf16.msra.mxu0 %v1404
  %1424 = vmatprep.subr.bf16.mxu0 0
  %1425 = vmatpush1.bf16.msra.mxu0 %v1405
  %1426 = vmatprep.subr.bf16.mxu0 0
  %1427 = vmatpush1.bf16.msra.mxu0 %v1406
  %1428 = vmatprep.subr.bf16.mxu0 0
  %1429 = vmatpush1.bf16.msra.mxu0 %v1407
  %1430 = vmatprep.subr.bf16.mxu0 0
  %1431 = vmatpush1.bf16.msra.mxu0 %v1408
  %1432 = vmatprep.subr.bf16.mxu0 0
  %1433 = vmatpush1.bf16.msra.mxu0 %v1409
  %1434 = vmatprep.subr.bf16.mxu0 0
  %1435 = vmatpush1.bf16.msra.mxu0 0
  %1436 = vmatprep.subr.bf16.mxu0 0
  %1437 = vmatpush1.bf16.msra.mxu0 0
  %1438 = vmatprep.subr.bf16.mxu0 0
  %1439 = vmatpush1.bf16.msra.mxu0 0
  %1440 = vmatprep.subr.bf16.mxu0 0
  %1441 = vmatpush1.bf16.msra.mxu0 0
  %1442 = vmatprep.subr.bf16.mxu0 0
  %1443 = vmatpush1.bf16.msra.mxu0 0
  %1444 = vmatprep.subr.bf16.mxu0 0
  %1445 = vmatpush1.bf16.msra.mxu0 0
  %1446 = vmatprep.subr.bf16.mxu0 0
  %1447 = vmatpush1.bf16.msra.mxu0 0
  %1448 = vmatprep.subr.bf16.mxu0 0
  %1449 = vmatpush1.bf16.msra.mxu0 0
  %1450 = vmatprep.mubr.bf16.mxu0 0
  %1451 = vmatmul.mubr.bf16.gmra.mrb[0].mxu0 %v1367
  %v1452 = vpop.f32.mrb[0].mxu0
  %v1453 = vadd.f32 0.0, %v1452
  %v1454 = vpop.f32.mrb[0].mxu0
  %v1455 = vpop.f32.mrb[0].mxu0
  %v1456 = vadd.f32 0.0, %v1455
  %v1457 = vpop.f32.mrb[0].mxu0
  %1458 = vmatprep.mubr.bf16.mxu0 0
  %1459 = vmatmul.mubr.bf16.gmra.mrb[0].mxu0 %v1366
  %v1460 = vpop.f32.mrb[0].mxu0
  %v1461 = vadd.f32 0.0, %v1460
  %v1462 = vpop.f32.mrb[0].mxu0
  %v1463 = vpop.f32.mrb[0].mxu0
  %v1464 = vpop.f32.mrb[0].mxu0
  %1465 = vdwg.mxu0
  %v1466 = vadd.f32 %v1343, %v1453
  %v1467 = vadd.f32 %v1344, %v1456
  %v1468 = vadd.f32 %v1345, %v1461
  %s1469 = scalar_lea.vmem %s3, 448
  %v1470 = vld [vmem:[%s1469] sm:$0xf]
  %v1471 = vld [vmem:[%s1469 + $0x4] sm:$0xf]
  %v1472 = vld [vmem:[%s1469 + $0x8] sm:$0xf]
  %v1473 = vld [vmem:[%s1469 + $0xc] sm:$0xf]
  %v1474 = vld [vmem:[%s1469 + $0x10] sm:$0xf]
  %v1475 = vld [vmem:[%s1469 + $0x14] sm:$0xf]
  %v1476 = vld [vmem:[%s1469 + $0x18] sm:$0xf]
  %v1477 = vld [vmem:[%s1469 + $0x1c] sm:$0xf]
  %v1478 = vld [vmem:[%s1469 + $0x20] sm:$0xf]
  %v1479 = vld [vmem:[%s1469 + $0x24] sm:$0xf]
  %v1480 = vld [vmem:[%s1469 + $0x28] sm:$0xf]
  %v1481 = vld [vmem:[%s1469 + $0x2c] sm:$0xf]
  %v1482 = vld [vmem:[%s1469 + $0x30] sm:$0xf]
  %v1483 = vld [vmem:[%s1469 + $0x34] sm:$0xf]
  %v1484 = vld [vmem:[%s1469 + $0x38] sm:$0xf]
  %v1485 = vld [vmem:[%s1469 + $0x3c] sm:$0xf]
  %vm1487 = vcmask 1040384
  %v1488 = vrot.slane %v610, 7
  %v1489 = vrot.slane %v611, 7
  %v1490 = vsel %vm1487, %v1488, %v1489
  %v1509 = vunpack.c.l.b16 %v1470
  %v1510 = vunpack.c.l.b16 %v1471
  %v1511 = vunpack.c.l.b16 %v1472
  %v1512 = vunpack.c.l.b16 %v1473
  %v1513 = vunpack.c.l.b16 %v1474
  %v1514 = vunpack.c.l.b16 %v1475
  %v1515 = vunpack.c.l.b16 %v1476
  %v1516 = vunpack.c.l.b16 %v1477
  %v1517 = vunpack.c.l.b16 %v1478
  %v1518 = vunpack.c.l.b16 %v1479
  %v1519 = vunpack.c.l.b16 %v1480
  %v1520 = vunpack.c.l.b16 %v1481
  %v1521 = vunpack.c.l.b16 %v1482
  %v1522 = vunpack.c.l.b16 %v1483
  %v1523 = vunpack.c.l.b16 %v1484
  %v1524 = vunpack.c.l.b16 %v1485
  %v1525 = vpack.c.b16 %v1510, %v1509
  %v1526 = vpack.c.b16 %v1512, %v1511
  %v1527 = vpack.c.b16 %v1514, %v1513
  %v1528 = vpack.c.b16 %v1516, %v1515
  %v1529 = vpack.c.b16 %v1518, %v1517
  %v1530 = vpack.c.b16 %v1520, %v1519
  %v1531 = vpack.c.b16 %v1522, %v1521
  %v1532 = vpack.c.b16 %v1524, %v1523
  %1541 = vmatprep.subr.bf16.mxu0 0
  %1542 = vmatpush1.bf16.msra.mxu0 %v1525
  %1543 = vmatprep.subr.bf16.mxu0 0
  %1544 = vmatpush1.bf16.msra.mxu0 %v1526
  %1545 = vmatprep.subr.bf16.mxu0 0
  %1546 = vmatpush1.bf16.msra.mxu0 %v1527
  %1547 = vmatprep.subr.bf16.mxu0 0
  %1548 = vmatpush1.bf16.msra.mxu0 %v1528
  %1549 = vmatprep.subr.bf16.mxu0 0
  %1550 = vmatpush1.bf16.msra.mxu0 %v1529
  %1551 = vmatprep.subr.bf16.mxu0 0
  %1552 = vmatpush1.bf16.msra.mxu0 %v1530
  %1553 = vmatprep.subr.bf16.mxu0 0
  %1554 = vmatpush1.bf16.msra.mxu0 %v1531
  %1555 = vmatprep.subr.bf16.mxu0 0
  %1556 = vmatpush1.bf16.msra.mxu0 %v1532
  %1557 = vmatprep.subr.bf16.mxu0 0
  %1558 = vmatpush1.bf16.msra.mxu0 0
  %1559 = vmatprep.subr.bf16.mxu0 0
  %1560 = vmatpush1.bf16.msra.mxu0 0
  %1561 = vmatprep.subr.bf16.mxu0 0
  %1562 = vmatpush1.bf16.msra.mxu0 0
  %1563 = vmatprep.subr.bf16.mxu0 0
  %1564 = vmatpush1.bf16.msra.mxu0 0
  %1565 = vmatprep.subr.bf16.mxu0 0
  %1566 = vmatpush1.bf16.msra.mxu0 0
  %1567 = vmatprep.subr.bf16.mxu0 0
  %1568 = vmatpush1.bf16.msra.mxu0 0
  %1569 = vmatprep.subr.bf16.mxu0 0
  %1570 = vmatpush1.bf16.msra.mxu0 0
  %1571 = vmatprep.subr.bf16.mxu0 0
  %1572 = vmatpush1.bf16.msra.mxu0 0
  %1573 = vmatprep.mubr.bf16.mxu0 0
  %1574 = vmatmul.mubr.bf16.gmra.mrb[0].mxu0 %v1490
  %v1575 = vpop.f32.mrb[0].mxu0
  %v1576 = vadd.f32 0.0, %v1575
  %v1577 = vpop.f32.mrb[0].mxu0
  %v1578 = vpop.f32.mrb[0].mxu0
  %v1579 = vadd.f32 0.0, %v1578
  %v1580 = vpop.f32.mrb[0].mxu0
  %1581 = vmatprep.mubr.bf16.mxu0 0
  %1582 = vmatmul.mubr.bf16.gmra.mrb[0].mxu0 %v1489
  %v1583 = vpop.f32.mrb[0].mxu0
  %v1584 = vadd.f32 0.0, %v1583
  %v1585 = vpop.f32.mrb[0].mxu0
  %v1586 = vpop.f32.mrb[0].mxu0
  %v1587 = vpop.f32.mrb[0].mxu0
  %1588 = vdwg.mxu0
  %v1589 = vadd.f32 %v1466, %v1576
  %v1590 = vadd.f32 %v1467, %v1579
  %v1591 = vadd.f32 %v1468, %v1584
  %s1592 = scalar_lea.vmem %s3, 512
  %v1593 = vld [vmem:[%s1592] sm:$0xf]
  %v1594 = vld [vmem:[%s1592 + $0x4] sm:$0xf]
  %v1595 = vld [vmem:[%s1592 + $0x8] sm:$0xf]
  %v1596 = vld [vmem:[%s1592 + $0xc] sm:$0xf]
  %v1597 = vld [vmem:[%s1592 + $0x10] sm:$0xf]
  %v1598 = vld [vmem:[%s1592 + $0x14] sm:$0xf]
  %v1599 = vld [vmem:[%s1592 + $0x18] sm:$0xf]
  %v1600 = vld [vmem:[%s1592 + $0x1c] sm:$0xf]
  %v1601 = vld [vmem:[%s1592 + $0x20] sm:$0xf]
  %v1602 = vld [vmem:[%s1592 + $0x24] sm:$0xf]
  %v1603 = vld [vmem:[%s1592 + $0x28] sm:$0xf]
  %v1604 = vld [vmem:[%s1592 + $0x2c] sm:$0xf]
  %v1605 = vld [vmem:[%s1592 + $0x30] sm:$0xf]
  %v1606 = vld [vmem:[%s1592 + $0x34] sm:$0xf]
  %v1607 = vld [vmem:[%s1592 + $0x38] sm:$0xf]
  %v1608 = vld [vmem:[%s1592 + $0x3c] sm:$0xf]
  %v1625 = vunpack.c.l.b16 %v1593
  %v1626 = vunpack.c.l.b16 %v1594
  %v1627 = vunpack.c.l.b16 %v1595
  %v1628 = vunpack.c.l.b16 %v1596
  %v1629 = vunpack.c.l.b16 %v1597
  %v1630 = vunpack.c.l.b16 %v1598
  %v1631 = vunpack.c.l.b16 %v1599
  %v1632 = vunpack.c.l.b16 %v1600
  %v1633 = vunpack.c.l.b16 %v1601
  %v1634 = vunpack.c.l.b16 %v1602
  %v1635 = vunpack.c.l.b16 %v1603
  %v1636 = vunpack.c.l.b16 %v1604
  %v1637 = vunpack.c.l.b16 %v1605
  %v1638 = vunpack.c.l.b16 %v1606
  %v1639 = vunpack.c.l.b16 %v1607
  %v1640 = vunpack.c.l.b16 %v1608
  %v1641 = vpack.c.b16 %v1626, %v1625
  %v1642 = vpack.c.b16 %v1628, %v1627
  %v1643 = vpack.c.b16 %v1630, %v1629
  %v1644 = vpack.c.b16 %v1632, %v1631
  %v1645 = vpack.c.b16 %v1634, %v1633
  %v1646 = vpack.c.b16 %v1636, %v1635
  %v1647 = vpack.c.b16 %v1638, %v1637
  %v1648 = vpack.c.b16 %v1640, %v1639
  %1657 = vmatprep.subr.bf16.mxu0 0
  %1658 = vmatpush1.bf16.msra.mxu0 %v1641
  %1659 = vmatprep.subr.bf16.mxu0 0
  %1660 = vmatpush1.bf16.msra.mxu0 %v1642
  %1661 = vmatprep.subr.bf16.mxu0 0
  %1662 = vmatpush1.bf16.msra.mxu0 %v1643
  %1663 = vmatprep.subr.bf16.mxu0 0
  %1664 = vmatpush1.bf16.msra.mxu0 %v1644
  %1665 = vmatprep.subr.bf16.mxu0 0
  %1666 = vmatpush1.bf16.msra.mxu0 %v1645
  %1667 = vmatprep.subr.bf16.mxu0 0
  %1668 = vmatpush1.bf16.msra.mxu0 %v1646
  %1669 = vmatprep.subr.bf16.mxu0 0
  %1670 = vmatpush1.bf16.msra.mxu0 %v1647
  %1671 = vmatprep.subr.bf16.mxu0 0
  %1672 = vmatpush1.bf16.msra.mxu0 %v1648
  %1673 = vmatprep.subr.bf16.mxu0 0
  %1674 = vmatpush1.bf16.msra.mxu0 0
  %1675 = vmatprep.subr.bf16.mxu0 0
  %1676 = vmatpush1.bf16.msra.mxu0 0
  %1677 = vmatprep.subr.bf16.mxu0 0
  %1678 = vmatpush1.bf16.msra.mxu0 0
  %1679 = vmatprep.subr.bf16.mxu0 0
  %1680 = vmatpush1.bf16.msra.mxu0 0
  %1681 = vmatprep.subr.bf16.mxu0 0
  %1682 = vmatpush1.bf16.msra.mxu0 0
  %1683 = vmatprep.subr.bf16.mxu0 0
  %1684 = vmatpush1.bf16.msra.mxu0 0
  %1685 = vmatprep.subr.bf16.mxu0 0
  %1686 = vmatpush1.bf16.msra.mxu0 0
  %1687 = vmatprep.subr.bf16.mxu0 0
  %1688 = vmatpush1.bf16.msra.mxu0 0
  %1689 = vmatprep.mubr.bf16.mxu0 0
  %1690 = vmatmul.mubr.bf16.gmra.mrb[0].mxu0 %v612
  %v1691 = vpop.f32.mrb[0].mxu0
  %v1692 = vadd.f32 0.0, %v1691
  %v1693 = vpop.f32.mrb[0].mxu0
  %v1694 = vpop.f32.mrb[0].mxu0
  %v1695 = vadd.f32 0.0, %v1694
  %v1696 = vpop.f32.mrb[0].mxu0
  %1697 = vmatprep.mubr.bf16.mxu0 0
  %1698 = vmatmul.mubr.bf16.gmra.mrb[0].mxu0 %v613
  %v1699 = vpop.f32.mrb[0].mxu0
  %v1700 = vadd.f32 0.0, %v1699
  %v1701 = vpop.f32.mrb[0].mxu0
  %v1702 = vpop.f32.mrb[0].mxu0
  %v1703 = vpop.f32.mrb[0].mxu0
  %1704 = vdwg.mxu0
  %v1705 = vadd.f32 %v1589, %v1692
  %v1706 = vadd.f32 %v1590, %v1695
  %v1707 = vadd.f32 %v1591, %v1700
  %s1708 = scalar_lea.vmem %s3, 576
  %v1709 = vld [vmem:[%s1708] sm:$0xf]
  %v1710 = vld [vmem:[%s1708 + $0x4] sm:$0xf]
  %v1711 = vld [vmem:[%s1708 + $0x8] sm:$0xf]
  %v1712 = vld [vmem:[%s1708 + $0xc] sm:$0xf]
  %v1713 = vld [vmem:[%s1708 + $0x10] sm:$0xf]
  %v1714 = vld [vmem:[%s1708 + $0x14] sm:$0xf]
  %v1715 = vld [vmem:[%s1708 + $0x18] sm:$0xf]
  %v1716 = vld [vmem:[%s1708 + $0x1c] sm:$0xf]
  %v1717 = vld [vmem:[%s1708 + $0x20] sm:$0xf]
  %v1718 = vld [vmem:[%s1708 + $0x24] sm:$0xf]
  %v1719 = vld [vmem:[%s1708 + $0x28] sm:$0xf]
  %v1720 = vld [vmem:[%s1708 + $0x2c] sm:$0xf]
  %v1721 = vld [vmem:[%s1708 + $0x30] sm:$0xf]
  %v1722 = vld [vmem:[%s1708 + $0x34] sm:$0xf]
  %v1723 = vld [vmem:[%s1708 + $0x38] sm:$0xf]
  %v1724 = vld [vmem:[%s1708 + $0x3c] sm:$0xf]
  %v1727 = vrot.slane %v613, 1
  %v1728 = vrot.slane %v614, 1
  %v1729 = vsel %vm656, %v1727, %v1728
  %v1748 = vunpack.c.l.b16 %v1709
  %v1749 = vunpack.c.l.b16 %v1710
  %v1750 = vunpack.c.l.b16 %v1711
  %v1751 = vunpack.c.l.b16 %v1712
  %v1752 = vunpack.c.l.b16 %v1713
  %v1753 = vunpack.c.l.b16 %v1714
  %v1754 = vunpack.c.l.b16 %v1715
  %v1755 = vunpack.c.l.b16 %v1716
  %v1756 = vunpack.c.l.b16 %v1717
  %v1757 = vunpack.c.l.b16 %v1718
  %v1758 = vunpack.c.l.b16 %v1719
  %v1759 = vunpack.c.l.b16 %v1720
  %v1760 = vunpack.c.l.b16 %v1721
  %v1761 = vunpack.c.l.b16 %v1722
  %v1762 = vunpack.c.l.b16 %v1723
  %v1763 = vunpack.c.l.b16 %v1724
  %v1764 = vpack.c.b16 %v1749, %v1748
  %v1765 = vpack.c.b16 %v1751, %v1750
  %v1766 = vpack.c.b16 %v1753, %v1752
  %v1767 = vpack.c.b16 %v1755, %v1754
  %v1768 = vpack.c.b16 %v1757, %v1756
  %v1769 = vpack.c.b16 %v1759, %v1758
  %v1770 = vpack.c.b16 %v1761, %v1760
  %v1771 = vpack.c.b16 %v1763, %v1762
  %1780 = vmatprep.subr.bf16.mxu0 0
  %1781 = vmatpush1.bf16.msra.mxu0 %v1764
  %1782 = vmatprep.subr.bf16.mxu0 0
  %1783 = vmatpush1.bf16.msra.mxu0 %v1765
  %1784 = vmatprep.subr.bf16.mxu0 0
  %1785 = vmatpush1.bf16.msra.mxu0 %v1766
  %1786 = vmatprep.subr.bf16.mxu0 0
  %1787 = vmatpush1.bf16.msra.mxu0 %v1767
  %1788 = vmatprep.subr.bf16.mxu0 0
  %1789 = vmatpush1.bf16.msra.mxu0 %v1768
  %1790 = vmatprep.subr.bf16.mxu0 0
  %1791 = vmatpush1.bf16.msra.mxu0 %v1769
  %1792 = vmatprep.subr.bf16.mxu0 0
  %1793 = vmatpush1.bf16.msra.mxu0 %v1770
  %1794 = vmatprep.subr.bf16.mxu0 0
  %1795 = vmatpush1.bf16.msra.mxu0 %v1771
  %1796 = vmatprep.subr.bf16.mxu0 0
  %1797 = vmatpush1.bf16.msra.mxu0 0
  %1798 = vmatprep.subr.bf16.mxu0 0
  %1799 = vmatpush1.bf16.msra.mxu0 0
  %1800 = vmatprep.subr.bf16.mxu0 0
  %1801 = vmatpush1.bf16.msra.mxu0 0
  %1802 = vmatprep.subr.bf16.mxu0 0
  %1803 = vmatpush1.bf16.msra.mxu0 0
  %1804 = vmatprep.subr.bf16.mxu0 0
  %1805 = vmatpush1.bf16.msra.mxu0 0
  %1806 = vmatprep.subr.bf16.mxu0 0
  %1807 = vmatpush1.bf16.msra.mxu0 0
  %1808 = vmatprep.subr.bf16.mxu0 0
  %1809 = vmatpush1.bf16.msra.mxu0 0
  %1810 = vmatprep.subr.bf16.mxu0 0
  %1811 = vmatpush1.bf16.msra.mxu0 0
  %1812 = vmatprep.mubr.bf16.mxu0 0
  %1813 = vmatmul.mubr.bf16.gmra.mrb[0].mxu0 %v1729
  %v1814 = vpop.f32.mrb[0].mxu0
  %v1815 = vadd.f32 0.0, %v1814
  %v1816 = vpop.f32.mrb[0].mxu0
  %v1817 = vpop.f32.mrb[0].mxu0
  %v1818 = vadd.f32 0.0, %v1817
  %v1819 = vpop.f32.mrb[0].mxu0
  %1820 = vmatprep.mubr.bf16.mxu0 0
  %1821 = vmatmul.mubr.bf16.gmra.mrb[0].mxu0 %v1728
  %v1822 = vpop.f32.mrb[0].mxu0
  %v1823 = vadd.f32 0.0, %v1822
  %v1824 = vpop.f32.mrb[0].mxu0
  %v1825 = vpop.f32.mrb[0].mxu0
  %v1826 = vpop.f32.mrb[0].mxu0
  %1827 = vdwg.mxu0
  %v1828 = vadd.f32 %v1705, %v1815
  %v1829 = vadd.f32 %v1706, %v1818
  %v1830 = vadd.f32 %v1707, %v1823
  %s1831 = scalar_lea.vmem %s3, 640
  %v1832 = vld [vmem:[%s1831] sm:$0xf]
  %v1833 = vld [vmem:[%s1831 + $0x4] sm:$0xf]
  %v1834 = vld [vmem:[%s1831 + $0x8] sm:$0xf]
  %v1835 = vld [vmem:[%s1831 + $0xc] sm:$0xf]
  %v1836 = vld [vmem:[%s1831 + $0x10] sm:$0xf]
  %v1837 = vld [vmem:[%s1831 + $0x14] sm:$0xf]
  %v1838 = vld [vmem:[%s1831 + $0x18] sm:$0xf]
  %v1839 = vld [vmem:[%s1831 + $0x1c] sm:$0xf]
  %v1840 = vld [vmem:[%s1831 + $0x20] sm:$0xf]
  %v1841 = vld [vmem:[%s1831 + $0x24] sm:$0xf]
  %v1842 = vld [vmem:[%s1831 + $0x28] sm:$0xf]
  %v1843 = vld [vmem:[%s1831 + $0x2c] sm:$0xf]
  %v1844 = vld [vmem:[%s1831 + $0x30] sm:$0xf]
  %v1845 = vld [vmem:[%s1831 + $0x34] sm:$0xf]
  %v1846 = vld [vmem:[%s1831 + $0x38] sm:$0xf]
  %v1847 = vld [vmem:[%s1831 + $0x3c] sm:$0xf]
  %v1849 = vrot.slane %v614, 2
  %v1850 = vrot.slane %v615, 2
  %v1851 = vsel %vm872, %v1849, %v1850
  %v1870 = vunpack.c.l.b16 %v1832
  %v1871 = vunpack.c.l.b16 %v1833
  %v1872 = vunpack.c.l.b16 %v1834
  %v1873 = vunpack.c.l.b16 %v1835
  %v1874 = vunpack.c.l.b16 %v1836
  %v1875 = vunpack.c.l.b16 %v1837
  %v1876 = vunpack.c.l.b16 %v1838
  %v1877 = vunpack.c.l.b16 %v1839
  %v1878 = vunpack.c.l.b16 %v1840
  %v1879 = vunpack.c.l.b16 %v1841
  %v1880 = vunpack.c.l.b16 %v1842
  %v1881 = vunpack.c.l.b16 %v1843
  %v1882 = vunpack.c.l.b16 %v1844
  %v1883 = vunpack.c.l.b16 %v1845
  %v1884 = vunpack.c.l.b16 %v1846
  %v1885 = vunpack.c.l.b16 %v1847
  %v1886 = vpack.c.b16 %v1871, %v1870
  %v1887 = vpack.c.b16 %v1873, %v1872
  %v1888 = vpack.c.b16 %v1875, %v1874
  %v1889 = vpack.c.b16 %v1877, %v1876
  %v1890 = vpack.c.b16 %v1879, %v1878
  %v1891 = vpack.c.b16 %v1881, %v1880
  %v1892 = vpack.c.b16 %v1883, %v1882
  %v1893 = vpack.c.b16 %v1885, %v1884
  %1902 = vmatprep.subr.bf16.mxu0 0
  %1903 = vmatpush1.bf16.msra.mxu0 %v1886
  %1904 = vmatprep.subr.bf16.mxu0 0
  %1905 = vmatpush1.bf16.msra.mxu0 %v1887
  %1906 = vmatprep.subr.bf16.mxu0 0
  %1907 = vmatpush1.bf16.msra.mxu0 %v1888
  %1908 = vmatprep.subr.bf16.mxu0 0
  %1909 = vmatpush1.bf16.msra.mxu0 %v1889
  %1910 = vmatprep.subr.bf16.mxu0 0
  %1911 = vmatpush1.bf16.msra.mxu0 %v1890
  %1912 = vmatprep.subr.bf16.mxu0 0
  %1913 = vmatpush1.bf16.msra.mxu0 %v1891
  %1914 = vmatprep.subr.bf16.mxu0 0
  %1915 = vmatpush1.bf16.msra.mxu0 %v1892
  %1916 = vmatprep.subr.bf16.mxu0 0
  %1917 = vmatpush1.bf16.msra.mxu0 %v1893
  %1918 = vmatprep.subr.bf16.mxu0 0
  %1919 = vmatpush1.bf16.msra.mxu0 0
  %1920 = vmatprep.subr.bf16.mxu0 0
  %1921 = vmatpush1.bf16.msra.mxu0 0
  %1922 = vmatprep.subr.bf16.mxu0 0
  %1923 = vmatpush1.bf16.msra.mxu0 0
  %1924 = vmatprep.subr.bf16.mxu0 0
  %1925 = vmatpush1.bf16.msra.mxu0 0
  %1926 = vmatprep.subr.bf16.mxu0 0
  %1927 = vmatpush1.bf16.msra.mxu0 0
  %1928 = vmatprep.subr.bf16.mxu0 0
  %1929 = vmatpush1.bf16.msra.mxu0 0
  %1930 = vmatprep.subr.bf16.mxu0 0
  %1931 = vmatpush1.bf16.msra.mxu0 0
  %1932 = vmatprep.subr.bf16.mxu0 0
  %1933 = vmatpush1.bf16.msra.mxu0 0
  %1934 = vmatprep.mubr.bf16.mxu0 0
  %1935 = vmatmul.mubr.bf16.gmra.mrb[0].mxu0 %v1851
  %v1936 = vpop.f32.mrb[0].mxu0
  %v1937 = vadd.f32 0.0, %v1936
  %v1938 = vpop.f32.mrb[0].mxu0
  %v1939 = vpop.f32.mrb[0].mxu0
  %v1940 = vadd.f32 0.0, %v1939
  %v1941 = vpop.f32.mrb[0].mxu0
  %1942 = vmatprep.mubr.bf16.mxu0 0
  %1943 = vmatmul.mubr.bf16.gmra.mrb[0].mxu0 %v1850
  %v1944 = vpop.f32.mrb[0].mxu0
  %v1945 = vadd.f32 0.0, %v1944
  %v1946 = vpop.f32.mrb[0].mxu0
  %v1947 = vpop.f32.mrb[0].mxu0
  %v1948 = vpop.f32.mrb[0].mxu0
  %1949 = vdwg.mxu0
  %v1950 = vadd.f32 %v1828, %v1937
  %v1951 = vadd.f32 %v1829, %v1940
  %v1952 = vadd.f32 %v1830, %v1945
  %s1953 = scalar_lea.vmem %s3, 704
  %v1954 = vld [vmem:[%s1953] sm:$0xf]
  %v1955 = vld [vmem:[%s1953 + $0x4] sm:$0xf]
  %v1956 = vld [vmem:[%s1953 + $0x8] sm:$0xf]
  %v1957 = vld [vmem:[%s1953 + $0xc] sm:$0xf]
  %v1958 = vld [vmem:[%s1953 + $0x10] sm:$0xf]
  %v1959 = vld [vmem:[%s1953 + $0x14] sm:$0xf]
  %v1960 = vld [vmem:[%s1953 + $0x18] sm:$0xf]
  %v1961 = vld [vmem:[%s1953 + $0x1c] sm:$0xf]
  %v1962 = vld [vmem:[%s1953 + $0x20] sm:$0xf]
  %v1963 = vld [vmem:[%s1953 + $0x24] sm:$0xf]
  %v1964 = vld [vmem:[%s1953 + $0x28] sm:$0xf]
  %v1965 = vld [vmem:[%s1953 + $0x2c] sm:$0xf]
  %v1966 = vld [vmem:[%s1953 + $0x30] sm:$0xf]
  %v1967 = vld [vmem:[%s1953 + $0x34] sm:$0xf]
  %v1968 = vld [vmem:[%s1953 + $0x38] sm:$0xf]
  %v1969 = vld [vmem:[%s1953 + $0x3c] sm:$0xf]
  %v1971 = vrot.slane %v615, 3
  %v1972 = vrot.slane %v616, 3
  %v1973 = vsel %vm995, %v1971, %v1972
  %v1992 = vunpack.c.l.b16 %v1954
  %v1993 = vunpack.c.l.b16 %v1955
  %v1994 = vunpack.c.l.b16 %v1956
  %v1995 = vunpack.c.l.b16 %v1957
  %v1996 = vunpack.c.l.b16 %v1958
  %v1997 = vunpack.c.l.b16 %v1959
  %v1998 = vunpack.c.l.b16 %v1960
  %v1999 = vunpack.c.l.b16 %v1961
  %v2000 = vunpack.c.l.b16 %v1962
  %v2001 = vunpack.c.l.b16 %v1963
  %v2002 = vunpack.c.l.b16 %v1964
  %v2003 = vunpack.c.l.b16 %v1965
  %v2004 = vunpack.c.l.b16 %v1966
  %v2005 = vunpack.c.l.b16 %v1967
  %v2006 = vunpack.c.l.b16 %v1968
  %v2007 = vunpack.c.l.b16 %v1969
  %v2008 = vpack.c.b16 %v1993, %v1992
  %v2009 = vpack.c.b16 %v1995, %v1994
  %v2010 = vpack.c.b16 %v1997, %v1996
  %v2011 = vpack.c.b16 %v1999, %v1998
  %v2012 = vpack.c.b16 %v2001, %v2000
  %v2013 = vpack.c.b16 %v2003, %v2002
  %v2014 = vpack.c.b16 %v2005, %v2004
  %v2015 = vpack.c.b16 %v2007, %v2006
  %2024 = vmatprep.subr.bf16.mxu0 0
  %2025 = vmatpush1.bf16.msra.mxu0 %v2008
  %2026 = vmatprep.subr.bf16.mxu0 0
  %2027 = vmatpush1.bf16.msra.mxu0 %v2009
  %2028 = vmatprep.subr.bf16.mxu0 0
  %2029 = vmatpush1.bf16.msra.mxu0 %v2010
  %2030 = vmatprep.subr.bf16.mxu0 0
  %2031 = vmatpush1.bf16.msra.mxu0 %v2011
  %2032 = vmatprep.subr.bf16.mxu0 0
  %2033 = vmatpush1.bf16.msra.mxu0 %v2012
  %2034 = vmatprep.subr.bf16.mxu0 0
  %2035 = vmatpush1.bf16.msra.mxu0 %v2013
  %2036 = vmatprep.subr.bf16.mxu0 0
  %2037 = vmatpush1.bf16.msra.mxu0 %v2014
  %2038 = vmatprep.subr.bf16.mxu0 0
  %2039 = vmatpush1.bf16.msra.mxu0 %v2015
  %2040 = vmatprep.subr.bf16.mxu0 0
  %2041 = vmatpush1.bf16.msra.mxu0 0
  %2042 = vmatprep.subr.bf16.mxu0 0
  %2043 = vmatpush1.bf16.msra.mxu0 0
  %2044 = vmatprep.subr.bf16.mxu0 0
  %2045 = vmatpush1.bf16.msra.mxu0 0
  %2046 = vmatprep.subr.bf16.mxu0 0
  %2047 = vmatpush1.bf16.msra.mxu0 0
  %2048 = vmatprep.subr.bf16.mxu0 0
  %2049 = vmatpush1.bf16.msra.mxu0 0
  %2050 = vmatprep.subr.bf16.mxu0 0
  %2051 = vmatpush1.bf16.msra.mxu0 0
  %2052 = vmatprep.subr.bf16.mxu0 0
  %2053 = vmatpush1.bf16.msra.mxu0 0
  %2054 = vmatprep.subr.bf16.mxu0 0
  %2055 = vmatpush1.bf16.msra.mxu0 0
  %2056 = vmatprep.mubr.bf16.mxu0 0
  %2057 = vmatmul.mubr.bf16.gmra.mrb[0].mxu0 %v1973
  %v2058 = vpop.f32.mrb[0].mxu0
  %v2059 = vadd.f32 0.0, %v2058
  %v2060 = vpop.f32.mrb[0].mxu0
  %v2061 = vpop.f32.mrb[0].mxu0
  %v2062 = vadd.f32 0.0, %v2061
  %v2063 = vpop.f32.mrb[0].mxu0
  %2064 = vmatprep.mubr.bf16.mxu0 0
  %2065 = vmatmul.mubr.bf16.gmra.mrb[0].mxu0 %v1972
  %v2066 = vpop.f32.mrb[0].mxu0
  %v2067 = vadd.f32 0.0, %v2066
  %v2068 = vpop.f32.mrb[0].mxu0
  %v2069 = vpop.f32.mrb[0].mxu0
  %v2070 = vpop.f32.mrb[0].mxu0
  %2071 = vdwg.mxu0
  %v2072 = vadd.f32 %v1950, %v2059
  %v2073 = vadd.f32 %v1951, %v2062
  %v2074 = vadd.f32 %v1952, %v2067
  %s2075 = scalar_lea.vmem %s3, 768
  %v2076 = vld [vmem:[%s2075] sm:$0xf]
  %v2077 = vld [vmem:[%s2075 + $0x4] sm:$0xf]
  %v2078 = vld [vmem:[%s2075 + $0x8] sm:$0xf]
  %v2079 = vld [vmem:[%s2075 + $0xc] sm:$0xf]
  %v2080 = vld [vmem:[%s2075 + $0x10] sm:$0xf]
  %v2081 = vld [vmem:[%s2075 + $0x14] sm:$0xf]
  %v2082 = vld [vmem:[%s2075 + $0x18] sm:$0xf]
  %v2083 = vld [vmem:[%s2075 + $0x1c] sm:$0xf]
  %v2084 = vld [vmem:[%s2075 + $0x20] sm:$0xf]
  %v2085 = vld [vmem:[%s2075 + $0x24] sm:$0xf]
  %v2086 = vld [vmem:[%s2075 + $0x28] sm:$0xf]
  %v2087 = vld [vmem:[%s2075 + $0x2c] sm:$0xf]
  %v2088 = vld [vmem:[%s2075 + $0x30] sm:$0xf]
  %v2089 = vld [vmem:[%s2075 + $0x34] sm:$0xf]
  %v2090 = vld [vmem:[%s2075 + $0x38] sm:$0xf]
  %v2091 = vld [vmem:[%s2075 + $0x3c] sm:$0xf]
  %v2093 = vrot.slane %v616, 4
  %v2094 = vrot.slane %v617, 4
  %v2095 = vsel %vm1118, %v2093, %v2094
  %v2114 = vunpack.c.l.b16 %v2076
  %v2115 = vunpack.c.l.b16 %v2077
  %v2116 = vunpack.c.l.b16 %v2078
  %v2117 = vunpack.c.l.b16 %v2079
  %v2118 = vunpack.c.l.b16 %v2080
  %v2119 = vunpack.c.l.b16 %v2081
  %v2120 = vunpack.c.l.b16 %v2082
  %v2121 = vunpack.c.l.b16 %v2083
  %v2122 = vunpack.c.l.b16 %v2084
  %v2123 = vunpack.c.l.b16 %v2085
  %v2124 = vunpack.c.l.b16 %v2086
  %v2125 = vunpack.c.l.b16 %v2087
  %v2126 = vunpack.c.l.b16 %v2088
  %v2127 = vunpack.c.l.b16 %v2089
  %v2128 = vunpack.c.l.b16 %v2090
  %v2129 = vunpack.c.l.b16 %v2091
  %v2130 = vpack.c.b16 %v2115, %v2114
  %v2131 = vpack.c.b16 %v2117, %v2116
  %v2132 = vpack.c.b16 %v2119, %v2118
  %v2133 = vpack.c.b16 %v2121, %v2120
  %v2134 = vpack.c.b16 %v2123, %v2122
  %v2135 = vpack.c.b16 %v2125, %v2124
  %v2136 = vpack.c.b16 %v2127, %v2126
  %v2137 = vpack.c.b16 %v2129, %v2128
  %2146 = vmatprep.subr.bf16.mxu0 0
  %2147 = vmatpush1.bf16.msra.mxu0 %v2130
  %2148 = vmatprep.subr.bf16.mxu0 0
  %2149 = vmatpush1.bf16.msra.mxu0 %v2131
  %2150 = vmatprep.subr.bf16.mxu0 0
  %2151 = vmatpush1.bf16.msra.mxu0 %v2132
  %2152 = vmatprep.subr.bf16.mxu0 0
  %2153 = vmatpush1.bf16.msra.mxu0 %v2133
  %2154 = vmatprep.subr.bf16.mxu0 0
  %2155 = vmatpush1.bf16.msra.mxu0 %v2134
  %2156 = vmatprep.subr.bf16.mxu0 0
  %2157 = vmatpush1.bf16.msra.mxu0 %v2135
  %2158 = vmatprep.subr.bf16.mxu0 0
  %2159 = vmatpush1.bf16.msra.mxu0 %v2136
  %2160 = vmatprep.subr.bf16.mxu0 0
  %2161 = vmatpush1.bf16.msra.mxu0 %v2137
  %2162 = vmatprep.subr.bf16.mxu0 0
  %2163 = vmatpush1.bf16.msra.mxu0 0
  %2164 = vmatprep.subr.bf16.mxu0 0
  %2165 = vmatpush1.bf16.msra.mxu0 0
  %2166 = vmatprep.subr.bf16.mxu0 0
  %2167 = vmatpush1.bf16.msra.mxu0 0
  %2168 = vmatprep.subr.bf16.mxu0 0
  %2169 = vmatpush1.bf16.msra.mxu0 0
  %2170 = vmatprep.subr.bf16.mxu0 0
  %2171 = vmatpush1.bf16.msra.mxu0 0
  %2172 = vmatprep.subr.bf16.mxu0 0
  %2173 = vmatpush1.bf16.msra.mxu0 0
  %2174 = vmatprep.subr.bf16.mxu0 0
  %2175 = vmatpush1.bf16.msra.mxu0 0
  %2176 = vmatprep.subr.bf16.mxu0 0
  %2177 = vmatpush1.bf16.msra.mxu0 0
  %2178 = vmatprep.mubr.bf16.mxu0 0
  %2179 = vmatmul.mubr.bf16.gmra.mrb[0].mxu0 %v2095
  %v2180 = vpop.f32.mrb[0].mxu0
  %v2181 = vadd.f32 0.0, %v2180
  %v2182 = vpop.f32.mrb[0].mxu0
  %v2183 = vpop.f32.mrb[0].mxu0
  %v2184 = vadd.f32 0.0, %v2183
  %v2185 = vpop.f32.mrb[0].mxu0
  %2186 = vmatprep.mubr.bf16.mxu0 0
  %2187 = vmatmul.mubr.bf16.gmra.mrb[0].mxu0 %v2094
  %v2188 = vpop.f32.mrb[0].mxu0
  %v2189 = vadd.f32 0.0, %v2188
  %v2190 = vpop.f32.mrb[0].mxu0
  %v2191 = vpop.f32.mrb[0].mxu0
  %v2192 = vpop.f32.mrb[0].mxu0
  %2193 = vdwg.mxu0
  %v2194 = vadd.f32 %v2072, %v2181
  %v2195 = vadd.f32 %v2073, %v2184
  %v2196 = vadd.f32 %v2074, %v2189
  %s2197 = scalar_lea.vmem %s3, 832
  %v2198 = vld [vmem:[%s2197] sm:$0xf]
  %v2199 = vld [vmem:[%s2197 + $0x4] sm:$0xf]
  %v2200 = vld [vmem:[%s2197 + $0x8] sm:$0xf]
  %v2201 = vld [vmem:[%s2197 + $0xc] sm:$0xf]
  %v2202 = vld [vmem:[%s2197 + $0x10] sm:$0xf]
  %v2203 = vld [vmem:[%s2197 + $0x14] sm:$0xf]
  %v2204 = vld [vmem:[%s2197 + $0x18] sm:$0xf]
  %v2205 = vld [vmem:[%s2197 + $0x1c] sm:$0xf]
  %v2206 = vld [vmem:[%s2197 + $0x20] sm:$0xf]
  %v2207 = vld [vmem:[%s2197 + $0x24] sm:$0xf]
  %v2208 = vld [vmem:[%s2197 + $0x28] sm:$0xf]
  %v2209 = vld [vmem:[%s2197 + $0x2c] sm:$0xf]
  %v2210 = vld [vmem:[%s2197 + $0x30] sm:$0xf]
  %v2211 = vld [vmem:[%s2197 + $0x34] sm:$0xf]
  %v2212 = vld [vmem:[%s2197 + $0x38] sm:$0xf]
  %v2213 = vld [vmem:[%s2197 + $0x3c] sm:$0xf]
  %v2215 = vrot.slane %v617, 5
  %v2216 = vrot.slane %v618, 5
  %v2217 = vsel %vm1241, %v2215, %v2216
  %v2236 = vunpack.c.l.b16 %v2198
  %v2237 = vunpack.c.l.b16 %v2199
  %v2238 = vunpack.c.l.b16 %v2200
  %v2239 = vunpack.c.l.b16 %v2201
  %v2240 = vunpack.c.l.b16 %v2202
  %v2241 = vunpack.c.l.b16 %v2203
  %v2242 = vunpack.c.l.b16 %v2204
  %v2243 = vunpack.c.l.b16 %v2205
  %v2244 = vunpack.c.l.b16 %v2206
  %v2245 = vunpack.c.l.b16 %v2207
  %v2246 = vunpack.c.l.b16 %v2208
  %v2247 = vunpack.c.l.b16 %v2209
  %v2248 = vunpack.c.l.b16 %v2210
  %v2249 = vunpack.c.l.b16 %v2211
  %v2250 = vunpack.c.l.b16 %v2212
  %v2251 = vunpack.c.l.b16 %v2213
  %v2252 = vpack.c.b16 %v2237, %v2236
  %v2253 = vpack.c.b16 %v2239, %v2238
  %v2254 = vpack.c.b16 %v2241, %v2240
  %v2255 = vpack.c.b16 %v2243, %v2242
  %v2256 = vpack.c.b16 %v2245, %v2244
  %v2257 = vpack.c.b16 %v2247, %v2246
  %v2258 = vpack.c.b16 %v2249, %v2248
  %v2259 = vpack.c.b16 %v2251, %v2250
  %2268 = vmatprep.subr.bf16.mxu0 0
  %2269 = vmatpush1.bf16.msra.mxu0 %v2252
  %2270 = vmatprep.subr.bf16.mxu0 0
  %2271 = vmatpush1.bf16.msra.mxu0 %v2253
  %2272 = vmatprep.subr.bf16.mxu0 0
  %2273 = vmatpush1.bf16.msra.mxu0 %v2254
  %2274 = vmatprep.subr.bf16.mxu0 0
  %2275 = vmatpush1.bf16.msra.mxu0 %v2255
  %2276 = vmatprep.subr.bf16.mxu0 0
  %2277 = vmatpush1.bf16.msra.mxu0 %v2256
  %2278 = vmatprep.subr.bf16.mxu0 0
  %2279 = vmatpush1.bf16.msra.mxu0 %v2257
  %2280 = vmatprep.subr.bf16.mxu0 0
  %2281 = vmatpush1.bf16.msra.mxu0 %v2258
  %2282 = vmatprep.subr.bf16.mxu0 0
  %2283 = vmatpush1.bf16.msra.mxu0 %v2259
  %2284 = vmatprep.subr.bf16.mxu0 0
  %2285 = vmatpush1.bf16.msra.mxu0 0
  %2286 = vmatprep.subr.bf16.mxu0 0
  %2287 = vmatpush1.bf16.msra.mxu0 0
  %2288 = vmatprep.subr.bf16.mxu0 0
  %2289 = vmatpush1.bf16.msra.mxu0 0
  %2290 = vmatprep.subr.bf16.mxu0 0
  %2291 = vmatpush1.bf16.msra.mxu0 0
  %2292 = vmatprep.subr.bf16.mxu0 0
  %2293 = vmatpush1.bf16.msra.mxu0 0
  %2294 = vmatprep.subr.bf16.mxu0 0
  %2295 = vmatpush1.bf16.msra.mxu0 0
  %2296 = vmatprep.subr.bf16.mxu0 0
  %2297 = vmatpush1.bf16.msra.mxu0 0
  %2298 = vmatprep.subr.bf16.mxu0 0
  %2299 = vmatpush1.bf16.msra.mxu0 0
  %2300 = vmatprep.mubr.bf16.mxu0 0
  %2301 = vmatmul.mubr.bf16.gmra.mrb[0].mxu0 %v2217
  %v2302 = vpop.f32.mrb[0].mxu0
  %v2303 = vadd.f32 0.0, %v2302
  %v2304 = vpop.f32.mrb[0].mxu0
  %v2305 = vpop.f32.mrb[0].mxu0
  %v2306 = vadd.f32 0.0, %v2305
  %v2307 = vpop.f32.mrb[0].mxu0
  %2308 = vmatprep.mubr.bf16.mxu0 0
  %2309 = vmatmul.mubr.bf16.gmra.mrb[0].mxu0 %v2216
  %v2310 = vpop.f32.mrb[0].mxu0
  %v2311 = vadd.f32 0.0, %v2310
  %v2312 = vpop.f32.mrb[0].mxu0
  %v2313 = vpop.f32.mrb[0].mxu0
  %v2314 = vpop.f32.mrb[0].mxu0
  %2315 = vdwg.mxu0
  %v2316 = vadd.f32 %v2194, %v2303
  %v2317 = vadd.f32 %v2195, %v2306
  %v2318 = vadd.f32 %v2196, %v2311
  %s2319 = scalar_lea.vmem %s3, 896
  %v2320 = vld [vmem:[%s2319] sm:$0xf]
  %v2321 = vld [vmem:[%s2319 + $0x4] sm:$0xf]
  %v2322 = vld [vmem:[%s2319 + $0x8] sm:$0xf]
  %v2323 = vld [vmem:[%s2319 + $0xc] sm:$0xf]
  %v2324 = vld [vmem:[%s2319 + $0x10] sm:$0xf]
  %v2325 = vld [vmem:[%s2319 + $0x14] sm:$0xf]
  %v2326 = vld [vmem:[%s2319 + $0x18] sm:$0xf]
  %v2327 = vld [vmem:[%s2319 + $0x1c] sm:$0xf]
  %v2328 = vld [vmem:[%s2319 + $0x20] sm:$0xf]
  %v2329 = vld [vmem:[%s2319 + $0x24] sm:$0xf]
  %v2330 = vld [vmem:[%s2319 + $0x28] sm:$0xf]
  %v2331 = vld [vmem:[%s2319 + $0x2c] sm:$0xf]
  %v2332 = vld [vmem:[%s2319 + $0x30] sm:$0xf]
  %v2333 = vld [vmem:[%s2319 + $0x34] sm:$0xf]
  %v2334 = vld [vmem:[%s2319 + $0x38] sm:$0xf]
  %v2335 = vld [vmem:[%s2319 + $0x3c] sm:$0xf]
  %v2337 = vrot.slane %v618, 6
  %v2338 = vrot.slane %v619, 6
  %v2339 = vsel %vm1364, %v2337, %v2338
  %v2358 = vunpack.c.l.b16 %v2320
  %v2359 = vunpack.c.l.b16 %v2321
  %v2360 = vunpack.c.l.b16 %v2322
  %v2361 = vunpack.c.l.b16 %v2323
  %v2362 = vunpack.c.l.b16 %v2324
  %v2363 = vunpack.c.l.b16 %v2325
  %v2364 = vunpack.c.l.b16 %v2326
  %v2365 = vunpack.c.l.b16 %v2327
  %v2366 = vunpack.c.l.b16 %v2328
  %v2367 = vunpack.c.l.b16 %v2329
  %v2368 = vunpack.c.l.b16 %v2330
  %v2369 = vunpack.c.l.b16 %v2331
  %v2370 = vunpack.c.l.b16 %v2332
  %v2371 = vunpack.c.l.b16 %v2333
  %v2372 = vunpack.c.l.b16 %v2334
  %v2373 = vunpack.c.l.b16 %v2335
  %v2374 = vpack.c.b16 %v2359, %v2358
  %v2375 = vpack.c.b16 %v2361, %v2360
  %v2376 = vpack.c.b16 %v2363, %v2362
  %v2377 = vpack.c.b16 %v2365, %v2364
  %v2378 = vpack.c.b16 %v2367, %v2366
  %v2379 = vpack.c.b16 %v2369, %v2368
  %v2380 = vpack.c.b16 %v2371, %v2370
  %v2381 = vpack.c.b16 %v2373, %v2372
  %2390 = vmatprep.subr.bf16.mxu0 0
  %2391 = vmatpush1.bf16.msra.mxu0 %v2374
  %2392 = vmatprep.subr.bf16.mxu0 0
  %2393 = vmatpush1.bf16.msra.mxu0 %v2375
  %2394 = vmatprep.subr.bf16.mxu0 0
  %2395 = vmatpush1.bf16.msra.mxu0 %v2376
  %2396 = vmatprep.subr.bf16.mxu0 0
  %2397 = vmatpush1.bf16.msra.mxu0 %v2377
  %2398 = vmatprep.subr.bf16.mxu0 0
  %2399 = vmatpush1.bf16.msra.mxu0 %v2378
  %2400 = vmatprep.subr.bf16.mxu0 0
  %2401 = vmatpush1.bf16.msra.mxu0 %v2379
  %2402 = vmatprep.subr.bf16.mxu0 0
  %2403 = vmatpush1.bf16.msra.mxu0 %v2380
  %2404 = vmatprep.subr.bf16.mxu0 0
  %2405 = vmatpush1.bf16.msra.mxu0 %v2381
  %2406 = vmatprep.subr.bf16.mxu0 0
  %2407 = vmatpush1.bf16.msra.mxu0 0
  %2408 = vmatprep.subr.bf16.mxu0 0
  %2409 = vmatpush1.bf16.msra.mxu0 0
  %2410 = vmatprep.subr.bf16.mxu0 0
  %2411 = vmatpush1.bf16.msra.mxu0 0
  %2412 = vmatprep.subr.bf16.mxu0 0
  %2413 = vmatpush1.bf16.msra.mxu0 0
  %2414 = vmatprep.subr.bf16.mxu0 0
  %2415 = vmatpush1.bf16.msra.mxu0 0
  %2416 = vmatprep.subr.bf16.mxu0 0
  %2417 = vmatpush1.bf16.msra.mxu0 0
  %2418 = vmatprep.subr.bf16.mxu0 0
  %2419 = vmatpush1.bf16.msra.mxu0 0
  %2420 = vmatprep.subr.bf16.mxu0 0
  %2421 = vmatpush1.bf16.msra.mxu0 0
  %2422 = vmatprep.mubr.bf16.mxu0 0
  %2423 = vmatmul.mubr.bf16.gmra.mrb[0].mxu0 %v2339
  %v2424 = vpop.f32.mrb[0].mxu0
  %v2425 = vadd.f32 0.0, %v2424
  %v2426 = vpop.f32.mrb[0].mxu0
  %v2427 = vpop.f32.mrb[0].mxu0
  %v2428 = vadd.f32 0.0, %v2427
  %v2429 = vpop.f32.mrb[0].mxu0
  %2430 = vmatprep.mubr.bf16.mxu0 0
  %2431 = vmatmul.mubr.bf16.gmra.mrb[0].mxu0 %v2338
  %v2432 = vpop.f32.mrb[0].mxu0
  %v2433 = vadd.f32 0.0, %v2432
  %v2434 = vpop.f32.mrb[0].mxu0
  %v2435 = vpop.f32.mrb[0].mxu0
  %v2436 = vpop.f32.mrb[0].mxu0
  %2437 = vdwg.mxu0
  %v2438 = vadd.f32 %v2316, %v2425
  %v2439 = vadd.f32 %v2317, %v2428
  %v2440 = vadd.f32 %v2318, %v2433
  %s2441 = scalar_lea.vmem %s3, 960
  %v2442 = vld [vmem:[%s2441] sm:$0xf]
  %v2443 = vld [vmem:[%s2441 + $0x4] sm:$0xf]
  %v2444 = vld [vmem:[%s2441 + $0x8] sm:$0xf]
  %v2445 = vld [vmem:[%s2441 + $0xc] sm:$0xf]
  %v2446 = vld [vmem:[%s2441 + $0x10] sm:$0xf]
  %v2447 = vld [vmem:[%s2441 + $0x14] sm:$0xf]
  %v2448 = vld [vmem:[%s2441 + $0x18] sm:$0xf]
  %v2449 = vld [vmem:[%s2441 + $0x1c] sm:$0xf]
  %v2450 = vld [vmem:[%s2441 + $0x20] sm:$0xf]
  %v2451 = vld [vmem:[%s2441 + $0x24] sm:$0xf]
  %v2452 = vld [vmem:[%s2441 + $0x28] sm:$0xf]
  %v2453 = vld [vmem:[%s2441 + $0x2c] sm:$0xf]
  %v2454 = vld [vmem:[%s2441 + $0x30] sm:$0xf]
  %v2455 = vld [vmem:[%s2441 + $0x34] sm:$0xf]
  %v2456 = vld [vmem:[%s2441 + $0x38] sm:$0xf]
  %v2457 = vld [vmem:[%s2441 + $0x3c] sm:$0xf]
  %v2459 = vrot.slane %v619, 7
  %v2460 = vrot.slane %v620, 7
  %v2461 = vsel %vm1487, %v2459, %v2460
  %v2480 = vunpack.c.l.b16 %v2442
  %v2481 = vunpack.c.l.b16 %v2443
  %v2482 = vunpack.c.l.b16 %v2444
  %v2483 = vunpack.c.l.b16 %v2445
  %v2484 = vunpack.c.l.b16 %v2446
  %v2485 = vunpack.c.l.b16 %v2447
  %v2486 = vunpack.c.l.b16 %v2448
  %v2487 = vunpack.c.l.b16 %v2449
  %v2488 = vunpack.c.l.b16 %v2450
  %v2489 = vunpack.c.l.b16 %v2451
  %v2490 = vunpack.c.l.b16 %v2452
  %v2491 = vunpack.c.l.b16 %v2453
  %v2492 = vunpack.c.l.b16 %v2454
  %v2493 = vunpack.c.l.b16 %v2455
  %v2494 = vunpack.c.l.b16 %v2456
  %v2495 = vunpack.c.l.b16 %v2457
  %v2496 = vpack.c.b16 %v2481, %v2480
  %v2497 = vpack.c.b16 %v2483, %v2482
  %v2498 = vpack.c.b16 %v2485, %v2484
  %v2499 = vpack.c.b16 %v2487, %v2486
  %v2500 = vpack.c.b16 %v2489, %v2488
  %v2501 = vpack.c.b16 %v2491, %v2490
  %v2502 = vpack.c.b16 %v2493, %v2492
  %v2503 = vpack.c.b16 %v2495, %v2494
  %2512 = vmatprep.subr.bf16.mxu0 0
  %2513 = vmatpush1.bf16.msra.mxu0 %v2496
  %2514 = vmatprep.subr.bf16.mxu0 0
  %2515 = vmatpush1.bf16.msra.mxu0 %v2497
  %2516 = vmatprep.subr.bf16.mxu0 0
  %2517 = vmatpush1.bf16.msra.mxu0 %v2498
  %2518 = vmatprep.subr.bf16.mxu0 0
  %2519 = vmatpush1.bf16.msra.mxu0 %v2499
  %2520 = vmatprep.subr.bf16.mxu0 0
  %2521 = vmatpush1.bf16.msra.mxu0 %v2500
  %2522 = vmatprep.subr.bf16.mxu0 0
  %2523 = vmatpush1.bf16.msra.mxu0 %v2501
  %2524 = vmatprep.subr.bf16.mxu0 0
  %2525 = vmatpush1.bf16.msra.mxu0 %v2502
  %2526 = vmatprep.subr.bf16.mxu0 0
  %2527 = vmatpush1.bf16.msra.mxu0 %v2503
  %2528 = vmatprep.subr.bf16.mxu0 0
  %2529 = vmatpush1.bf16.msra.mxu0 0
  %2530 = vmatprep.subr.bf16.mxu0 0
  %2531 = vmatpush1.bf16.msra.mxu0 0
  %2532 = vmatprep.subr.bf16.mxu0 0
  %2533 = vmatpush1.bf16.msra.mxu0 0
  %2534 = vmatprep.subr.bf16.mxu0 0
  %2535 = vmatpush1.bf16.msra.mxu0 0
  %2536 = vmatprep.subr.bf16.mxu0 0
  %2537 = vmatpush1.bf16.msra.mxu0 0
  %2538 = vmatprep.subr.bf16.mxu0 0
  %2539 = vmatpush1.bf16.msra.mxu0 0
  %2540 = vmatprep.subr.bf16.mxu0 0
  %2541 = vmatpush1.bf16.msra.mxu0 0
  %2542 = vmatprep.subr.bf16.mxu0 0
  %2543 = vmatpush1.bf16.msra.mxu0 0
  %2544 = vmatprep.mubr.bf16.mxu0 0
  %2545 = vmatmul.mubr.bf16.gmra.mrb[0].mxu0 %v2461
  %v2546 = vpop.f32.mrb[0].mxu0
  %v2547 = vadd.f32 0.0, %v2546
  %v2548 = vpop.f32.mrb[0].mxu0
  %v2549 = vpop.f32.mrb[0].mxu0
  %v2550 = vadd.f32 0.0, %v2549
  %v2551 = vpop.f32.mrb[0].mxu0
  %2552 = vmatprep.mubr.bf16.mxu0 0
  %2553 = vmatmul.mubr.bf16.gmra.mrb[0].mxu0 %v2460
  %v2554 = vpop.f32.mrb[0].mxu0
  %v2555 = vadd.f32 0.0, %v2554
  %v2556 = vpop.f32.mrb[0].mxu0
  %v2557 = vpop.f32.mrb[0].mxu0
  %v2558 = vpop.f32.mrb[0].mxu0
  %2559 = vdwg.mxu0
  %v2560 = vadd.f32 %v2438, %v2547
  %v2561 = vadd.f32 %v2439, %v2550
  %v2562 = vadd.f32 %v2440, %v2555
  %v2563 = vld [vmem:[%s4] sm:$0x1]
  %v2565 = vlaneseq
  %v2566 = vshrl.u32 %v2565, 7
  %v2567 = vsub.s32 0, %v2566
  %v2568 = vrot.slane %v2563, %v2567
  %v2570 = vadd.f32 %v2560, %v2568
  %v2571 = vadd.f32 %v2561, %v2568
  %v2572 = vadd.f32 %v2562, %v2568
  %v2573 = vmax.f32 %v2570, 0.0
  %v2574 = vmax.f32 %v2571, 0.0
  %v2575 = vmax.f32 %v2572, 0.0
  %v2576 = vpack.c.bf16 %v2574, %v2573
  %v2577 = vpack.c.bf16 %v2575, %v2575
  %v2578 = vld [vmem:[%s5] sm:$0xf]
  %v2579 = vld [vmem:[%s5 + $0x4] sm:$0xf]
  %v2580 = vld [vmem:[%s5 + $0x8] sm:$0xf]
  %v2581 = vld [vmem:[%s5 + $0xc] sm:$0xf]
  %v2582 = vld [vmem:[%s5 + $0x10] sm:$0xf]
  %v2583 = vld [vmem:[%s5 + $0x14] sm:$0xf]
  %v2584 = vld [vmem:[%s5 + $0x18] sm:$0xf]
  %v2585 = vld [vmem:[%s5 + $0x1c] sm:$0xf]
  %v2586 = vld [vmem:[%s5 + $0x20] sm:$0xf]
  %v2587 = vld [vmem:[%s5 + $0x24] sm:$0xf]
  %v2588 = vld [vmem:[%s5 + $0x28] sm:$0xf]
  %v2589 = vld [vmem:[%s5 + $0x2c] sm:$0xf]
  %v2590 = vld [vmem:[%s5 + $0x30] sm:$0xf]
  %v2591 = vld [vmem:[%s5 + $0x34] sm:$0xf]
  %v2592 = vld [vmem:[%s5 + $0x38] sm:$0xf]
  %v2593 = vld [vmem:[%s5 + $0x3c] sm:$0xf]
  %s2594 = scalar_lea.vmem %s5, 64
  %v2595 = vld [vmem:[%s2594] sm:$0xf]
  %v2596 = vld [vmem:[%s2594 + $0x4] sm:$0xf]
  %v2597 = vld [vmem:[%s2594 + $0x8] sm:$0xf]
  %v2598 = vld [vmem:[%s2594 + $0xc] sm:$0xf]
  %v2599 = vld [vmem:[%s2594 + $0x10] sm:$0xf]
  %v2600 = vld [vmem:[%s2594 + $0x14] sm:$0xf]
  %v2601 = vld [vmem:[%s2594 + $0x18] sm:$0xf]
  %v2602 = vld [vmem:[%s2594 + $0x1c] sm:$0xf]
  %v2603 = vld [vmem:[%s2594 + $0x20] sm:$0xf]
  %v2604 = vld [vmem:[%s2594 + $0x24] sm:$0xf]
  %v2605 = vld [vmem:[%s2594 + $0x28] sm:$0xf]
  %v2606 = vld [vmem:[%s2594 + $0x2c] sm:$0xf]
  %v2607 = vld [vmem:[%s2594 + $0x30] sm:$0xf]
  %v2608 = vld [vmem:[%s2594 + $0x34] sm:$0xf]
  %v2609 = vld [vmem:[%s2594 + $0x38] sm:$0xf]
  %v2610 = vld [vmem:[%s2594 + $0x3c] sm:$0xf]
  %v2612 = vrot.slane %v2576, 1
  %v2630 = vunpack.c.l.b16 %v2595
  %v2631 = vunpack.c.l.b16 %v2596
  %v2632 = vunpack.c.l.b16 %v2597
  %v2633 = vunpack.c.l.b16 %v2598
  %v2634 = vunpack.c.l.b16 %v2599
  %v2635 = vunpack.c.l.b16 %v2600
  %v2636 = vunpack.c.l.b16 %v2601
  %v2637 = vunpack.c.l.b16 %v2602
  %v2638 = vunpack.c.l.b16 %v2603
  %v2639 = vunpack.c.l.b16 %v2604
  %v2640 = vunpack.c.l.b16 %v2605
  %v2641 = vunpack.c.l.b16 %v2606
  %v2642 = vunpack.c.l.b16 %v2607
  %v2643 = vunpack.c.l.b16 %v2608
  %v2644 = vunpack.c.l.b16 %v2609
  %v2645 = vunpack.c.l.b16 %v2610
  %v2646 = vpack.c.b16 %v2631, %v2630
  %v2647 = vpack.c.b16 %v2633, %v2632
  %v2648 = vpack.c.b16 %v2635, %v2634
  %v2649 = vpack.c.b16 %v2637, %v2636
  %v2650 = vpack.c.b16 %v2639, %v2638
  %v2651 = vpack.c.b16 %v2641, %v2640
  %v2652 = vpack.c.b16 %v2643, %v2642
  %v2653 = vpack.c.b16 %v2645, %v2644
  %2662 = vmatprep.subr.bf16.mxu0 0
  %2663 = vmatpush1.bf16.msra.mxu0 %v2646
  %2664 = vmatprep.subr.bf16.mxu0 0
  %2665 = vmatpush1.bf16.msra.mxu0 %v2647
  %2666 = vmatprep.subr.bf16.mxu0 0
  %2667 = vmatpush1.bf16.msra.mxu0 %v2648
  %2668 = vmatprep.subr.bf16.mxu0 0
  %2669 = vmatpush1.bf16.msra.mxu0 %v2649
  %2670 = vmatprep.subr.bf16.mxu0 0
  %2671 = vmatpush1.bf16.msra.mxu0 %v2650
  %2672 = vmatprep.subr.bf16.mxu0 0
  %2673 = vmatpush1.bf16.msra.mxu0 %v2651
  %2674 = vmatprep.subr.bf16.mxu0 0
  %2675 = vmatpush1.bf16.msra.mxu0 %v2652
  %2676 = vmatprep.subr.bf16.mxu0 0
  %2677 = vmatpush1.bf16.msra.mxu0 %v2653
  %2678 = vmatprep.subr.bf16.mxu0 0
  %2679 = vmatpush1.bf16.msra.mxu0 0
  %2680 = vmatprep.subr.bf16.mxu0 0
  %2681 = vmatpush1.bf16.msra.mxu0 0
  %2682 = vmatprep.subr.bf16.mxu0 0
  %2683 = vmatpush1.bf16.msra.mxu0 0
  %2684 = vmatprep.subr.bf16.mxu0 0
  %2685 = vmatpush1.bf16.msra.mxu0 0
  %2686 = vmatprep.subr.bf16.mxu0 0
  %2687 = vmatpush1.bf16.msra.mxu0 0
  %2688 = vmatprep.subr.bf16.mxu0 0
  %2689 = vmatpush1.bf16.msra.mxu0 0
  %2690 = vmatprep.subr.bf16.mxu0 0
  %2691 = vmatpush1.bf16.msra.mxu0 0
  %2692 = vmatprep.subr.bf16.mxu0 0
  %2693 = vmatpush1.bf16.msra.mxu0 0
  %2694 = vmatprep.mubr.bf16.mxu0 0
  %2695 = vmatmul.mubr.bf16.gmra.mrb[0].mxu0 %v2612
  %v2696 = vpop.f32.mrb[0].mxu0
  %v2697 = vadd.f32 0.0, %v2696
  %v2698 = vpop.f32.mrb[0].mxu0
  %v2699 = vpop.f32.mrb[0].mxu0
  %v2700 = vpop.f32.mrb[0].mxu0
  %2701 = vdwg.mxu0
  %v2718 = vunpack.c.l.b16 %v2578
  %v2719 = vunpack.c.l.b16 %v2579
  %v2720 = vunpack.c.l.b16 %v2580
  %v2721 = vunpack.c.l.b16 %v2581
  %v2722 = vunpack.c.l.b16 %v2582
  %v2723 = vunpack.c.l.b16 %v2583
  %v2724 = vunpack.c.l.b16 %v2584
  %v2725 = vunpack.c.l.b16 %v2585
  %v2726 = vunpack.c.l.b16 %v2586
  %v2727 = vunpack.c.l.b16 %v2587
  %v2728 = vunpack.c.l.b16 %v2588
  %v2729 = vunpack.c.l.b16 %v2589
  %v2730 = vunpack.c.l.b16 %v2590
  %v2731 = vunpack.c.l.b16 %v2591
  %v2732 = vunpack.c.l.b16 %v2592
  %v2733 = vunpack.c.l.b16 %v2593
  %v2734 = vpack.c.b16 %v2719, %v2718
  %v2735 = vpack.c.b16 %v2721, %v2720
  %v2736 = vpack.c.b16 %v2723, %v2722
  %v2737 = vpack.c.b16 %v2725, %v2724
  %v2738 = vpack.c.b16 %v2727, %v2726
  %v2739 = vpack.c.b16 %v2729, %v2728
  %v2740 = vpack.c.b16 %v2731, %v2730
  %v2741 = vpack.c.b16 %v2733, %v2732
  %2750 = vmatprep.subr.bf16.mxu0 0
  %2751 = vmatpush1.bf16.msra.mxu0 %v2734
  %2752 = vmatprep.subr.bf16.mxu0 0
  %2753 = vmatpush1.bf16.msra.mxu0 %v2735
  %2754 = vmatprep.subr.bf16.mxu0 0
  %2755 = vmatpush1.bf16.msra.mxu0 %v2736
  %2756 = vmatprep.subr.bf16.mxu0 0
  %2757 = vmatpush1.bf16.msra.mxu0 %v2737
  %2758 = vmatprep.subr.bf16.mxu0 0
  %2759 = vmatpush1.bf16.msra.mxu0 %v2738
  %2760 = vmatprep.subr.bf16.mxu0 0
  %2761 = vmatpush1.bf16.msra.mxu0 %v2739
  %2762 = vmatprep.subr.bf16.mxu0 0
  %2763 = vmatpush1.bf16.msra.mxu0 %v2740
  %2764 = vmatprep.subr.bf16.mxu0 0
  %2765 = vmatpush1.bf16.msra.mxu0 %v2741
  %2766 = vmatprep.subr.bf16.mxu0 0
  %2767 = vmatpush1.bf16.msra.mxu0 0
  %2768 = vmatprep.subr.bf16.mxu0 0
  %2769 = vmatpush1.bf16.msra.mxu0 0
  %2770 = vmatprep.subr.bf16.mxu0 0
  %2771 = vmatpush1.bf16.msra.mxu0 0
  %2772 = vmatprep.subr.bf16.mxu0 0
  %2773 = vmatpush1.bf16.msra.mxu0 0
  %2774 = vmatprep.subr.bf16.mxu0 0
  %2775 = vmatpush1.bf16.msra.mxu0 0
  %2776 = vmatprep.subr.bf16.mxu0 0
  %2777 = vmatpush1.bf16.msra.mxu0 0
  %2778 = vmatprep.subr.bf16.mxu0 0
  %2779 = vmatpush1.bf16.msra.mxu0 0
  %2780 = vmatprep.subr.bf16.mxu0 0
  %2781 = vmatpush1.bf16.msra.mxu0 0
  %2782 = vmatprep.mubr.bf16.mxu0 0
  %2783 = vmatmul.mubr.bf16.gmra.mrb[0].mxu0 %v2576
  %v2784 = vpop.f32.mrb[0].mxu0
  %v2785 = vadd.f32 %v2697, %v2784
  %v2786 = vpop.f32.mrb[0].mxu0
  %v2787 = vpop.f32.mrb[0].mxu0
  %v2788 = vpop.f32.mrb[0].mxu0
  %2789 = vdwg.mxu0
  %s2790 = scalar_lea.vmem %s5, 128
  %v2791 = vld [vmem:[%s2790] sm:$0xf]
  %v2792 = vld [vmem:[%s2790 + $0x4] sm:$0xf]
  %v2793 = vld [vmem:[%s2790 + $0x8] sm:$0xf]
  %v2794 = vld [vmem:[%s2790 + $0xc] sm:$0xf]
  %v2795 = vld [vmem:[%s2790 + $0x10] sm:$0xf]
  %v2796 = vld [vmem:[%s2790 + $0x14] sm:$0xf]
  %v2797 = vld [vmem:[%s2790 + $0x18] sm:$0xf]
  %v2798 = vld [vmem:[%s2790 + $0x1c] sm:$0xf]
  %v2799 = vld [vmem:[%s2790 + $0x20] sm:$0xf]
  %v2800 = vld [vmem:[%s2790 + $0x24] sm:$0xf]
  %v2801 = vld [vmem:[%s2790 + $0x28] sm:$0xf]
  %v2802 = vld [vmem:[%s2790 + $0x2c] sm:$0xf]
  %v2803 = vld [vmem:[%s2790 + $0x30] sm:$0xf]
  %v2804 = vld [vmem:[%s2790 + $0x34] sm:$0xf]
  %v2805 = vld [vmem:[%s2790 + $0x38] sm:$0xf]
  %v2806 = vld [vmem:[%s2790 + $0x3c] sm:$0xf]
  %v2807 = vrot.slane %v2576, 2
  %v2825 = vunpack.c.l.b16 %v2791
  %v2826 = vunpack.c.l.b16 %v2792
  %v2827 = vunpack.c.l.b16 %v2793
  %v2828 = vunpack.c.l.b16 %v2794
  %v2829 = vunpack.c.l.b16 %v2795
  %v2830 = vunpack.c.l.b16 %v2796
  %v2831 = vunpack.c.l.b16 %v2797
  %v2832 = vunpack.c.l.b16 %v2798
  %v2833 = vunpack.c.l.b16 %v2799
  %v2834 = vunpack.c.l.b16 %v2800
  %v2835 = vunpack.c.l.b16 %v2801
  %v2836 = vunpack.c.l.b16 %v2802
  %v2837 = vunpack.c.l.b16 %v2803
  %v2838 = vunpack.c.l.b16 %v2804
  %v2839 = vunpack.c.l.b16 %v2805
  %v2840 = vunpack.c.l.b16 %v2806
  %v2841 = vpack.c.b16 %v2826, %v2825
  %v2842 = vpack.c.b16 %v2828, %v2827
  %v2843 = vpack.c.b16 %v2830, %v2829
  %v2844 = vpack.c.b16 %v2832, %v2831
  %v2845 = vpack.c.b16 %v2834, %v2833
  %v2846 = vpack.c.b16 %v2836, %v2835
  %v2847 = vpack.c.b16 %v2838, %v2837
  %v2848 = vpack.c.b16 %v2840, %v2839
  %2857 = vmatprep.subr.bf16.mxu0 0
  %2858 = vmatpush1.bf16.msra.mxu0 %v2841
  %2859 = vmatprep.subr.bf16.mxu0 0
  %2860 = vmatpush1.bf16.msra.mxu0 %v2842
  %2861 = vmatprep.subr.bf16.mxu0 0
  %2862 = vmatpush1.bf16.msra.mxu0 %v2843
  %2863 = vmatprep.subr.bf16.mxu0 0
  %2864 = vmatpush1.bf16.msra.mxu0 %v2844
  %2865 = vmatprep.subr.bf16.mxu0 0
  %2866 = vmatpush1.bf16.msra.mxu0 %v2845
  %2867 = vmatprep.subr.bf16.mxu0 0
  %2868 = vmatpush1.bf16.msra.mxu0 %v2846
  %2869 = vmatprep.subr.bf16.mxu0 0
  %2870 = vmatpush1.bf16.msra.mxu0 %v2847
  %2871 = vmatprep.subr.bf16.mxu0 0
  %2872 = vmatpush1.bf16.msra.mxu0 %v2848
  %2873 = vmatprep.subr.bf16.mxu0 0
  %2874 = vmatpush1.bf16.msra.mxu0 0
  %2875 = vmatprep.subr.bf16.mxu0 0
  %2876 = vmatpush1.bf16.msra.mxu0 0
  %2877 = vmatprep.subr.bf16.mxu0 0
  %2878 = vmatpush1.bf16.msra.mxu0 0
  %2879 = vmatprep.subr.bf16.mxu0 0
  %2880 = vmatpush1.bf16.msra.mxu0 0
  %2881 = vmatprep.subr.bf16.mxu0 0
  %2882 = vmatpush1.bf16.msra.mxu0 0
  %2883 = vmatprep.subr.bf16.mxu0 0
  %2884 = vmatpush1.bf16.msra.mxu0 0
  %2885 = vmatprep.subr.bf16.mxu0 0
  %2886 = vmatpush1.bf16.msra.mxu0 0
  %2887 = vmatprep.subr.bf16.mxu0 0
  %2888 = vmatpush1.bf16.msra.mxu0 0
  %2889 = vmatprep.mubr.bf16.mxu0 0
  %2890 = vmatmul.mubr.bf16.gmra.mrb[0].mxu0 %v2807
  %v2891 = vpop.f32.mrb[0].mxu0
  %v2892 = vadd.f32 0.0, %v2891
  %v2893 = vpop.f32.mrb[0].mxu0
  %v2894 = vpop.f32.mrb[0].mxu0
  %v2895 = vpop.f32.mrb[0].mxu0
  %2896 = vdwg.mxu0
  %v2897 = vadd.f32 %v2785, %v2892
  %s2898 = scalar_lea.vmem %s5, 192
  %v2899 = vld [vmem:[%s2898] sm:$0xf]
  %v2900 = vld [vmem:[%s2898 + $0x4] sm:$0xf]
  %v2901 = vld [vmem:[%s2898 + $0x8] sm:$0xf]
  %v2902 = vld [vmem:[%s2898 + $0xc] sm:$0xf]
  %v2903 = vld [vmem:[%s2898 + $0x10] sm:$0xf]
  %v2904 = vld [vmem:[%s2898 + $0x14] sm:$0xf]
  %v2905 = vld [vmem:[%s2898 + $0x18] sm:$0xf]
  %v2906 = vld [vmem:[%s2898 + $0x1c] sm:$0xf]
  %v2907 = vld [vmem:[%s2898 + $0x20] sm:$0xf]
  %v2908 = vld [vmem:[%s2898 + $0x24] sm:$0xf]
  %v2909 = vld [vmem:[%s2898 + $0x28] sm:$0xf]
  %v2910 = vld [vmem:[%s2898 + $0x2c] sm:$0xf]
  %v2911 = vld [vmem:[%s2898 + $0x30] sm:$0xf]
  %v2912 = vld [vmem:[%s2898 + $0x34] sm:$0xf]
  %v2913 = vld [vmem:[%s2898 + $0x38] sm:$0xf]
  %v2914 = vld [vmem:[%s2898 + $0x3c] sm:$0xf]
  %v2915 = vrot.slane %v2576, 3
  %v2933 = vunpack.c.l.b16 %v2899
  %v2934 = vunpack.c.l.b16 %v2900
  %v2935 = vunpack.c.l.b16 %v2901
  %v2936 = vunpack.c.l.b16 %v2902
  %v2937 = vunpack.c.l.b16 %v2903
  %v2938 = vunpack.c.l.b16 %v2904
  %v2939 = vunpack.c.l.b16 %v2905
  %v2940 = vunpack.c.l.b16 %v2906
  %v2941 = vunpack.c.l.b16 %v2907
  %v2942 = vunpack.c.l.b16 %v2908
  %v2943 = vunpack.c.l.b16 %v2909
  %v2944 = vunpack.c.l.b16 %v2910
  %v2945 = vunpack.c.l.b16 %v2911
  %v2946 = vunpack.c.l.b16 %v2912
  %v2947 = vunpack.c.l.b16 %v2913
  %v2948 = vunpack.c.l.b16 %v2914
  %v2949 = vpack.c.b16 %v2934, %v2933
  %v2950 = vpack.c.b16 %v2936, %v2935
  %v2951 = vpack.c.b16 %v2938, %v2937
  %v2952 = vpack.c.b16 %v2940, %v2939
  %v2953 = vpack.c.b16 %v2942, %v2941
  %v2954 = vpack.c.b16 %v2944, %v2943
  %v2955 = vpack.c.b16 %v2946, %v2945
  %v2956 = vpack.c.b16 %v2948, %v2947
  %2965 = vmatprep.subr.bf16.mxu0 0
  %2966 = vmatpush1.bf16.msra.mxu0 %v2949
  %2967 = vmatprep.subr.bf16.mxu0 0
  %2968 = vmatpush1.bf16.msra.mxu0 %v2950
  %2969 = vmatprep.subr.bf16.mxu0 0
  %2970 = vmatpush1.bf16.msra.mxu0 %v2951
  %2971 = vmatprep.subr.bf16.mxu0 0
  %2972 = vmatpush1.bf16.msra.mxu0 %v2952
  %2973 = vmatprep.subr.bf16.mxu0 0
  %2974 = vmatpush1.bf16.msra.mxu0 %v2953
  %2975 = vmatprep.subr.bf16.mxu0 0
  %2976 = vmatpush1.bf16.msra.mxu0 %v2954
  %2977 = vmatprep.subr.bf16.mxu0 0
  %2978 = vmatpush1.bf16.msra.mxu0 %v2955
  %2979 = vmatprep.subr.bf16.mxu0 0
  %2980 = vmatpush1.bf16.msra.mxu0 %v2956
  %2981 = vmatprep.subr.bf16.mxu0 0
  %2982 = vmatpush1.bf16.msra.mxu0 0
  %2983 = vmatprep.subr.bf16.mxu0 0
  %2984 = vmatpush1.bf16.msra.mxu0 0
  %2985 = vmatprep.subr.bf16.mxu0 0
  %2986 = vmatpush1.bf16.msra.mxu0 0
  %2987 = vmatprep.subr.bf16.mxu0 0
  %2988 = vmatpush1.bf16.msra.mxu0 0
  %2989 = vmatprep.subr.bf16.mxu0 0
  %2990 = vmatpush1.bf16.msra.mxu0 0
  %2991 = vmatprep.subr.bf16.mxu0 0
  %2992 = vmatpush1.bf16.msra.mxu0 0
  %2993 = vmatprep.subr.bf16.mxu0 0
  %2994 = vmatpush1.bf16.msra.mxu0 0
  %2995 = vmatprep.subr.bf16.mxu0 0
  %2996 = vmatpush1.bf16.msra.mxu0 0
  %2997 = vmatprep.mubr.bf16.mxu0 0
  %2998 = vmatmul.mubr.bf16.gmra.mrb[0].mxu0 %v2915
  %v2999 = vpop.f32.mrb[0].mxu0
  %v3000 = vadd.f32 0.0, %v2999
  %v3001 = vpop.f32.mrb[0].mxu0
  %v3002 = vpop.f32.mrb[0].mxu0
  %v3003 = vpop.f32.mrb[0].mxu0
  %3004 = vdwg.mxu0
  %v3005 = vadd.f32 %v2897, %v3000
  %s3006 = scalar_lea.vmem %s5, 256
  %v3007 = vld [vmem:[%s3006] sm:$0xf]
  %v3008 = vld [vmem:[%s3006 + $0x4] sm:$0xf]
  %v3009 = vld [vmem:[%s3006 + $0x8] sm:$0xf]
  %v3010 = vld [vmem:[%s3006 + $0xc] sm:$0xf]
  %v3011 = vld [vmem:[%s3006 + $0x10] sm:$0xf]
  %v3012 = vld [vmem:[%s3006 + $0x14] sm:$0xf]
  %v3013 = vld [vmem:[%s3006 + $0x18] sm:$0xf]
  %v3014 = vld [vmem:[%s3006 + $0x1c] sm:$0xf]
  %v3015 = vld [vmem:[%s3006 + $0x20] sm:$0xf]
  %v3016 = vld [vmem:[%s3006 + $0x24] sm:$0xf]
  %v3017 = vld [vmem:[%s3006 + $0x28] sm:$0xf]
  %v3018 = vld [vmem:[%s3006 + $0x2c] sm:$0xf]
  %v3019 = vld [vmem:[%s3006 + $0x30] sm:$0xf]
  %v3020 = vld [vmem:[%s3006 + $0x34] sm:$0xf]
  %v3021 = vld [vmem:[%s3006 + $0x38] sm:$0xf]
  %v3022 = vld [vmem:[%s3006 + $0x3c] sm:$0xf]
  %v3023 = vrot.slane %v2576, 4
  %v3041 = vunpack.c.l.b16 %v3007
  %v3042 = vunpack.c.l.b16 %v3008
  %v3043 = vunpack.c.l.b16 %v3009
  %v3044 = vunpack.c.l.b16 %v3010
  %v3045 = vunpack.c.l.b16 %v3011
  %v3046 = vunpack.c.l.b16 %v3012
  %v3047 = vunpack.c.l.b16 %v3013
  %v3048 = vunpack.c.l.b16 %v3014
  %v3049 = vunpack.c.l.b16 %v3015
  %v3050 = vunpack.c.l.b16 %v3016
  %v3051 = vunpack.c.l.b16 %v3017
  %v3052 = vunpack.c.l.b16 %v3018
  %v3053 = vunpack.c.l.b16 %v3019
  %v3054 = vunpack.c.l.b16 %v3020
  %v3055 = vunpack.c.l.b16 %v3021
  %v3056 = vunpack.c.l.b16 %v3022
  %v3057 = vpack.c.b16 %v3042, %v3041
  %v3058 = vpack.c.b16 %v3044, %v3043
  %v3059 = vpack.c.b16 %v3046, %v3045
  %v3060 = vpack.c.b16 %v3048, %v3047
  %v3061 = vpack.c.b16 %v3050, %v3049
  %v3062 = vpack.c.b16 %v3052, %v3051
  %v3063 = vpack.c.b16 %v3054, %v3053
  %v3064 = vpack.c.b16 %v3056, %v3055
  %3073 = vmatprep.subr.bf16.mxu0 0
  %3074 = vmatpush1.bf16.msra.mxu0 %v3057
  %3075 = vmatprep.subr.bf16.mxu0 0
  %3076 = vmatpush1.bf16.msra.mxu0 %v3058
  %3077 = vmatprep.subr.bf16.mxu0 0
  %3078 = vmatpush1.bf16.msra.mxu0 %v3059
  %3079 = vmatprep.subr.bf16.mxu0 0
  %3080 = vmatpush1.bf16.msra.mxu0 %v3060
  %3081 = vmatprep.subr.bf16.mxu0 0
  %3082 = vmatpush1.bf16.msra.mxu0 %v3061
  %3083 = vmatprep.subr.bf16.mxu0 0
  %3084 = vmatpush1.bf16.msra.mxu0 %v3062
  %3085 = vmatprep.subr.bf16.mxu0 0
  %3086 = vmatpush1.bf16.msra.mxu0 %v3063
  %3087 = vmatprep.subr.bf16.mxu0 0
  %3088 = vmatpush1.bf16.msra.mxu0 %v3064
  %3089 = vmatprep.subr.bf16.mxu0 0
  %3090 = vmatpush1.bf16.msra.mxu0 0
  %3091 = vmatprep.subr.bf16.mxu0 0
  %3092 = vmatpush1.bf16.msra.mxu0 0
  %3093 = vmatprep.subr.bf16.mxu0 0
  %3094 = vmatpush1.bf16.msra.mxu0 0
  %3095 = vmatprep.subr.bf16.mxu0 0
  %3096 = vmatpush1.bf16.msra.mxu0 0
  %3097 = vmatprep.subr.bf16.mxu0 0
  %3098 = vmatpush1.bf16.msra.mxu0 0
  %3099 = vmatprep.subr.bf16.mxu0 0
  %3100 = vmatpush1.bf16.msra.mxu0 0
  %3101 = vmatprep.subr.bf16.mxu0 0
  %3102 = vmatpush1.bf16.msra.mxu0 0
  %3103 = vmatprep.subr.bf16.mxu0 0
  %3104 = vmatpush1.bf16.msra.mxu0 0
  %3105 = vmatprep.mubr.bf16.mxu0 0
  %3106 = vmatmul.mubr.bf16.gmra.mrb[0].mxu0 %v3023
  %v3107 = vpop.f32.mrb[0].mxu0
  %v3108 = vadd.f32 0.0, %v3107
  %v3109 = vpop.f32.mrb[0].mxu0
  %v3110 = vpop.f32.mrb[0].mxu0
  %v3111 = vpop.f32.mrb[0].mxu0
  %3112 = vdwg.mxu0
  %v3113 = vadd.f32 %v3005, %v3108
  %s3114 = scalar_lea.vmem %s5, 320
  %v3115 = vld [vmem:[%s3114] sm:$0xf]
  %v3116 = vld [vmem:[%s3114 + $0x4] sm:$0xf]
  %v3117 = vld [vmem:[%s3114 + $0x8] sm:$0xf]
  %v3118 = vld [vmem:[%s3114 + $0xc] sm:$0xf]
  %v3119 = vld [vmem:[%s3114 + $0x10] sm:$0xf]
  %v3120 = vld [vmem:[%s3114 + $0x14] sm:$0xf]
  %v3121 = vld [vmem:[%s3114 + $0x18] sm:$0xf]
  %v3122 = vld [vmem:[%s3114 + $0x1c] sm:$0xf]
  %v3123 = vld [vmem:[%s3114 + $0x20] sm:$0xf]
  %v3124 = vld [vmem:[%s3114 + $0x24] sm:$0xf]
  %v3125 = vld [vmem:[%s3114 + $0x28] sm:$0xf]
  %v3126 = vld [vmem:[%s3114 + $0x2c] sm:$0xf]
  %v3127 = vld [vmem:[%s3114 + $0x30] sm:$0xf]
  %v3128 = vld [vmem:[%s3114 + $0x34] sm:$0xf]
  %v3129 = vld [vmem:[%s3114 + $0x38] sm:$0xf]
  %v3130 = vld [vmem:[%s3114 + $0x3c] sm:$0xf]
  %v3131 = vrot.slane %v2576, 5
  %v3149 = vunpack.c.l.b16 %v3115
  %v3150 = vunpack.c.l.b16 %v3116
  %v3151 = vunpack.c.l.b16 %v3117
  %v3152 = vunpack.c.l.b16 %v3118
  %v3153 = vunpack.c.l.b16 %v3119
  %v3154 = vunpack.c.l.b16 %v3120
  %v3155 = vunpack.c.l.b16 %v3121
  %v3156 = vunpack.c.l.b16 %v3122
  %v3157 = vunpack.c.l.b16 %v3123
  %v3158 = vunpack.c.l.b16 %v3124
  %v3159 = vunpack.c.l.b16 %v3125
  %v3160 = vunpack.c.l.b16 %v3126
  %v3161 = vunpack.c.l.b16 %v3127
  %v3162 = vunpack.c.l.b16 %v3128
  %v3163 = vunpack.c.l.b16 %v3129
  %v3164 = vunpack.c.l.b16 %v3130
  %v3165 = vpack.c.b16 %v3150, %v3149
  %v3166 = vpack.c.b16 %v3152, %v3151
  %v3167 = vpack.c.b16 %v3154, %v3153
  %v3168 = vpack.c.b16 %v3156, %v3155
  %v3169 = vpack.c.b16 %v3158, %v3157
  %v3170 = vpack.c.b16 %v3160, %v3159
  %v3171 = vpack.c.b16 %v3162, %v3161
  %v3172 = vpack.c.b16 %v3164, %v3163
  %3181 = vmatprep.subr.bf16.mxu0 0
  %3182 = vmatpush1.bf16.msra.mxu0 %v3165
  %3183 = vmatprep.subr.bf16.mxu0 0
  %3184 = vmatpush1.bf16.msra.mxu0 %v3166
  %3185 = vmatprep.subr.bf16.mxu0 0
  %3186 = vmatpush1.bf16.msra.mxu0 %v3167
  %3187 = vmatprep.subr.bf16.mxu0 0
  %3188 = vmatpush1.bf16.msra.mxu0 %v3168
  %3189 = vmatprep.subr.bf16.mxu0 0
  %3190 = vmatpush1.bf16.msra.mxu0 %v3169
  %3191 = vmatprep.subr.bf16.mxu0 0
  %3192 = vmatpush1.bf16.msra.mxu0 %v3170
  %3193 = vmatprep.subr.bf16.mxu0 0
  %3194 = vmatpush1.bf16.msra.mxu0 %v3171
  %3195 = vmatprep.subr.bf16.mxu0 0
  %3196 = vmatpush1.bf16.msra.mxu0 %v3172
  %3197 = vmatprep.subr.bf16.mxu0 0
  %3198 = vmatpush1.bf16.msra.mxu0 0
  %3199 = vmatprep.subr.bf16.mxu0 0
  %3200 = vmatpush1.bf16.msra.mxu0 0
  %3201 = vmatprep.subr.bf16.mxu0 0
  %3202 = vmatpush1.bf16.msra.mxu0 0
  %3203 = vmatprep.subr.bf16.mxu0 0
  %3204 = vmatpush1.bf16.msra.mxu0 0
  %3205 = vmatprep.subr.bf16.mxu0 0
  %3206 = vmatpush1.bf16.msra.mxu0 0
  %3207 = vmatprep.subr.bf16.mxu0 0
  %3208 = vmatpush1.bf16.msra.mxu0 0
  %3209 = vmatprep.subr.bf16.mxu0 0
  %3210 = vmatpush1.bf16.msra.mxu0 0
  %3211 = vmatprep.subr.bf16.mxu0 0
  %3212 = vmatpush1.bf16.msra.mxu0 0
  %3213 = vmatprep.mubr.bf16.mxu0 0
  %3214 = vmatmul.mubr.bf16.gmra.mrb[0].mxu0 %v3131
  %v3215 = vpop.f32.mrb[0].mxu0
  %v3216 = vadd.f32 0.0, %v3215
  %v3217 = vpop.f32.mrb[0].mxu0
  %v3218 = vpop.f32.mrb[0].mxu0
  %v3219 = vpop.f32.mrb[0].mxu0
  %3220 = vdwg.mxu0
  %v3221 = vadd.f32 %v3113, %v3216
  %s3222 = scalar_lea.vmem %s5, 384
  %v3223 = vld [vmem:[%s3222] sm:$0xf]
  %v3224 = vld [vmem:[%s3222 + $0x4] sm:$0xf]
  %v3225 = vld [vmem:[%s3222 + $0x8] sm:$0xf]
  %v3226 = vld [vmem:[%s3222 + $0xc] sm:$0xf]
  %v3227 = vld [vmem:[%s3222 + $0x10] sm:$0xf]
  %v3228 = vld [vmem:[%s3222 + $0x14] sm:$0xf]
  %v3229 = vld [vmem:[%s3222 + $0x18] sm:$0xf]
  %v3230 = vld [vmem:[%s3222 + $0x1c] sm:$0xf]
  %v3231 = vld [vmem:[%s3222 + $0x20] sm:$0xf]
  %v3232 = vld [vmem:[%s3222 + $0x24] sm:$0xf]
  %v3233 = vld [vmem:[%s3222 + $0x28] sm:$0xf]
  %v3234 = vld [vmem:[%s3222 + $0x2c] sm:$0xf]
  %v3235 = vld [vmem:[%s3222 + $0x30] sm:$0xf]
  %v3236 = vld [vmem:[%s3222 + $0x34] sm:$0xf]
  %v3237 = vld [vmem:[%s3222 + $0x38] sm:$0xf]
  %v3238 = vld [vmem:[%s3222 + $0x3c] sm:$0xf]
  %v3239 = vrot.slane %v2576, 6
  %v3257 = vunpack.c.l.b16 %v3223
  %v3258 = vunpack.c.l.b16 %v3224
  %v3259 = vunpack.c.l.b16 %v3225
  %v3260 = vunpack.c.l.b16 %v3226
  %v3261 = vunpack.c.l.b16 %v3227
  %v3262 = vunpack.c.l.b16 %v3228
  %v3263 = vunpack.c.l.b16 %v3229
  %v3264 = vunpack.c.l.b16 %v3230
  %v3265 = vunpack.c.l.b16 %v3231
  %v3266 = vunpack.c.l.b16 %v3232
  %v3267 = vunpack.c.l.b16 %v3233
  %v3268 = vunpack.c.l.b16 %v3234
  %v3269 = vunpack.c.l.b16 %v3235
  %v3270 = vunpack.c.l.b16 %v3236
  %v3271 = vunpack.c.l.b16 %v3237
  %v3272 = vunpack.c.l.b16 %v3238
  %v3273 = vpack.c.b16 %v3258, %v3257
  %v3274 = vpack.c.b16 %v3260, %v3259
  %v3275 = vpack.c.b16 %v3262, %v3261
  %v3276 = vpack.c.b16 %v3264, %v3263
  %v3277 = vpack.c.b16 %v3266, %v3265
  %v3278 = vpack.c.b16 %v3268, %v3267
  %v3279 = vpack.c.b16 %v3270, %v3269
  %v3280 = vpack.c.b16 %v3272, %v3271
  %3289 = vmatprep.subr.bf16.mxu0 0
  %3290 = vmatpush1.bf16.msra.mxu0 %v3273
  %3291 = vmatprep.subr.bf16.mxu0 0
  %3292 = vmatpush1.bf16.msra.mxu0 %v3274
  %3293 = vmatprep.subr.bf16.mxu0 0
  %3294 = vmatpush1.bf16.msra.mxu0 %v3275
  %3295 = vmatprep.subr.bf16.mxu0 0
  %3296 = vmatpush1.bf16.msra.mxu0 %v3276
  %3297 = vmatprep.subr.bf16.mxu0 0
  %3298 = vmatpush1.bf16.msra.mxu0 %v3277
  %3299 = vmatprep.subr.bf16.mxu0 0
  %3300 = vmatpush1.bf16.msra.mxu0 %v3278
  %3301 = vmatprep.subr.bf16.mxu0 0
  %3302 = vmatpush1.bf16.msra.mxu0 %v3279
  %3303 = vmatprep.subr.bf16.mxu0 0
  %3304 = vmatpush1.bf16.msra.mxu0 %v3280
  %3305 = vmatprep.subr.bf16.mxu0 0
  %3306 = vmatpush1.bf16.msra.mxu0 0
  %3307 = vmatprep.subr.bf16.mxu0 0
  %3308 = vmatpush1.bf16.msra.mxu0 0
  %3309 = vmatprep.subr.bf16.mxu0 0
  %3310 = vmatpush1.bf16.msra.mxu0 0
  %3311 = vmatprep.subr.bf16.mxu0 0
  %3312 = vmatpush1.bf16.msra.mxu0 0
  %3313 = vmatprep.subr.bf16.mxu0 0
  %3314 = vmatpush1.bf16.msra.mxu0 0
  %3315 = vmatprep.subr.bf16.mxu0 0
  %3316 = vmatpush1.bf16.msra.mxu0 0
  %3317 = vmatprep.subr.bf16.mxu0 0
  %3318 = vmatpush1.bf16.msra.mxu0 0
  %3319 = vmatprep.subr.bf16.mxu0 0
  %3320 = vmatpush1.bf16.msra.mxu0 0
  %3321 = vmatprep.mubr.bf16.mxu0 0
  %3322 = vmatmul.mubr.bf16.gmra.mrb[0].mxu0 %v3239
  %v3323 = vpop.f32.mrb[0].mxu0
  %v3324 = vadd.f32 0.0, %v3323
  %v3325 = vpop.f32.mrb[0].mxu0
  %v3326 = vpop.f32.mrb[0].mxu0
  %v3327 = vpop.f32.mrb[0].mxu0
  %3328 = vdwg.mxu0
  %v3329 = vadd.f32 %v3221, %v3324
  %s3330 = scalar_lea.vmem %s5, 448
  %v3331 = vld [vmem:[%s3330] sm:$0xf]
  %v3332 = vld [vmem:[%s3330 + $0x4] sm:$0xf]
  %v3333 = vld [vmem:[%s3330 + $0x8] sm:$0xf]
  %v3334 = vld [vmem:[%s3330 + $0xc] sm:$0xf]
  %v3335 = vld [vmem:[%s3330 + $0x10] sm:$0xf]
  %v3336 = vld [vmem:[%s3330 + $0x14] sm:$0xf]
  %v3337 = vld [vmem:[%s3330 + $0x18] sm:$0xf]
  %v3338 = vld [vmem:[%s3330 + $0x1c] sm:$0xf]
  %v3339 = vld [vmem:[%s3330 + $0x20] sm:$0xf]
  %v3340 = vld [vmem:[%s3330 + $0x24] sm:$0xf]
  %v3341 = vld [vmem:[%s3330 + $0x28] sm:$0xf]
  %v3342 = vld [vmem:[%s3330 + $0x2c] sm:$0xf]
  %v3343 = vld [vmem:[%s3330 + $0x30] sm:$0xf]
  %v3344 = vld [vmem:[%s3330 + $0x34] sm:$0xf]
  %v3345 = vld [vmem:[%s3330 + $0x38] sm:$0xf]
  %v3346 = vld [vmem:[%s3330 + $0x3c] sm:$0xf]
  %v3347 = vrot.slane %v2576, 7
  %v3365 = vunpack.c.l.b16 %v3331
  %v3366 = vunpack.c.l.b16 %v3332
  %v3367 = vunpack.c.l.b16 %v3333
  %v3368 = vunpack.c.l.b16 %v3334
  %v3369 = vunpack.c.l.b16 %v3335
  %v3370 = vunpack.c.l.b16 %v3336
  %v3371 = vunpack.c.l.b16 %v3337
  %v3372 = vunpack.c.l.b16 %v3338
  %v3373 = vunpack.c.l.b16 %v3339
  %v3374 = vunpack.c.l.b16 %v3340
  %v3375 = vunpack.c.l.b16 %v3341
  %v3376 = vunpack.c.l.b16 %v3342
  %v3377 = vunpack.c.l.b16 %v3343
  %v3378 = vunpack.c.l.b16 %v3344
  %v3379 = vunpack.c.l.b16 %v3345
  %v3380 = vunpack.c.l.b16 %v3346
  %v3381 = vpack.c.b16 %v3366, %v3365
  %v3382 = vpack.c.b16 %v3368, %v3367
  %v3383 = vpack.c.b16 %v3370, %v3369
  %v3384 = vpack.c.b16 %v3372, %v3371
  %v3385 = vpack.c.b16 %v3374, %v3373
  %v3386 = vpack.c.b16 %v3376, %v3375
  %v3387 = vpack.c.b16 %v3378, %v3377
  %v3388 = vpack.c.b16 %v3380, %v3379
  %3397 = vmatprep.subr.bf16.mxu0 0
  %3398 = vmatpush1.bf16.msra.mxu0 %v3381
  %3399 = vmatprep.subr.bf16.mxu0 0
  %3400 = vmatpush1.bf16.msra.mxu0 %v3382
  %3401 = vmatprep.subr.bf16.mxu0 0
  %3402 = vmatpush1.bf16.msra.mxu0 %v3383
  %3403 = vmatprep.subr.bf16.mxu0 0
  %3404 = vmatpush1.bf16.msra.mxu0 %v3384
  %3405 = vmatprep.subr.bf16.mxu0 0
  %3406 = vmatpush1.bf16.msra.mxu0 %v3385
  %3407 = vmatprep.subr.bf16.mxu0 0
  %3408 = vmatpush1.bf16.msra.mxu0 %v3386
  %3409 = vmatprep.subr.bf16.mxu0 0
  %3410 = vmatpush1.bf16.msra.mxu0 %v3387
  %3411 = vmatprep.subr.bf16.mxu0 0
  %3412 = vmatpush1.bf16.msra.mxu0 %v3388
  %3413 = vmatprep.subr.bf16.mxu0 0
  %3414 = vmatpush1.bf16.msra.mxu0 0
  %3415 = vmatprep.subr.bf16.mxu0 0
  %3416 = vmatpush1.bf16.msra.mxu0 0
  %3417 = vmatprep.subr.bf16.mxu0 0
  %3418 = vmatpush1.bf16.msra.mxu0 0
  %3419 = vmatprep.subr.bf16.mxu0 0
  %3420 = vmatpush1.bf16.msra.mxu0 0
  %3421 = vmatprep.subr.bf16.mxu0 0
  %3422 = vmatpush1.bf16.msra.mxu0 0
  %3423 = vmatprep.subr.bf16.mxu0 0
  %3424 = vmatpush1.bf16.msra.mxu0 0
  %3425 = vmatprep.subr.bf16.mxu0 0
  %3426 = vmatpush1.bf16.msra.mxu0 0
  %3427 = vmatprep.subr.bf16.mxu0 0
  %3428 = vmatpush1.bf16.msra.mxu0 0
  %3429 = vmatprep.mubr.bf16.mxu0 0
  %3430 = vmatmul.mubr.bf16.gmra.mrb[0].mxu0 %v3347
  %v3431 = vpop.f32.mrb[0].mxu0
  %v3432 = vadd.f32 0.0, %v3431
  %v3433 = vpop.f32.mrb[0].mxu0
  %v3434 = vpop.f32.mrb[0].mxu0
  %v3435 = vpop.f32.mrb[0].mxu0
  %3436 = vdwg.mxu0
  %v3437 = vadd.f32 %v3329, %v3432
  %s3438 = scalar_lea.vmem %s5, 512
  %v3439 = vld [vmem:[%s3438] sm:$0xf]
  %v3440 = vld [vmem:[%s3438 + $0x4] sm:$0xf]
  %v3441 = vld [vmem:[%s3438 + $0x8] sm:$0xf]
  %v3442 = vld [vmem:[%s3438 + $0xc] sm:$0xf]
  %v3443 = vld [vmem:[%s3438 + $0x10] sm:$0xf]
  %v3444 = vld [vmem:[%s3438 + $0x14] sm:$0xf]
  %v3445 = vld [vmem:[%s3438 + $0x18] sm:$0xf]
  %v3446 = vld [vmem:[%s3438 + $0x1c] sm:$0xf]
  %v3447 = vld [vmem:[%s3438 + $0x20] sm:$0xf]
  %v3448 = vld [vmem:[%s3438 + $0x24] sm:$0xf]
  %v3449 = vld [vmem:[%s3438 + $0x28] sm:$0xf]
  %v3450 = vld [vmem:[%s3438 + $0x2c] sm:$0xf]
  %v3451 = vld [vmem:[%s3438 + $0x30] sm:$0xf]
  %v3452 = vld [vmem:[%s3438 + $0x34] sm:$0xf]
  %v3453 = vld [vmem:[%s3438 + $0x38] sm:$0xf]
  %v3454 = vld [vmem:[%s3438 + $0x3c] sm:$0xf]
  %v3471 = vunpack.c.l.b16 %v3439
  %v3472 = vunpack.c.l.b16 %v3440
  %v3473 = vunpack.c.l.b16 %v3441
  %v3474 = vunpack.c.l.b16 %v3442
  %v3475 = vunpack.c.l.b16 %v3443
  %v3476 = vunpack.c.l.b16 %v3444
  %v3477 = vunpack.c.l.b16 %v3445
  %v3478 = vunpack.c.l.b16 %v3446
  %v3479 = vunpack.c.l.b16 %v3447
  %v3480 = vunpack.c.l.b16 %v3448
  %v3481 = vunpack.c.l.b16 %v3449
  %v3482 = vunpack.c.l.b16 %v3450
  %v3483 = vunpack.c.l.b16 %v3451
  %v3484 = vunpack.c.l.b16 %v3452
  %v3485 = vunpack.c.l.b16 %v3453
  %v3486 = vunpack.c.l.b16 %v3454
  %v3487 = vpack.c.b16 %v3472, %v3471
  %v3488 = vpack.c.b16 %v3474, %v3473
  %v3489 = vpack.c.b16 %v3476, %v3475
  %v3490 = vpack.c.b16 %v3478, %v3477
  %v3491 = vpack.c.b16 %v3480, %v3479
  %v3492 = vpack.c.b16 %v3482, %v3481
  %v3493 = vpack.c.b16 %v3484, %v3483
  %v3494 = vpack.c.b16 %v3486, %v3485
  %3503 = vmatprep.subr.bf16.mxu0 0
  %3504 = vmatpush1.bf16.msra.mxu0 %v3487
  %3505 = vmatprep.subr.bf16.mxu0 0
  %3506 = vmatpush1.bf16.msra.mxu0 %v3488
  %3507 = vmatprep.subr.bf16.mxu0 0
  %3508 = vmatpush1.bf16.msra.mxu0 %v3489
  %3509 = vmatprep.subr.bf16.mxu0 0
  %3510 = vmatpush1.bf16.msra.mxu0 %v3490
  %3511 = vmatprep.subr.bf16.mxu0 0
  %3512 = vmatpush1.bf16.msra.mxu0 %v3491
  %3513 = vmatprep.subr.bf16.mxu0 0
  %3514 = vmatpush1.bf16.msra.mxu0 %v3492
  %3515 = vmatprep.subr.bf16.mxu0 0
  %3516 = vmatpush1.bf16.msra.mxu0 %v3493
  %3517 = vmatprep.subr.bf16.mxu0 0
  %3518 = vmatpush1.bf16.msra.mxu0 %v3494
  %3519 = vmatprep.subr.bf16.mxu0 0
  %3520 = vmatpush1.bf16.msra.mxu0 0
  %3521 = vmatprep.subr.bf16.mxu0 0
  %3522 = vmatpush1.bf16.msra.mxu0 0
  %3523 = vmatprep.subr.bf16.mxu0 0
  %3524 = vmatpush1.bf16.msra.mxu0 0
  %3525 = vmatprep.subr.bf16.mxu0 0
  %3526 = vmatpush1.bf16.msra.mxu0 0
  %3527 = vmatprep.subr.bf16.mxu0 0
  %3528 = vmatpush1.bf16.msra.mxu0 0
  %3529 = vmatprep.subr.bf16.mxu0 0
  %3530 = vmatpush1.bf16.msra.mxu0 0
  %3531 = vmatprep.subr.bf16.mxu0 0
  %3532 = vmatpush1.bf16.msra.mxu0 0
  %3533 = vmatprep.subr.bf16.mxu0 0
  %3534 = vmatpush1.bf16.msra.mxu0 0
  %3535 = vmatprep.mubr.bf16.mxu0 0
  %3536 = vmatmul.mubr.bf16.gmra.mrb[0].mxu0 %v2577
  %v3537 = vpop.f32.mrb[0].mxu0
  %v3538 = vadd.f32 0.0, %v3537
  %v3539 = vpop.f32.mrb[0].mxu0
  %v3540 = vpop.f32.mrb[0].mxu0
  %v3541 = vpop.f32.mrb[0].mxu0
  %3542 = vdwg.mxu0
  %v3543 = vadd.f32 %v3437, %v3538
  %v3544 = vld [vmem:[%s6] sm:$0x1]
  %v3546 = vlaneseq
  %v3547 = vshrl.u32 %v3546, 7
  %v3548 = vsub.s32 0, %v3547
  %v3549 = vrot.slane %v3544, %v3548
  %v3551 = vadd.f32 %v3543, %v3549
  %v3552 = vmax.f32 %v3551, 0.0
  %v3553 = vpack.c.bf16 %v3552, %v3552
  %v3554 = vld [vmem:[%s7] sm:$0xff]
  %v3555 = vld [vmem:[%s7 + $0x8] sm:$0xff]
  %v3556 = vld [vmem:[%s7 + $0x10] sm:$0xff]
  %v3557 = vld [vmem:[%s7 + $0x18] sm:$0xff]
  %v3558 = vld [vmem:[%s7 + $0x20] sm:$0xff]
  %v3559 = vld [vmem:[%s7 + $0x28] sm:$0xff]
  %v3560 = vld [vmem:[%s7 + $0x30] sm:$0xff]
  %v3561 = vld [vmem:[%s7 + $0x38] sm:$0xff]
  %v3562 = vld [vmem:[%s7 + $0x40] sm:$0xff]
  %v3563 = vld [vmem:[%s7 + $0x48] sm:$0xff]
  %v3564 = vld [vmem:[%s7 + $0x50] sm:$0xff]
  %v3565 = vld [vmem:[%s7 + $0x58] sm:$0xff]
  %v3566 = vld [vmem:[%s7 + $0x60] sm:$0xff]
  %v3567 = vld [vmem:[%s7 + $0x68] sm:$0xff]
  %v3568 = vld [vmem:[%s7 + $0x70] sm:$0xff]
  %v3569 = vld [vmem:[%s7 + $0x78] sm:$0xff]
  %v3570 = vld [vmem:[%s7 + $0x80] sm:$0xff]
  %v3571 = vld [vmem:[%s7 + $0x88] sm:$0xff]
  %v3572 = vld [vmem:[%s7 + $0x90] sm:$0xff]
  %v3573 = vld [vmem:[%s7 + $0x98] sm:$0xff]
  %v3574 = vld [vmem:[%s7 + $0xa0] sm:$0xff]
  %v3575 = vld [vmem:[%s7 + $0xa8] sm:$0xff]
  %v3576 = vld [vmem:[%s7 + $0xb0] sm:$0xff]
  %v3577 = vld [vmem:[%s7 + $0xb8] sm:$0xff]
  %v3578 = vld [vmem:[%s7 + $0xc0] sm:$0xff]
  %v3579 = vld [vmem:[%s7 + $0xc8] sm:$0xff]
  %v3580 = vld [vmem:[%s7 + $0xd0] sm:$0xff]
  %v3581 = vld [vmem:[%s7 + $0xd8] sm:$0xff]
  %v3582 = vld [vmem:[%s7 + $0xe0] sm:$0xff]
  %v3583 = vld [vmem:[%s7 + $0xe8] sm:$0xff]
  %v3584 = vld [vmem:[%s7 + $0xf0] sm:$0xff]
  %v3585 = vld [vmem:[%s7 + $0xf8] sm:$0xff]
  %v3586 = vld [vmem:[%s7 + $0x100] sm:$0xff]
  %v3587 = vld [vmem:[%s7 + $0x108] sm:$0xff]
  %v3588 = vld [vmem:[%s7 + $0x110] sm:$0xff]
  %v3589 = vld [vmem:[%s7 + $0x118] sm:$0xff]
  %v3590 = vld [vmem:[%s7 + $0x120] sm:$0xff]
  %v3591 = vld [vmem:[%s7 + $0x128] sm:$0xff]
  %v3592 = vld [vmem:[%s7 + $0x130] sm:$0xff]
  %v3593 = vld [vmem:[%s7 + $0x138] sm:$0xff]
  %v3594 = vld [vmem:[%s7 + $0x140] sm:$0xff]
  %v3595 = vld [vmem:[%s7 + $0x148] sm:$0xff]
  %v3596 = vld [vmem:[%s7 + $0x150] sm:$0xff]
  %v3597 = vld [vmem:[%s7 + $0x158] sm:$0xff]
  %v3598 = vld [vmem:[%s7 + $0x160] sm:$0xff]
  %v3599 = vld [vmem:[%s7 + $0x168] sm:$0xff]
  %v3600 = vld [vmem:[%s7 + $0x170] sm:$0xff]
  %v3601 = vld [vmem:[%s7 + $0x178] sm:$0xff]
  %v3602 = vld [vmem:[%s7 + $0x180] sm:$0xff]
  %v3603 = vld [vmem:[%s7 + $0x188] sm:$0xff]
  %v3604 = vld [vmem:[%s7 + $0x190] sm:$0xff]
  %v3605 = vld [vmem:[%s7 + $0x198] sm:$0xff]
  %v3606 = vld [vmem:[%s7 + $0x1a0] sm:$0xff]
  %v3607 = vld [vmem:[%s7 + $0x1a8] sm:$0xff]
  %v3608 = vld [vmem:[%s7 + $0x1b0] sm:$0xff]
  %v3609 = vld [vmem:[%s7 + $0x1b8] sm:$0xff]
  %v3610 = vld [vmem:[%s7 + $0x1c0] sm:$0xff]
  %v3611 = vld [vmem:[%s7 + $0x1c8] sm:$0xff]
  %v3612 = vld [vmem:[%s7 + $0x1d0] sm:$0xff]
  %v3613 = vld [vmem:[%s7 + $0x1d8] sm:$0xff]
  %v3614 = vld [vmem:[%s7 + $0x1e0] sm:$0xff]
  %v3615 = vld [vmem:[%s7 + $0x1e8] sm:$0xff]
  %v3616 = vld [vmem:[%s7 + $0x1f0] sm:$0xff]
  %v3617 = vld [vmem:[%s7 + $0x1f8] sm:$0xff]
  %v3618 = vld [vmem:[%s8] sm:$0xff]
  %v3620 = vlaneseq
  %v3621 = vshrl.u32 %v3620, 7
  %v3622 = vsub.s32 0, %v3621
  %v3623 = vrot.slane %v3618, %v3622
  %v3624 = vlaneseq
  %v3625 = vshrl.u32 %v3624, 7
  %v3626 = vsub.s32 1, %v3625
  %v3627 = vrot.slane %v3618, %v3626
  %v3628 = vlaneseq
  %v3629 = vshrl.u32 %v3628, 7
  %v3630 = vsub.s32 2, %v3629
  %v3631 = vrot.slane %v3618, %v3630
  %v3632 = vlaneseq
  %v3633 = vshrl.u32 %v3632, 7
  %v3634 = vsub.s32 3, %v3633
  %v3635 = vrot.slane %v3618, %v3634
  %v3636 = vlaneseq
  %v3637 = vshrl.u32 %v3636, 7
  %v3638 = vsub.s32 4, %v3637
  %v3639 = vrot.slane %v3618, %v3638
  %v3640 = vlaneseq
  %v3641 = vshrl.u32 %v3640, 7
  %v3642 = vsub.s32 5, %v3641
  %v3643 = vrot.slane %v3618, %v3642
  %v3644 = vlaneseq
  %v3645 = vshrl.u32 %v3644, 7
  %v3646 = vsub.s32 6, %v3645
  %v3647 = vrot.slane %v3618, %v3646
  %v3648 = vlaneseq
  %v3649 = vshrl.u32 %v3648, 7
  %v3650 = vsub.s32 7, %v3649
  %v3651 = vrot.slane %v3618, %v3650
  %v3724 = vunpack.c.l.b16 %v3554
  %v3725 = vunpack.c.h.b16 %v3554
  %v3726 = vunpack.c.l.b16 %v3555
  %v3727 = vunpack.c.h.b16 %v3555
  %v3728 = vunpack.c.l.b16 %v3556
  %v3729 = vunpack.c.h.b16 %v3556
  %v3730 = vunpack.c.l.b16 %v3557
  %v3731 = vunpack.c.h.b16 %v3557
  %v3732 = vunpack.c.l.b16 %v3558
  %v3733 = vunpack.c.h.b16 %v3558
  %v3734 = vunpack.c.l.b16 %v3559
  %v3735 = vunpack.c.h.b16 %v3559
  %v3736 = vunpack.c.l.b16 %v3560
  %v3737 = vunpack.c.h.b16 %v3560
  %v3738 = vunpack.c.l.b16 %v3561
  %v3739 = vunpack.c.h.b16 %v3561
  %v3740 = vunpack.c.l.b16 %v3562
  %v3741 = vunpack.c.h.b16 %v3562
  %v3742 = vunpack.c.l.b16 %v3563
  %v3743 = vunpack.c.h.b16 %v3563
  %v3744 = vunpack.c.l.b16 %v3564
  %v3745 = vunpack.c.h.b16 %v3564
  %v3746 = vunpack.c.l.b16 %v3565
  %v3747 = vunpack.c.h.b16 %v3565
  %v3748 = vunpack.c.l.b16 %v3566
  %v3749 = vunpack.c.h.b16 %v3566
  %v3750 = vunpack.c.l.b16 %v3567
  %v3751 = vunpack.c.h.b16 %v3567
  %v3752 = vunpack.c.l.b16 %v3568
  %v3753 = vunpack.c.h.b16 %v3568
  %v3754 = vunpack.c.l.b16 %v3569
  %v3755 = vunpack.c.h.b16 %v3569
  %v3756 = vunpack.c.l.b16 %v3570
  %v3757 = vunpack.c.h.b16 %v3570
  %v3758 = vunpack.c.l.b16 %v3571
  %v3759 = vunpack.c.h.b16 %v3571
  %v3760 = vunpack.c.l.b16 %v3572
  %v3761 = vunpack.c.h.b16 %v3572
  %v3762 = vunpack.c.l.b16 %v3573
  %v3763 = vunpack.c.h.b16 %v3573
  %v3764 = vunpack.c.l.b16 %v3574
  %v3765 = vunpack.c.h.b16 %v3574
  %v3766 = vunpack.c.l.b16 %v3575
  %v3767 = vunpack.c.h.b16 %v3575
  %v3768 = vunpack.c.l.b16 %v3576
  %v3769 = vunpack.c.h.b16 %v3576
  %v3770 = vunpack.c.l.b16 %v3577
  %v3771 = vunpack.c.h.b16 %v3577
  %v3772 = vunpack.c.l.b16 %v3578
  %v3773 = vunpack.c.h.b16 %v3578
  %v3774 = vunpack.c.l.b16 %v3579
  %v3775 = vunpack.c.h.b16 %v3579
  %v3776 = vunpack.c.l.b16 %v3580
  %v3777 = vunpack.c.h.b16 %v3580
  %v3778 = vunpack.c.l.b16 %v3581
  %v3779 = vunpack.c.h.b16 %v3581
  %v3780 = vunpack.c.l.b16 %v3582
  %v3781 = vunpack.c.h.b16 %v3582
  %v3782 = vunpack.c.l.b16 %v3583
  %v3783 = vunpack.c.h.b16 %v3583
  %v3784 = vunpack.c.l.b16 %v3584
  %v3785 = vunpack.c.h.b16 %v3584
  %v3786 = vunpack.c.l.b16 %v3585
  %v3787 = vunpack.c.h.b16 %v3585
  %v3788 = vunpack.c.l.b16 %v3586
  %v3789 = vunpack.c.h.b16 %v3586
  %v3790 = vunpack.c.l.b16 %v3587
  %v3791 = vunpack.c.h.b16 %v3587
  %v3792 = vunpack.c.l.b16 %v3588
  %v3793 = vunpack.c.h.b16 %v3588
  %v3794 = vunpack.c.l.b16 %v3589
  %v3795 = vunpack.c.h.b16 %v3589
  %v3796 = vunpack.c.l.b16 %v3590
  %v3797 = vunpack.c.h.b16 %v3590
  %v3798 = vunpack.c.l.b16 %v3591
  %v3799 = vunpack.c.h.b16 %v3591
  %v3800 = vunpack.c.l.b16 %v3592
  %v3801 = vunpack.c.h.b16 %v3592
  %v3802 = vunpack.c.l.b16 %v3593
  %v3803 = vunpack.c.h.b16 %v3593
  %v3804 = vunpack.c.l.b16 %v3594
  %v3805 = vunpack.c.h.b16 %v3594
  %v3806 = vunpack.c.l.b16 %v3595
  %v3807 = vunpack.c.h.b16 %v3595
  %v3808 = vunpack.c.l.b16 %v3596
  %v3809 = vunpack.c.h.b16 %v3596
  %v3810 = vunpack.c.l.b16 %v3597
  %v3811 = vunpack.c.h.b16 %v3597
  %v3812 = vunpack.c.l.b16 %v3598
  %v3813 = vunpack.c.h.b16 %v3598
  %v3814 = vunpack.c.l.b16 %v3599
  %v3815 = vunpack.c.h.b16 %v3599
  %v3816 = vunpack.c.l.b16 %v3600
  %v3817 = vunpack.c.h.b16 %v3600
  %v3818 = vunpack.c.l.b16 %v3601
  %v3819 = vunpack.c.h.b16 %v3601
  %v3820 = vunpack.c.l.b16 %v3602
  %v3821 = vunpack.c.h.b16 %v3602
  %v3822 = vunpack.c.l.b16 %v3603
  %v3823 = vunpack.c.h.b16 %v3603
  %v3824 = vunpack.c.l.b16 %v3604
  %v3825 = vunpack.c.h.b16 %v3604
  %v3826 = vunpack.c.l.b16 %v3605
  %v3827 = vunpack.c.h.b16 %v3605
  %v3828 = vunpack.c.l.b16 %v3606
  %v3829 = vunpack.c.h.b16 %v3606
  %v3830 = vunpack.c.l.b16 %v3607
  %v3831 = vunpack.c.h.b16 %v3607
  %v3832 = vunpack.c.l.b16 %v3608
  %v3833 = vunpack.c.h.b16 %v3608
  %v3834 = vunpack.c.l.b16 %v3609
  %v3835 = vunpack.c.h.b16 %v3609
  %v3836 = vunpack.c.l.b16 %v3610
  %v3837 = vunpack.c.h.b16 %v3610
  %v3838 = vunpack.c.l.b16 %v3611
  %v3839 = vunpack.c.h.b16 %v3611
  %v3840 = vunpack.c.l.b16 %v3612
  %v3841 = vunpack.c.h.b16 %v3612
  %v3842 = vunpack.c.l.b16 %v3613
  %v3843 = vunpack.c.h.b16 %v3613
  %v3844 = vunpack.c.l.b16 %v3614
  %v3845 = vunpack.c.h.b16 %v3614
  %v3846 = vunpack.c.l.b16 %v3615
  %v3847 = vunpack.c.h.b16 %v3615
  %v3848 = vunpack.c.l.b16 %v3616
  %v3849 = vunpack.c.h.b16 %v3616
  %v3850 = vunpack.c.l.b16 %v3617
  %v3851 = vunpack.c.h.b16 %v3617
  %v3852 = vpack.c.b16 %v3732, %v3724
  %v3853 = vpack.c.b16 %v3733, %v3725
  %v3854 = vpack.c.b16 %v3734, %v3726
  %v3855 = vpack.c.b16 %v3735, %v3727
  %v3856 = vpack.c.b16 %v3736, %v3728
  %v3857 = vpack.c.b16 %v3737, %v3729
  %v3858 = vpack.c.b16 %v3738, %v3730
  %v3859 = vpack.c.b16 %v3739, %v3731
  %v3860 = vpack.c.b16 %v3748, %v3740
  %v3861 = vpack.c.b16 %v3749, %v3741
  %v3862 = vpack.c.b16 %v3750, %v3742
  %v3863 = vpack.c.b16 %v3751, %v3743
  %v3864 = vpack.c.b16 %v3752, %v3744
  %v3865 = vpack.c.b16 %v3753, %v3745
  %v3866 = vpack.c.b16 %v3754, %v3746
  %v3867 = vpack.c.b16 %v3755, %v3747
  %v3868 = vpack.c.b16 %v3764, %v3756
  %v3869 = vpack.c.b16 %v3765, %v3757
  %v3870 = vpack.c.b16 %v3766, %v3758
  %v3871 = vpack.c.b16 %v3767, %v3759
  %v3872 = vpack.c.b16 %v3768, %v3760
  %v3873 = vpack.c.b16 %v3769, %v3761
  %v3874 = vpack.c.b16 %v3770, %v3762
  %v3875 = vpack.c.b16 %v3771, %v3763
  %v3876 = vpack.c.b16 %v3780, %v3772
  %v3877 = vpack.c.b16 %v3781, %v3773
  %v3878 = vpack.c.b16 %v3782, %v3774
  %v3879 = vpack.c.b16 %v3783, %v3775
  %v3880 = vpack.c.b16 %v3784, %v3776
  %v3881 = vpack.c.b16 %v3785, %v3777
  %v3882 = vpack.c.b16 %v3786, %v3778
  %v3883 = vpack.c.b16 %v3787, %v3779
  %v3884 = vpack.c.b16 %v3796, %v3788
  %v3885 = vpack.c.b16 %v3797, %v3789
  %v3886 = vpack.c.b16 %v3798, %v3790
  %v3887 = vpack.c.b16 %v3799, %v3791
  %v3888 = vpack.c.b16 %v3800, %v3792
  %v3889 = vpack.c.b16 %v3801, %v3793
  %v3890 = vpack.c.b16 %v3802, %v3794
  %v3891 = vpack.c.b16 %v3803, %v3795
  %v3892 = vpack.c.b16 %v3812, %v3804
  %v3893 = vpack.c.b16 %v3813, %v3805
  %v3894 = vpack.c.b16 %v3814, %v3806
  %v3895 = vpack.c.b16 %v3815, %v3807
  %v3896 = vpack.c.b16 %v3816, %v3808
  %v3897 = vpack.c.b16 %v3817, %v3809
  %v3898 = vpack.c.b16 %v3818, %v3810
  %v3899 = vpack.c.b16 %v3819, %v3811
  %v3900 = vpack.c.b16 %v3828, %v3820
  %v3901 = vpack.c.b16 %v3829, %v3821
  %v3902 = vpack.c.b16 %v3830, %v3822
  %v3903 = vpack.c.b16 %v3831, %v3823
  %v3904 = vpack.c.b16 %v3832, %v3824
  %v3905 = vpack.c.b16 %v3833, %v3825
  %v3906 = vpack.c.b16 %v3834, %v3826
  %v3907 = vpack.c.b16 %v3835, %v3827
  %v3908 = vpack.c.b16 %v3844, %v3836
  %v3909 = vpack.c.b16 %v3845, %v3837
  %v3910 = vpack.c.b16 %v3846, %v3838
  %v3911 = vpack.c.b16 %v3847, %v3839
  %v3912 = vpack.c.b16 %v3848, %v3840
  %v3913 = vpack.c.b16 %v3849, %v3841
  %v3914 = vpack.c.b16 %v3850, %v3842
  %v3915 = vpack.c.b16 %v3851, %v3843
  %3980 = vmatprep.subr.bf16.mxu0 %v3853
  %3981 = vmatpush1.bf16.msra.mxu0 %v3852
  %3982 = vmatprep.subr.bf16.mxu0 %v3861
  %3983 = vmatpush1.bf16.msra.mxu0 %v3860
  %3984 = vmatprep.subr.bf16.mxu0 %v3869
  %3985 = vmatpush1.bf16.msra.mxu0 %v3868
  %3986 = vmatprep.subr.bf16.mxu0 %v3877
  %3987 = vmatpush1.bf16.msra.mxu0 %v3876
  %3988 = vmatprep.subr.bf16.mxu0 %v3885
  %3989 = vmatpush1.bf16.msra.mxu0 %v3884
  %3990 = vmatprep.subr.bf16.mxu0 %v3893
  %3991 = vmatpush1.bf16.msra.mxu0 %v3892
  %3992 = vmatprep.subr.bf16.mxu0 %v3901
  %3993 = vmatpush1.bf16.msra.mxu0 %v3900
  %3994 = vmatprep.subr.bf16.mxu0 %v3909
  %3995 = vmatpush1.bf16.msra.mxu0 %v3908
  %3996 = vmatprep.subr.bf16.mxu0 0
  %3997 = vmatpush1.bf16.msra.mxu0 0
  %3998 = vmatprep.subr.bf16.mxu0 0
  %3999 = vmatpush1.bf16.msra.mxu0 0
  %4000 = vmatprep.subr.bf16.mxu0 0
  %4001 = vmatpush1.bf16.msra.mxu0 0
  %4002 = vmatprep.subr.bf16.mxu0 0
  %4003 = vmatpush1.bf16.msra.mxu0 0
  %4004 = vmatprep.subr.bf16.mxu0 0
  %4005 = vmatpush1.bf16.msra.mxu0 0
  %4006 = vmatprep.subr.bf16.mxu0 0
  %4007 = vmatpush1.bf16.msra.mxu0 0
  %4008 = vmatprep.subr.bf16.mxu0 0
  %4009 = vmatpush1.bf16.msra.mxu0 0
  %4010 = vmatprep.subr.bf16.mxu0 0
  %4011 = vmatpush1.bf16.msra.mxu0 0
  %4012 = vmatprep.mubr.bf16.mxu0 0
  %4013 = vmatmul.mubr.bf16.gmra.mrb[0].mxu0 %v3553
  %v4014 = vpop.f32.mrb[0].mxu0
  %v4015 = vadd.f32 %v3623, %v4014
  %v4016 = vpop.f32.mrb[0].mxu0
  %v4017 = vadd.f32 %v3627, %v4016
  %v4018 = vpop.f32.mrb[0].mxu0
  %v4019 = vpop.f32.mrb[0].mxu0
  %4020 = vdwg.mxu0
  %4021 = vmatprep.subr.bf16.mxu0 %v3855
  %4022 = vmatpush1.bf16.msra.mxu0 %v3854
  %4023 = vmatprep.subr.bf16.mxu0 %v3863
  %4024 = vmatpush1.bf16.msra.mxu0 %v3862
  %4025 = vmatprep.subr.bf16.mxu0 %v3871
  %4026 = vmatpush1.bf16.msra.mxu0 %v3870
  %4027 = vmatprep.subr.bf16.mxu0 %v3879
  %4028 = vmatpush1.bf16.msra.mxu0 %v3878
  %4029 = vmatprep.subr.bf16.mxu0 %v3887
  %4030 = vmatpush1.bf16.msra.mxu0 %v3886
  %4031 = vmatprep.subr.bf16.mxu0 %v3895
  %4032 = vmatpush1.bf16.msra.mxu0 %v3894
  %4033 = vmatprep.subr.bf16.mxu0 %v3903
  %4034 = vmatpush1.bf16.msra.mxu0 %v3902
  %4035 = vmatprep.subr.bf16.mxu0 %v3911
  %4036 = vmatpush1.bf16.msra.mxu0 %v3910
  %4037 = vmatprep.subr.bf16.mxu0 0
  %4038 = vmatpush1.bf16.msra.mxu0 0
  %4039 = vmatprep.subr.bf16.mxu0 0
  %4040 = vmatpush1.bf16.msra.mxu0 0
  %4041 = vmatprep.subr.bf16.mxu0 0
  %4042 = vmatpush1.bf16.msra.mxu0 0
  %4043 = vmatprep.subr.bf16.mxu0 0
  %4044 = vmatpush1.bf16.msra.mxu0 0
  %4045 = vmatprep.subr.bf16.mxu0 0
  %4046 = vmatpush1.bf16.msra.mxu0 0
  %4047 = vmatprep.subr.bf16.mxu0 0
  %4048 = vmatpush1.bf16.msra.mxu0 0
  %4049 = vmatprep.subr.bf16.mxu0 0
  %4050 = vmatpush1.bf16.msra.mxu0 0
  %4051 = vmatprep.subr.bf16.mxu0 0
  %4052 = vmatpush1.bf16.msra.mxu0 0
  %4053 = vmatprep.mubr.bf16.mxu0 0
  %4054 = vmatmul.mubr.bf16.gmra.mrb[0].mxu0 %v3553
  %v4055 = vpop.f32.mrb[0].mxu0
  %v4056 = vadd.f32 %v3631, %v4055
  %v4057 = vpop.f32.mrb[0].mxu0
  %v4058 = vadd.f32 %v3635, %v4057
  %v4059 = vpop.f32.mrb[0].mxu0
  %v4060 = vpop.f32.mrb[0].mxu0
  %4061 = vdwg.mxu0
  %4062 = vmatprep.subr.bf16.mxu0 %v3857
  %4063 = vmatpush1.bf16.msra.mxu0 %v3856
  %4064 = vmatprep.subr.bf16.mxu0 %v3865
  %4065 = vmatpush1.bf16.msra.mxu0 %v3864
  %4066 = vmatprep.subr.bf16.mxu0 %v3873
  %4067 = vmatpush1.bf16.msra.mxu0 %v3872
  %4068 = vmatprep.subr.bf16.mxu0 %v3881
  %4069 = vmatpush1.bf16.msra.mxu0 %v3880
  %4070 = vmatprep.subr.bf16.mxu0 %v3889
  %4071 = vmatpush1.bf16.msra.mxu0 %v3888
  %4072 = vmatprep.subr.bf16.mxu0 %v3897
  %4073 = vmatpush1.bf16.msra.mxu0 %v3896
  %4074 = vmatprep.subr.bf16.mxu0 %v3905
  %4075 = vmatpush1.bf16.msra.mxu0 %v3904
  %4076 = vmatprep.subr.bf16.mxu0 %v3913
  %4077 = vmatpush1.bf16.msra.mxu0 %v3912
  %4078 = vmatprep.subr.bf16.mxu0 0
  %4079 = vmatpush1.bf16.msra.mxu0 0
  %4080 = vmatprep.subr.bf16.mxu0 0
  %4081 = vmatpush1.bf16.msra.mxu0 0
  %4082 = vmatprep.subr.bf16.mxu0 0
  %4083 = vmatpush1.bf16.msra.mxu0 0
  %4084 = vmatprep.subr.bf16.mxu0 0
  %4085 = vmatpush1.bf16.msra.mxu0 0
  %4086 = vmatprep.subr.bf16.mxu0 0
  %4087 = vmatpush1.bf16.msra.mxu0 0
  %4088 = vmatprep.subr.bf16.mxu0 0
  %4089 = vmatpush1.bf16.msra.mxu0 0
  %4090 = vmatprep.subr.bf16.mxu0 0
  %4091 = vmatpush1.bf16.msra.mxu0 0
  %4092 = vmatprep.subr.bf16.mxu0 0
  %4093 = vmatpush1.bf16.msra.mxu0 0
  %4094 = vmatprep.mubr.bf16.mxu0 0
  %4095 = vmatmul.mubr.bf16.gmra.mrb[0].mxu0 %v3553
  %v4096 = vpop.f32.mrb[0].mxu0
  %v4097 = vadd.f32 %v3639, %v4096
  %v4098 = vpop.f32.mrb[0].mxu0
  %v4099 = vadd.f32 %v3643, %v4098
  %v4100 = vpop.f32.mrb[0].mxu0
  %v4101 = vpop.f32.mrb[0].mxu0
  %4102 = vdwg.mxu0
  %4103 = vmatprep.subr.bf16.mxu0 %v3859
  %4104 = vmatpush1.bf16.msra.mxu0 %v3858
  %4105 = vmatprep.subr.bf16.mxu0 %v3867
  %4106 = vmatpush1.bf16.msra.mxu0 %v3866
  %4107 = vmatprep.subr.bf16.mxu0 %v3875
  %4108 = vmatpush1.bf16.msra.mxu0 %v3874
  %4109 = vmatprep.subr.bf16.mxu0 %v3883
  %4110 = vmatpush1.bf16.msra.mxu0 %v3882
  %4111 = vmatprep.subr.bf16.mxu0 %v3891
  %4112 = vmatpush1.bf16.msra.mxu0 %v3890
  %4113 = vmatprep.subr.bf16.mxu0 %v3899
  %4114 = vmatpush1.bf16.msra.mxu0 %v3898
  %4115 = vmatprep.subr.bf16.mxu0 %v3907
  %4116 = vmatpush1.bf16.msra.mxu0 %v3906
  %4117 = vmatprep.subr.bf16.mxu0 %v3915
  %4118 = vmatpush1.bf16.msra.mxu0 %v3914
  %4119 = vmatprep.subr.bf16.mxu0 0
  %4120 = vmatpush1.bf16.msra.mxu0 0
  %4121 = vmatprep.subr.bf16.mxu0 0
  %4122 = vmatpush1.bf16.msra.mxu0 0
  %4123 = vmatprep.subr.bf16.mxu0 0
  %4124 = vmatpush1.bf16.msra.mxu0 0
  %4125 = vmatprep.subr.bf16.mxu0 0
  %4126 = vmatpush1.bf16.msra.mxu0 0
  %4127 = vmatprep.subr.bf16.mxu0 0
  %4128 = vmatpush1.bf16.msra.mxu0 0
  %4129 = vmatprep.subr.bf16.mxu0 0
  %4130 = vmatpush1.bf16.msra.mxu0 0
  %4131 = vmatprep.subr.bf16.mxu0 0
  %4132 = vmatpush1.bf16.msra.mxu0 0
  %4133 = vmatprep.subr.bf16.mxu0 0
  %4134 = vmatpush1.bf16.msra.mxu0 0
  %4135 = vmatprep.mubr.bf16.mxu0 0
  %4136 = vmatmul.mubr.bf16.gmra.mrb[0].mxu0 %v3553
  %v4137 = vpop.f32.mrb[0].mxu0
  %v4138 = vadd.f32 %v3647, %v4137
  %v4139 = vpop.f32.mrb[0].mxu0
  %v4140 = vadd.f32 %v3651, %v4139
  %v4141 = vpop.f32.mrb[0].mxu0
  %v4142 = vpop.f32.mrb[0].mxu0
  %4143 = vdwg.mxu0
  %v4144 = vmax.f32 %v4015, 0.0
  %v4145 = vmax.f32 %v4017, 0.0
  %v4146 = vmax.f32 %v4056, 0.0
  %v4147 = vmax.f32 %v4058, 0.0
  %v4148 = vmax.f32 %v4097, 0.0
  %v4149 = vmax.f32 %v4099, 0.0
  %v4150 = vmax.f32 %v4138, 0.0
  %v4151 = vmax.f32 %v4140, 0.0
  %v4152 = vpack.c.bf16 %v4144, %v4144
  %v4153 = vpack.c.bf16 %v4145, %v4145
  %v4154 = vpack.c.bf16 %v4146, %v4146
  %v4155 = vpack.c.bf16 %v4147, %v4147
  %v4156 = vpack.c.bf16 %v4148, %v4148
  %v4157 = vpack.c.bf16 %v4149, %v4149
  %v4158 = vpack.c.bf16 %v4150, %v4150
  %v4159 = vpack.c.bf16 %v4151, %v4151
  %v4160 = vld [vmem:[%s9] sm:$0xf]
  %v4161 = vld [vmem:[%s9 + $0x4] sm:$0xf]
  %v4162 = vld [vmem:[%s9 + $0x8] sm:$0xf]
  %v4163 = vld [vmem:[%s9 + $0xc] sm:$0xf]
  %v4164 = vld [vmem:[%s9 + $0x10] sm:$0xf]
  %v4165 = vld [vmem:[%s9 + $0x14] sm:$0xf]
  %v4166 = vld [vmem:[%s9 + $0x18] sm:$0xf]
  %v4167 = vld [vmem:[%s9 + $0x1c] sm:$0xf]
  %v4168 = vld [vmem:[%s9 + $0x20] sm:$0xf]
  %v4169 = vld [vmem:[%s9 + $0x24] sm:$0xf]
  %v4170 = vld [vmem:[%s9 + $0x28] sm:$0xf]
  %v4171 = vld [vmem:[%s9 + $0x2c] sm:$0xf]
  %v4172 = vld [vmem:[%s9 + $0x30] sm:$0xf]
  %v4173 = vld [vmem:[%s9 + $0x34] sm:$0xf]
  %v4174 = vld [vmem:[%s9 + $0x38] sm:$0xf]
  %v4175 = vld [vmem:[%s9 + $0x3c] sm:$0xf]
  %v4176 = vld [vmem:[%s9 + $0x40] sm:$0xf]
  %v4177 = vld [vmem:[%s9 + $0x44] sm:$0xf]
  %v4178 = vld [vmem:[%s9 + $0x48] sm:$0xf]
  %v4179 = vld [vmem:[%s9 + $0x4c] sm:$0xf]
  %v4180 = vld [vmem:[%s9 + $0x50] sm:$0xf]
  %v4181 = vld [vmem:[%s9 + $0x54] sm:$0xf]
  %v4182 = vld [vmem:[%s9 + $0x58] sm:$0xf]
  %v4183 = vld [vmem:[%s9 + $0x5c] sm:$0xf]
  %v4184 = vld [vmem:[%s9 + $0x60] sm:$0xf]
  %v4185 = vld [vmem:[%s9 + $0x64] sm:$0xf]
  %v4186 = vld [vmem:[%s9 + $0x68] sm:$0xf]
  %v4187 = vld [vmem:[%s9 + $0x6c] sm:$0xf]
  %v4188 = vld [vmem:[%s9 + $0x70] sm:$0xf]
  %v4189 = vld [vmem:[%s9 + $0x74] sm:$0xf]
  %v4190 = vld [vmem:[%s9 + $0x78] sm:$0xf]
  %v4191 = vld [vmem:[%s9 + $0x7c] sm:$0xf]
  %v4192 = vld [vmem:[%s9 + $0x80] sm:$0xf]
  %v4193 = vld [vmem:[%s9 + $0x84] sm:$0xf]
  %v4194 = vld [vmem:[%s9 + $0x88] sm:$0xf]
  %v4195 = vld [vmem:[%s9 + $0x8c] sm:$0xf]
  %v4196 = vld [vmem:[%s9 + $0x90] sm:$0xf]
  %v4197 = vld [vmem:[%s9 + $0x94] sm:$0xf]
  %v4198 = vld [vmem:[%s9 + $0x98] sm:$0xf]
  %v4199 = vld [vmem:[%s9 + $0x9c] sm:$0xf]
  %v4200 = vld [vmem:[%s9 + $0xa0] sm:$0xf]
  %v4201 = vld [vmem:[%s9 + $0xa4] sm:$0xf]
  %v4202 = vld [vmem:[%s9 + $0xa8] sm:$0xf]
  %v4203 = vld [vmem:[%s9 + $0xac] sm:$0xf]
  %v4204 = vld [vmem:[%s9 + $0xb0] sm:$0xf]
  %v4205 = vld [vmem:[%s9 + $0xb4] sm:$0xf]
  %v4206 = vld [vmem:[%s9 + $0xb8] sm:$0xf]
  %v4207 = vld [vmem:[%s9 + $0xbc] sm:$0xf]
  %v4208 = vld [vmem:[%s9 + $0xc0] sm:$0xf]
  %v4209 = vld [vmem:[%s9 + $0xc4] sm:$0xf]
  %v4210 = vld [vmem:[%s9 + $0xc8] sm:$0xf]
  %v4211 = vld [vmem:[%s9 + $0xcc] sm:$0xf]
  %v4212 = vld [vmem:[%s9 + $0xd0] sm:$0xf]
  %v4213 = vld [vmem:[%s9 + $0xd4] sm:$0xf]
  %v4214 = vld [vmem:[%s9 + $0xd8] sm:$0xf]
  %v4215 = vld [vmem:[%s9 + $0xdc] sm:$0xf]
  %v4216 = vld [vmem:[%s9 + $0xe0] sm:$0xf]
  %v4217 = vld [vmem:[%s9 + $0xe4] sm:$0xf]
  %v4218 = vld [vmem:[%s9 + $0xe8] sm:$0xf]
  %v4219 = vld [vmem:[%s9 + $0xec] sm:$0xf]
  %v4220 = vld [vmem:[%s9 + $0xf0] sm:$0xf]
  %v4221 = vld [vmem:[%s9 + $0xf4] sm:$0xf]
  %v4222 = vld [vmem:[%s9 + $0xf8] sm:$0xf]
  %v4223 = vld [vmem:[%s9 + $0xfc] sm:$0xf]
  %v4224 = vld [vmem:[%s9 + $0x100] sm:$0xf]
  %v4225 = vld [vmem:[%s9 + $0x104] sm:$0xf]
  %v4226 = vld [vmem:[%s9 + $0x108] sm:$0xf]
  %v4227 = vld [vmem:[%s9 + $0x10c] sm:$0xf]
  %v4228 = vld [vmem:[%s9 + $0x110] sm:$0xf]
  %v4229 = vld [vmem:[%s9 + $0x114] sm:$0xf]
  %v4230 = vld [vmem:[%s9 + $0x118] sm:$0xf]
  %v4231 = vld [vmem:[%s9 + $0x11c] sm:$0xf]
  %v4232 = vld [vmem:[%s9 + $0x120] sm:$0xf]
  %v4233 = vld [vmem:[%s9 + $0x124] sm:$0xf]
  %v4234 = vld [vmem:[%s9 + $0x128] sm:$0xf]
  %v4235 = vld [vmem:[%s9 + $0x12c] sm:$0xf]
  %v4236 = vld [vmem:[%s9 + $0x130] sm:$0xf]
  %v4237 = vld [vmem:[%s9 + $0x134] sm:$0xf]
  %v4238 = vld [vmem:[%s9 + $0x138] sm:$0xf]
  %v4239 = vld [vmem:[%s9 + $0x13c] sm:$0xf]
  %v4240 = vld [vmem:[%s9 + $0x140] sm:$0xf]
  %v4241 = vld [vmem:[%s9 + $0x144] sm:$0xf]
  %v4242 = vld [vmem:[%s9 + $0x148] sm:$0xf]
  %v4243 = vld [vmem:[%s9 + $0x14c] sm:$0xf]
  %v4244 = vld [vmem:[%s9 + $0x150] sm:$0xf]
  %v4245 = vld [vmem:[%s9 + $0x154] sm:$0xf]
  %v4246 = vld [vmem:[%s9 + $0x158] sm:$0xf]
  %v4247 = vld [vmem:[%s9 + $0x15c] sm:$0xf]
  %v4248 = vld [vmem:[%s9 + $0x160] sm:$0xf]
  %v4249 = vld [vmem:[%s9 + $0x164] sm:$0xf]
  %v4250 = vld [vmem:[%s9 + $0x168] sm:$0xf]
  %v4251 = vld [vmem:[%s9 + $0x16c] sm:$0xf]
  %v4252 = vld [vmem:[%s9 + $0x170] sm:$0xf]
  %v4253 = vld [vmem:[%s9 + $0x174] sm:$0xf]
  %v4254 = vld [vmem:[%s9 + $0x178] sm:$0xf]
  %v4255 = vld [vmem:[%s9 + $0x17c] sm:$0xf]
  %v4256 = vld [vmem:[%s9 + $0x180] sm:$0xf]
  %v4257 = vld [vmem:[%s9 + $0x184] sm:$0xf]
  %v4258 = vld [vmem:[%s9 + $0x188] sm:$0xf]
  %v4259 = vld [vmem:[%s9 + $0x18c] sm:$0xf]
  %v4260 = vld [vmem:[%s9 + $0x190] sm:$0xf]
  %v4261 = vld [vmem:[%s9 + $0x194] sm:$0xf]
  %v4262 = vld [vmem:[%s9 + $0x198] sm:$0xf]
  %v4263 = vld [vmem:[%s9 + $0x19c] sm:$0xf]
  %v4264 = vld [vmem:[%s9 + $0x1a0] sm:$0xf]
  %v4265 = vld [vmem:[%s9 + $0x1a4] sm:$0xf]
  %v4266 = vld [vmem:[%s9 + $0x1a8] sm:$0xf]
  %v4267 = vld [vmem:[%s9 + $0x1ac] sm:$0xf]
  %v4268 = vld [vmem:[%s9 + $0x1b0] sm:$0xf]
  %v4269 = vld [vmem:[%s9 + $0x1b4] sm:$0xf]
  %v4270 = vld [vmem:[%s9 + $0x1b8] sm:$0xf]
  %v4271 = vld [vmem:[%s9 + $0x1bc] sm:$0xf]
  %v4272 = vld [vmem:[%s9 + $0x1c0] sm:$0xf]
  %v4273 = vld [vmem:[%s9 + $0x1c4] sm:$0xf]
  %v4274 = vld [vmem:[%s9 + $0x1c8] sm:$0xf]
  %v4275 = vld [vmem:[%s9 + $0x1cc] sm:$0xf]
  %v4276 = vld [vmem:[%s9 + $0x1d0] sm:$0xf]
  %v4277 = vld [vmem:[%s9 + $0x1d4] sm:$0xf]
  %v4278 = vld [vmem:[%s9 + $0x1d8] sm:$0xf]
  %v4279 = vld [vmem:[%s9 + $0x1dc] sm:$0xf]
  %v4280 = vld [vmem:[%s9 + $0x1e0] sm:$0xf]
  %v4281 = vld [vmem:[%s9 + $0x1e4] sm:$0xf]
  %v4282 = vld [vmem:[%s9 + $0x1e8] sm:$0xf]
  %v4283 = vld [vmem:[%s9 + $0x1ec] sm:$0xf]
  %v4284 = vld [vmem:[%s9 + $0x1f0] sm:$0xf]
  %v4285 = vld [vmem:[%s9 + $0x1f4] sm:$0xf]
  %v4286 = vld [vmem:[%s9 + $0x1f8] sm:$0xf]
  %v4287 = vld [vmem:[%s9 + $0x1fc] sm:$0xf]
  %v4288 = vld [vmem:[%s10] sm:$0x1]
  %v4290 = vlaneseq
  %v4291 = vshrl.u32 %v4290, 7
  %v4292 = vsub.s32 0, %v4291
  %v4293 = vrot.slane %v4288, %v4292
  %v4423 = vunpack.c.l.b16 %v4160
  %v4424 = vunpack.c.l.b16 %v4161
  %v4425 = vunpack.c.l.b16 %v4162
  %v4426 = vunpack.c.l.b16 %v4163
  %v4427 = vunpack.c.l.b16 %v4164
  %v4428 = vunpack.c.l.b16 %v4165
  %v4429 = vunpack.c.l.b16 %v4166
  %v4430 = vunpack.c.l.b16 %v4167
  %v4431 = vunpack.c.l.b16 %v4168
  %v4432 = vunpack.c.l.b16 %v4169
  %v4433 = vunpack.c.l.b16 %v4170
  %v4434 = vunpack.c.l.b16 %v4171
  %v4435 = vunpack.c.l.b16 %v4172
  %v4436 = vunpack.c.l.b16 %v4173
  %v4437 = vunpack.c.l.b16 %v4174
  %v4438 = vunpack.c.l.b16 %v4175
  %v4439 = vunpack.c.l.b16 %v4176
  %v4440 = vunpack.c.l.b16 %v4177
  %v4441 = vunpack.c.l.b16 %v4178
  %v4442 = vunpack.c.l.b16 %v4179
  %v4443 = vunpack.c.l.b16 %v4180
  %v4444 = vunpack.c.l.b16 %v4181
  %v4445 = vunpack.c.l.b16 %v4182
  %v4446 = vunpack.c.l.b16 %v4183
  %v4447 = vunpack.c.l.b16 %v4184
  %v4448 = vunpack.c.l.b16 %v4185
  %v4449 = vunpack.c.l.b16 %v4186
  %v4450 = vunpack.c.l.b16 %v4187
  %v4451 = vunpack.c.l.b16 %v4188
  %v4452 = vunpack.c.l.b16 %v4189
  %v4453 = vunpack.c.l.b16 %v4190
  %v4454 = vunpack.c.l.b16 %v4191
  %v4455 = vunpack.c.l.b16 %v4192
  %v4456 = vunpack.c.l.b16 %v4193
  %v4457 = vunpack.c.l.b16 %v4194
  %v4458 = vunpack.c.l.b16 %v4195
  %v4459 = vunpack.c.l.b16 %v4196
  %v4460 = vunpack.c.l.b16 %v4197
  %v4461 = vunpack.c.l.b16 %v4198
  %v4462 = vunpack.c.l.b16 %v4199
  %v4463 = vunpack.c.l.b16 %v4200
  %v4464 = vunpack.c.l.b16 %v4201
  %v4465 = vunpack.c.l.b16 %v4202
  %v4466 = vunpack.c.l.b16 %v4203
  %v4467 = vunpack.c.l.b16 %v4204
  %v4468 = vunpack.c.l.b16 %v4205
  %v4469 = vunpack.c.l.b16 %v4206
  %v4470 = vunpack.c.l.b16 %v4207
  %v4471 = vunpack.c.l.b16 %v4208
  %v4472 = vunpack.c.l.b16 %v4209
  %v4473 = vunpack.c.l.b16 %v4210
  %v4474 = vunpack.c.l.b16 %v4211
  %v4475 = vunpack.c.l.b16 %v4212
  %v4476 = vunpack.c.l.b16 %v4213
  %v4477 = vunpack.c.l.b16 %v4214
  %v4478 = vunpack.c.l.b16 %v4215
  %v4479 = vunpack.c.l.b16 %v4216
  %v4480 = vunpack.c.l.b16 %v4217
  %v4481 = vunpack.c.l.b16 %v4218
  %v4482 = vunpack.c.l.b16 %v4219
  %v4483 = vunpack.c.l.b16 %v4220
  %v4484 = vunpack.c.l.b16 %v4221
  %v4485 = vunpack.c.l.b16 %v4222
  %v4486 = vunpack.c.l.b16 %v4223
  %v4487 = vunpack.c.l.b16 %v4224
  %v4488 = vunpack.c.l.b16 %v4225
  %v4489 = vunpack.c.l.b16 %v4226
  %v4490 = vunpack.c.l.b16 %v4227
  %v4491 = vunpack.c.l.b16 %v4228
  %v4492 = vunpack.c.l.b16 %v4229
  %v4493 = vunpack.c.l.b16 %v4230
  %v4494 = vunpack.c.l.b16 %v4231
  %v4495 = vunpack.c.l.b16 %v4232
  %v4496 = vunpack.c.l.b16 %v4233
  %v4497 = vunpack.c.l.b16 %v4234
  %v4498 = vunpack.c.l.b16 %v4235
  %v4499 = vunpack.c.l.b16 %v4236
  %v4500 = vunpack.c.l.b16 %v4237
  %v4501 = vunpack.c.l.b16 %v4238
  %v4502 = vunpack.c.l.b16 %v4239
  %v4503 = vunpack.c.l.b16 %v4240
  %v4504 = vunpack.c.l.b16 %v4241
  %v4505 = vunpack.c.l.b16 %v4242
  %v4506 = vunpack.c.l.b16 %v4243
  %v4507 = vunpack.c.l.b16 %v4244
  %v4508 = vunpack.c.l.b16 %v4245
  %v4509 = vunpack.c.l.b16 %v4246
  %v4510 = vunpack.c.l.b16 %v4247
  %v4511 = vunpack.c.l.b16 %v4248
  %v4512 = vunpack.c.l.b16 %v4249
  %v4513 = vunpack.c.l.b16 %v4250
  %v4514 = vunpack.c.l.b16 %v4251
  %v4515 = vunpack.c.l.b16 %v4252
  %v4516 = vunpack.c.l.b16 %v4253
  %v4517 = vunpack.c.l.b16 %v4254
  %v4518 = vunpack.c.l.b16 %v4255
  %v4519 = vunpack.c.l.b16 %v4256
  %v4520 = vunpack.c.l.b16 %v4257
  %v4521 = vunpack.c.l.b16 %v4258
  %v4522 = vunpack.c.l.b16 %v4259
  %v4523 = vunpack.c.l.b16 %v4260
  %v4524 = vunpack.c.l.b16 %v4261
  %v4525 = vunpack.c.l.b16 %v4262
  %v4526 = vunpack.c.l.b16 %v4263
  %v4527 = vunpack.c.l.b16 %v4264
  %v4528 = vunpack.c.l.b16 %v4265
  %v4529 = vunpack.c.l.b16 %v4266
  %v4530 = vunpack.c.l.b16 %v4267
  %v4531 = vunpack.c.l.b16 %v4268
  %v4532 = vunpack.c.l.b16 %v4269
  %v4533 = vunpack.c.l.b16 %v4270
  %v4534 = vunpack.c.l.b16 %v4271
  %v4535 = vunpack.c.l.b16 %v4272
  %v4536 = vunpack.c.l.b16 %v4273
  %v4537 = vunpack.c.l.b16 %v4274
  %v4538 = vunpack.c.l.b16 %v4275
  %v4539 = vunpack.c.l.b16 %v4276
  %v4540 = vunpack.c.l.b16 %v4277
  %v4541 = vunpack.c.l.b16 %v4278
  %v4542 = vunpack.c.l.b16 %v4279
  %v4543 = vunpack.c.l.b16 %v4280
  %v4544 = vunpack.c.l.b16 %v4281
  %v4545 = vunpack.c.l.b16 %v4282
  %v4546 = vunpack.c.l.b16 %v4283
  %v4547 = vunpack.c.l.b16 %v4284
  %v4548 = vunpack.c.l.b16 %v4285
  %v4549 = vunpack.c.l.b16 %v4286
  %v4550 = vunpack.c.l.b16 %v4287
  %v4551 = vpack.c.b16 %v4424, %v4423
  %v4552 = vpack.c.b16 %v4426, %v4425
  %v4553 = vpack.c.b16 %v4428, %v4427
  %v4554 = vpack.c.b16 %v4430, %v4429
  %v4555 = vpack.c.b16 %v4432, %v4431
  %v4556 = vpack.c.b16 %v4434, %v4433
  %v4557 = vpack.c.b16 %v4436, %v4435
  %v4558 = vpack.c.b16 %v4438, %v4437
  %v4559 = vpack.c.b16 %v4440, %v4439
  %v4560 = vpack.c.b16 %v4442, %v4441
  %v4561 = vpack.c.b16 %v4444, %v4443
  %v4562 = vpack.c.b16 %v4446, %v4445
  %v4563 = vpack.c.b16 %v4448, %v4447
  %v4564 = vpack.c.b16 %v4450, %v4449
  %v4565 = vpack.c.b16 %v4452, %v4451
  %v4566 = vpack.c.b16 %v4454, %v4453
  %v4567 = vpack.c.b16 %v4456, %v4455
  %v4568 = vpack.c.b16 %v4458, %v4457
  %v4569 = vpack.c.b16 %v4460, %v4459
  %v4570 = vpack.c.b16 %v4462, %v4461
  %v4571 = vpack.c.b16 %v4464, %v4463
  %v4572 = vpack.c.b16 %v4466, %v4465
  %v4573 = vpack.c.b16 %v4468, %v4467
  %v4574 = vpack.c.b16 %v4470, %v4469
  %v4575 = vpack.c.b16 %v4472, %v4471
  %v4576 = vpack.c.b16 %v4474, %v4473
  %v4577 = vpack.c.b16 %v4476, %v4475
  %v4578 = vpack.c.b16 %v4478, %v4477
  %v4579 = vpack.c.b16 %v4480, %v4479
  %v4580 = vpack.c.b16 %v4482, %v4481
  %v4581 = vpack.c.b16 %v4484, %v4483
  %v4582 = vpack.c.b16 %v4486, %v4485
  %v4583 = vpack.c.b16 %v4488, %v4487
  %v4584 = vpack.c.b16 %v4490, %v4489
  %v4585 = vpack.c.b16 %v4492, %v4491
  %v4586 = vpack.c.b16 %v4494, %v4493
  %v4587 = vpack.c.b16 %v4496, %v4495
  %v4588 = vpack.c.b16 %v4498, %v4497
  %v4589 = vpack.c.b16 %v4500, %v4499
  %v4590 = vpack.c.b16 %v4502, %v4501
  %v4591 = vpack.c.b16 %v4504, %v4503
  %v4592 = vpack.c.b16 %v4506, %v4505
  %v4593 = vpack.c.b16 %v4508, %v4507
  %v4594 = vpack.c.b16 %v4510, %v4509
  %v4595 = vpack.c.b16 %v4512, %v4511
  %v4596 = vpack.c.b16 %v4514, %v4513
  %v4597 = vpack.c.b16 %v4516, %v4515
  %v4598 = vpack.c.b16 %v4518, %v4517
  %v4599 = vpack.c.b16 %v4520, %v4519
  %v4600 = vpack.c.b16 %v4522, %v4521
  %v4601 = vpack.c.b16 %v4524, %v4523
  %v4602 = vpack.c.b16 %v4526, %v4525
  %v4603 = vpack.c.b16 %v4528, %v4527
  %v4604 = vpack.c.b16 %v4530, %v4529
  %v4605 = vpack.c.b16 %v4532, %v4531
  %v4606 = vpack.c.b16 %v4534, %v4533
  %v4607 = vpack.c.b16 %v4536, %v4535
  %v4608 = vpack.c.b16 %v4538, %v4537
  %v4609 = vpack.c.b16 %v4540, %v4539
  %v4610 = vpack.c.b16 %v4542, %v4541
  %v4611 = vpack.c.b16 %v4544, %v4543
  %v4612 = vpack.c.b16 %v4546, %v4545
  %v4613 = vpack.c.b16 %v4548, %v4547
  %v4614 = vpack.c.b16 %v4550, %v4549
  %4679 = vmatprep.subr.bf16.mxu0 0
  %4680 = vmatpush1.bf16.msra.mxu0 %v4551
  %4681 = vmatprep.subr.bf16.mxu0 0
  %4682 = vmatpush1.bf16.msra.mxu0 %v4552
  %4683 = vmatprep.subr.bf16.mxu0 0
  %4684 = vmatpush1.bf16.msra.mxu0 %v4553
  %4685 = vmatprep.subr.bf16.mxu0 0
  %4686 = vmatpush1.bf16.msra.mxu0 %v4554
  %4687 = vmatprep.subr.bf16.mxu0 0
  %4688 = vmatpush1.bf16.msra.mxu0 %v4555
  %4689 = vmatprep.subr.bf16.mxu0 0
  %4690 = vmatpush1.bf16.msra.mxu0 %v4556
  %4691 = vmatprep.subr.bf16.mxu0 0
  %4692 = vmatpush1.bf16.msra.mxu0 %v4557
  %4693 = vmatprep.subr.bf16.mxu0 0
  %4694 = vmatpush1.bf16.msra.mxu0 %v4558
  %4695 = vmatprep.subr.bf16.mxu0 0
  %4696 = vmatpush1.bf16.msra.mxu0 %v4559
  %4697 = vmatprep.subr.bf16.mxu0 0
  %4698 = vmatpush1.bf16.msra.mxu0 %v4560
  %4699 = vmatprep.subr.bf16.mxu0 0
  %4700 = vmatpush1.bf16.msra.mxu0 %v4561
  %4701 = vmatprep.subr.bf16.mxu0 0
  %4702 = vmatpush1.bf16.msra.mxu0 %v4562
  %4703 = vmatprep.subr.bf16.mxu0 0
  %4704 = vmatpush1.bf16.msra.mxu0 %v4563
  %4705 = vmatprep.subr.bf16.mxu0 0
  %4706 = vmatpush1.bf16.msra.mxu0 %v4564
  %4707 = vmatprep.subr.bf16.mxu0 0
  %4708 = vmatpush1.bf16.msra.mxu0 %v4565
  %4709 = vmatprep.subr.bf16.mxu0 0
  %4710 = vmatpush1.bf16.msra.mxu0 %v4566
  %4711 = vmatprep.mubr.bf16.mxu0 %v4153
  %4712 = vmatmul.mubr.bf16.gmra.mrb[0].mxu0 %v4152
  %v4713 = vpop.f32.mrb[0].mxu0
  %v4714 = vadd.f32 %v4293, %v4713
  %v4715 = vpop.f32.mrb[0].mxu0
  %v4716 = vpop.f32.mrb[0].mxu0
  %v4717 = vpop.f32.mrb[0].mxu0
  %4718 = vdwg.mxu0
  %4719 = vmatprep.subr.bf16.mxu0 0
  %4720 = vmatpush1.bf16.msra.mxu0 %v4567
  %4721 = vmatprep.subr.bf16.mxu0 0
  %4722 = vmatpush1.bf16.msra.mxu0 %v4568
  %4723 = vmatprep.subr.bf16.mxu0 0
  %4724 = vmatpush1.bf16.msra.mxu0 %v4569
  %4725 = vmatprep.subr.bf16.mxu0 0
  %4726 = vmatpush1.bf16.msra.mxu0 %v4570
  %4727 = vmatprep.subr.bf16.mxu0 0
  %4728 = vmatpush1.bf16.msra.mxu0 %v4571
  %4729 = vmatprep.subr.bf16.mxu0 0
  %4730 = vmatpush1.bf16.msra.mxu0 %v4572
  %4731 = vmatprep.subr.bf16.mxu0 0
  %4732 = vmatpush1.bf16.msra.mxu0 %v4573
  %4733 = vmatprep.subr.bf16.mxu0 0
  %4734 = vmatpush1.bf16.msra.mxu0 %v4574
  %4735 = vmatprep.subr.bf16.mxu0 0
  %4736 = vmatpush1.bf16.msra.mxu0 %v4575
  %4737 = vmatprep.subr.bf16.mxu0 0
  %4738 = vmatpush1.bf16.msra.mxu0 %v4576
  %4739 = vmatprep.subr.bf16.mxu0 0
  %4740 = vmatpush1.bf16.msra.mxu0 %v4577
  %4741 = vmatprep.subr.bf16.mxu0 0
  %4742 = vmatpush1.bf16.msra.mxu0 %v4578
  %4743 = vmatprep.subr.bf16.mxu0 0
  %4744 = vmatpush1.bf16.msra.mxu0 %v4579
  %4745 = vmatprep.subr.bf16.mxu0 0
  %4746 = vmatpush1.bf16.msra.mxu0 %v4580
  %4747 = vmatprep.subr.bf16.mxu0 0
  %4748 = vmatpush1.bf16.msra.mxu0 %v4581
  %4749 = vmatprep.subr.bf16.mxu0 0
  %4750 = vmatpush1.bf16.msra.mxu0 %v4582
  %4751 = vmatprep.mubr.bf16.mxu0 %v4155
  %4752 = vmatmul.mubr.bf16.gmra.mrb[0].mxu0 %v4154
  %v4753 = vpop.f32.mrb[0].mxu0
  %v4754 = vadd.f32 %v4714, %v4753
  %v4755 = vpop.f32.mrb[0].mxu0
  %v4756 = vpop.f32.mrb[0].mxu0
  %v4757 = vpop.f32.mrb[0].mxu0
  %4758 = vdwg.mxu0
  %4759 = vmatprep.subr.bf16.mxu0 0
  %4760 = vmatpush1.bf16.msra.mxu0 %v4583
  %4761 = vmatprep.subr.bf16.mxu0 0
  %4762 = vmatpush1.bf16.msra.mxu0 %v4584
  %4763 = vmatprep.subr.bf16.mxu0 0
  %4764 = vmatpush1.bf16.msra.mxu0 %v4585
  %4765 = vmatprep.subr.bf16.mxu0 0
  %4766 = vmatpush1.bf16.msra.mxu0 %v4586
  %4767 = vmatprep.subr.bf16.mxu0 0
  %4768 = vmatpush1.bf16.msra.mxu0 %v4587
  %4769 = vmatprep.subr.bf16.mxu0 0
  %4770 = vmatpush1.bf16.msra.mxu0 %v4588
  %4771 = vmatprep.subr.bf16.mxu0 0
  %4772 = vmatpush1.bf16.msra.mxu0 %v4589
  %4773 = vmatprep.subr.bf16.mxu0 0
  %4774 = vmatpush1.bf16.msra.mxu0 %v4590
  %4775 = vmatprep.subr.bf16.mxu0 0
  %4776 = vmatpush1.bf16.msra.mxu0 %v4591
  %4777 = vmatprep.subr.bf16.mxu0 0
  %4778 = vmatpush1.bf16.msra.mxu0 %v4592
  %4779 = vmatprep.subr.bf16.mxu0 0
  %4780 = vmatpush1.bf16.msra.mxu0 %v4593
  %4781 = vmatprep.subr.bf16.mxu0 0
  %4782 = vmatpush1.bf16.msra.mxu0 %v4594
  %4783 = vmatprep.subr.bf16.mxu0 0
  %4784 = vmatpush1.bf16.msra.mxu0 %v4595
  %4785 = vmatprep.subr.bf16.mxu0 0
  %4786 = vmatpush1.bf16.msra.mxu0 %v4596
  %4787 = vmatprep.subr.bf16.mxu0 0
  %4788 = vmatpush1.bf16.msra.mxu0 %v4597
  %4789 = vmatprep.subr.bf16.mxu0 0
  %4790 = vmatpush1.bf16.msra.mxu0 %v4598
  %4791 = vmatprep.mubr.bf16.mxu0 %v4157
  %4792 = vmatmul.mubr.bf16.gmra.mrb[0].mxu0 %v4156
  %v4793 = vpop.f32.mrb[0].mxu0
  %v4794 = vadd.f32 %v4754, %v4793
  %v4795 = vpop.f32.mrb[0].mxu0
  %v4796 = vpop.f32.mrb[0].mxu0
  %v4797 = vpop.f32.mrb[0].mxu0
  %4798 = vdwg.mxu0
  %4799 = vmatprep.subr.bf16.mxu0 0
  %4800 = vmatpush1.bf16.msra.mxu0 %v4599
  %4801 = vmatprep.subr.bf16.mxu0 0
  %4802 = vmatpush1.bf16.msra.mxu0 %v4600
  %4803 = vmatprep.subr.bf16.mxu0 0
  %4804 = vmatpush1.bf16.msra.mxu0 %v4601
  %4805 = vmatprep.subr.bf16.mxu0 0
  %4806 = vmatpush1.bf16.msra.mxu0 %v4602
  %4807 = vmatprep.subr.bf16.mxu0 0
  %4808 = vmatpush1.bf16.msra.mxu0 %v4603
  %4809 = vmatprep.subr.bf16.mxu0 0
  %4810 = vmatpush1.bf16.msra.mxu0 %v4604
  %4811 = vmatprep.subr.bf16.mxu0 0
  %4812 = vmatpush1.bf16.msra.mxu0 %v4605
  %4813 = vmatprep.subr.bf16.mxu0 0
  %4814 = vmatpush1.bf16.msra.mxu0 %v4606
  %4815 = vmatprep.subr.bf16.mxu0 0
  %4816 = vmatpush1.bf16.msra.mxu0 %v4607
  %4817 = vmatprep.subr.bf16.mxu0 0
  %4818 = vmatpush1.bf16.msra.mxu0 %v4608
  %4819 = vmatprep.subr.bf16.mxu0 0
  %4820 = vmatpush1.bf16.msra.mxu0 %v4609
  %4821 = vmatprep.subr.bf16.mxu0 0
  %4822 = vmatpush1.bf16.msra.mxu0 %v4610
  %4823 = vmatprep.subr.bf16.mxu0 0
  %4824 = vmatpush1.bf16.msra.mxu0 %v4611
  %4825 = vmatprep.subr.bf16.mxu0 0
  %4826 = vmatpush1.bf16.msra.mxu0 %v4612
  %4827 = vmatprep.subr.bf16.mxu0 0
  %4828 = vmatpush1.bf16.msra.mxu0 %v4613
  %4829 = vmatprep.subr.bf16.mxu0 0
  %4830 = vmatpush1.bf16.msra.mxu0 %v4614
  %4831 = vmatprep.mubr.bf16.mxu0 %v4159
  %4832 = vmatmul.mubr.bf16.gmra.mrb[0].mxu0 %v4158
  %v4833 = vpop.f32.mrb[0].mxu0
  %v4834 = vadd.f32 %v4794, %v4833
  %v4835 = vpop.f32.mrb[0].mxu0
  %v4836 = vpop.f32.mrb[0].mxu0
  %v4837 = vpop.f32.mrb[0].mxu0
  %4838 = vdwg.mxu0
  %vm4839 = vcmask 254976
  %4840 = vst.msk [vmem:[%s11] sm:$0x3] %vm4839, %v4834
  // Predicated region
  $region46: #{rainbow_forward.1} parent=0 // pred_check
    _
  $region47: #{rainbow_forward.1} parent=0 // pred_check_branch
    %4842 = sbr.rel (0) target = $region49
  $region48: #{rainbow_forward.1} parent=0 // pred_region
    _
  $region49: #{rainbow_forward.1} parent=0 // pred_fallthru
    _
  // Predicated region
  $region50: #{rainbow_forward.1} parent=0 // pred_check
    _
  $region51: #{rainbow_forward.1} parent=0 // pred_check_branch
    %4844 = sbr.rel (0) target = $region53
  $region52: #{rainbow_forward.1} parent=0 // pred_region
    _
  $region53: #{rainbow_forward.1} parent=0 // pred_fallthru
    _

</llo_original>
